<compile_context>
chip_gen: v7x
topology: tpu7x:2x2x1
jax: 0.10.0
libtpu: 0.0.40
codegen_flags: <defaults>
</compile_context>

<pallas_src>
import functools

import jax
import jax.numpy as jnp
from jax import lax
from jax.experimental import pallas as pl
from jax.experimental.pallas import tpu as pltpu

_LANE = 128
# Tile caps: big enough to amortize per-step overhead, small enough that
# double-buffered A/B + out + acc stay well under v7x's 64 MiB VMEM.
_TM_CAP = 512
_TN_CAP = 256
_TK_CAP = 2048
_VMEM_LIMIT = 48 * 1024 * 1024  # raise past v5e's 16 MiB scoped default


def _round_up(x, m):
    return ((x + m - 1) // m) * m


# ------------------------------ matmul kernels ------------------------------

def _matmul_kernel(a_ref, b_ref, o_ref, acc_ref):
    @pl.when(pl.program_id(2) == 0)
    def _():
        acc_ref[...] = jnp.zeros_like(acc_ref)

    acc_ref[...] += jnp.dot(a_ref[...], b_ref[...],
                            preferred_element_type=jnp.float32)

    @pl.when(pl.program_id(2) == pl.num_programs(2) - 1)
    def _():
        o_ref[...] = acc_ref[...].astype(o_ref.dtype)


def _matmul_kernel_single_k(a_ref, b_ref, o_ref):
    # Single K step: write straight to the output tile, no accumulator scratch.
    o_ref[...] = jnp.dot(a_ref[...], b_ref[...],
                         preferred_element_type=jnp.float32).astype(o_ref.dtype)


def pallas_matmul(a, b):
    """[M,K] @ [K,N] -> [M,N] fp32 on the MXU with adaptive 128-aligned tiles."""
    M, K = a.shape
    K2, N = b.shape
    assert K == K2
    M128 = _round_up(M, _LANE)
    K128 = _round_up(K, _LANE)
    N128 = _round_up(N, _LANE)
    tm = min(_TM_CAP, M128)
    tn = min(_TN_CAP, N128)
    tk = min(_TK_CAP, K128)
    Mp = _round_up(M128, tm)
    Kp = _round_up(K128, tk)
    Np = _round_up(N128, tn)

    a = a.astype(jnp.float32)
    b = b.astype(jnp.float32)
    if (Mp, Kp) != (M, K):                    # skip the copy when already aligned
        a = jnp.pad(a, ((0, Mp - M), (0, Kp - K)))
    if (Kp, Np) != (K, N):
        b = jnp.pad(b, ((0, Kp - K), (0, Np - N)))

    n_k = Kp // tk
    if n_k == 1:
        out = pl.pallas_call(
            _matmul_kernel_single_k,
            out_shape=jax.ShapeDtypeStruct((Mp, Np), jnp.float32),
            grid=(Mp // tm, Np // tn),
            in_specs=[pl.BlockSpec((tm, Kp), lambda i, j: (i, 0)),
                      pl.BlockSpec((Kp, tn), lambda i, j: (0, j))],
            out_specs=pl.BlockSpec((tm, tn), lambda i, j: (i, j)),
            compiler_params=pltpu.CompilerParams(
                dimension_semantics=("parallel", "parallel"),
                vmem_limit_bytes=_VMEM_LIMIT),
        )(a, b)
    else:
        out = pl.pallas_call(
            _matmul_kernel,
            out_shape=jax.ShapeDtypeStruct((Mp, Np), jnp.float32),
            grid=(Mp // tm, Np // tn, n_k),
            in_specs=[pl.BlockSpec((tm, tk), lambda i, j, k: (i, k)),
                      pl.BlockSpec((tk, tn), lambda i, j, k: (k, j))],
            out_specs=pl.BlockSpec((tm, tn), lambda i, j, k: (i, j)),
            scratch_shapes=[pltpu.VMEM((tm, tn), jnp.float32)],
            compiler_params=pltpu.CompilerParams(
                dimension_semantics=("parallel", "parallel", "arbitrary"),
                vmem_limit_bytes=_VMEM_LIMIT),
        )(a, b)

    if (Mp, Np) != (M, N):
        out = out[:M, :N]
    return out


# --------------------------- instance norm kernels ---------------------------

def _inorm_kernel(relu, x_ref, o_ref):
    # x_ref: (1, HW, C) channels-last block; normalize over HW per channel.
    x = x_ref[...]
    mean = jnp.mean(x, axis=1, keepdims=True)
    xc = x - mean
    var = jnp.mean(xc * xc, axis=1, keepdims=True)
    y = xc * lax.rsqrt(var + 1e-5)
    if relu:
        y = jnp.maximum(y, 0.0)
    o_ref[...] = y


def _inorm_res_relu_kernel(x_ref, r_ref, o_ref):
    # Fused: InstanceNorm -> add residual -> ReLU (epilogue of ResBlock2).
    x = x_ref[...]
    mean = jnp.mean(x, axis=1, keepdims=True)
    xc = x - mean
    var = jnp.mean(xc * xc, axis=1, keepdims=True)
    y = xc * lax.rsqrt(var + 1e-5) + r_ref[...]
    o_ref[...] = jnp.maximum(y, 0.0)


def instance_norm_nhwc(x, relu=False, residual=None):
    """x: [B, H*W, C] fp32. nn.InstanceNorm2d(affine=False, eps=1e-5) [+res+ReLU]."""
    B, HW, C = x.shape
    spec = pl.BlockSpec((1, HW, C), lambda b: (b, 0, 0))
    cp = pltpu.CompilerParams(dimension_semantics=("parallel",),
                              vmem_limit_bytes=_VMEM_LIMIT)
    if residual is None:
        return pl.pallas_call(
            functools.partial(_inorm_kernel, relu),
            out_shape=jax.ShapeDtypeStruct((B, HW, C), jnp.float32),
            grid=(B,),
            in_specs=[spec],
            out_specs=spec,
            compiler_params=cp,
        )(x)
    return pl.pallas_call(
        _inorm_res_relu_kernel,
        out_shape=jax.ShapeDtypeStruct((B, HW, C), jnp.float32),
        grid=(B,),
        in_specs=[spec, spec],
        out_specs=spec,
        compiler_params=cp,
    )(x, residual)


# --------------------------------- ResBlock2 ---------------------------------

def init_resblock2_params(key, input_feature, planes):
    k1, k2, k3 = jax.random.split(key, 3)

    def kaiming(k, shape, fan_in):
        return jax.random.normal(k, shape, jnp.float32) * (2.0 / fan_in) ** 0.5

    # PyTorch OIHW weights (bias=False on all three convs).
    w1 = kaiming(k1, (planes, input_feature, 1, 1), input_feature)
    w2 = kaiming(k2, (planes, planes, 3, 3), planes * 9)
    w3 = kaiming(k3, (input_feature, planes, 1, 1), planes)
    return {
        # GEMM layouts, built once at parameter setup (no per-call reshapes).
        'w1_mat': w1.reshape(planes, input_feature).T,                   # [C, P]
        'w2_mat': w2.transpose(2, 3, 1, 0).reshape(9 * planes, planes),  # [9P, P]
        'w3_mat': w3.reshape(input_feature, planes).T,                   # [P, C]
        # Original OIHW weights kept for the XLA reference check.
        'w1': w1, 'w2': w2, 'w3': w3,
    }


def resblock2_apply(params, x, dilation=1):
    """ResBlock2.forward.  x: NCHW fp32 -> NCHW fp32."""
    B, C, H, W = x.shape
    P = params['w2_mat'].shape[1]
    d = dilation

    # NCHW -> channels-last once (layout boundary).
    x_cl = x.transpose(0, 2, 3, 1)                                # [B, H, W, C]
    x_rows = x_cl.reshape(B * H * W, C)

    # conv1 (1x1) -> InstanceNorm -> ReLU
    h = pallas_matmul(x_rows, params['w1_mat'])                   # [BHW, P]
    h = instance_norm_nhwc(h.reshape(B, H * W, P), relu=True)

    # conv2 (3x3, dilation=d, padding=d) -> InstanceNorm -> ReLU
    hp = jnp.pad(h.reshape(B, H, W, P), ((0, 0), (d, d), (d, d), (0, 0)))
    taps = [hp[:, i * d:i * d + H, j * d:j * d + W, :]
            for i in range(3) for j in range(3)]
    patches = jnp.stack(taps, axis=3).reshape(B * H * W, 9 * P)   # [BHW, 9P]
    h = pallas_matmul(patches, params['w2_mat'])                  # [BHW, P]
    h = instance_norm_nhwc(h.reshape(B, H * W, P), relu=True)

    # conv3 (1x1) -> InstanceNorm -> +residual -> ReLU (fused in one kernel)
    h = pallas_matmul(h.reshape(B * H * W, P), params['w3_mat'])  # [BHW, C]
    out = instance_norm_nhwc(h.reshape(B, H * W, C),
                             residual=x_cl.reshape(B, H * W, C))
    return out.reshape(B, H, W, C).transpose(0, 3, 1, 2)


# ------------------------------ pure-XLA reference ----------------------------

def resblock2_reference(params, x, dilation=1):
    def inorm(v):
        mean = v.mean(axis=(2, 3), keepdims=True)
        var = ((v - mean) ** 2).mean(axis=(2, 3), keepdims=True)
        return (v - mean) * lax.rsqrt(var + 1e-5)

    dn = ('NCHW', 'OIHW', 'NCHW')
    hi = lax.Precision.HIGHEST
    p = dilation
    h = lax.conv_general_dilated(x, params['w1'], (1, 1), 'VALID',
                                 dimension_numbers=dn, precision=hi)
    h = jnp.maximum(inorm(h), 0.0)
    h = lax.conv_general_dilated(h, params['w2'], (1, 1), [(p, p), (p, p)],
                                 rhs_dilation=(dilation, dilation),
                                 dimension_numbers=dn, precision=hi)
    h = jnp.maximum(inorm(h), 0.0)
    h = lax.conv_general_dilated(h, params['w3'], (1, 1), 'VALID',
                                 dimension_numbers=dn, precision=hi)
    return jnp.maximum(inorm(h) + x, 0.0)


# ------------------------------------ main ------------------------------------

if __name__ == "__main__":
    # ResBlock2(128, 32) as used in the Ranking head, at a small spatial size.
    B, C, H, W = 2, 128, 16, 16
    planes = 32
    dilated = 1

    key = jax.random.PRNGKey(0)
    kp, kx = jax.random.split(key)
    params = init_resblock2_params(kp, C, planes)
    x = jax.random.normal(kx, (B, C, H, W), jnp.float32)

    fwd = jax.jit(functools.partial(resblock2_apply, dilation=dilated))
    out = jax.block_until_ready(fwd(params, x))

    assert out.shape == (B, C, H, W)
    assert bool(jnp.all(jnp.isfinite(out)))
    assert bool(jnp.all(out >= 0.0))          # final ReLU

    ref = resblock2_reference(params, x, dilated)
    err = float(jnp.max(jnp.abs(out - ref)))
    assert err < 3e-2, f"max abs error vs reference: {err}"

    print("KERNEL_OK")
</pallas_src>

<mosaic_0001>
module attributes {stable_mosaic.version = 11 : i64} {
  func.func @_matmul_kernel_single_k(%arg0: i32, %arg1: i32, %arg2: memref<512x128xf32, #tpu.memory_space<vmem>>, %arg3: memref<128x128xf32, #tpu.memory_space<vmem>>, %arg4: memref<512x128xf32, #tpu.memory_space<vmem>>) attributes {dimension_semantics = [#tpu.dimension_semantics<parallel>, #tpu.dimension_semantics<parallel>], iteration_bounds = array<i64: 1, 1>, scalar_prefetch = 0 : i64, scratch_operands = 0 : i64, tpu.core_type = #tpu.core_type<tc>, window_params = [{transform_indices = @transform_0, window_bounds = array<i64: 512, 128>}, {transform_indices = @transform_1, window_bounds = array<i64: 128, 128>}, {transform_indices = @transform_2, window_bounds = array<i64: 512, 128>}]} {
    %c0 = arith.constant 0 : index
    %c0_0 = arith.constant 0 : index
    %0 = vector.load %arg2[%c0, %c0_0] : memref<512x128xf32, #tpu.memory_space<vmem>>, vector<512x128xf32>
    %c0_1 = arith.constant 0 : index
    %c0_2 = arith.constant 0 : index
    %1 = vector.load %arg3[%c0_1, %c0_2] : memref<128x128xf32, #tpu.memory_space<vmem>>, vector<128x128xf32>
    %cst = arith.constant dense<0.000000e+00> : vector<512x128xf32>
    %2 = tpu.matmul %0, %1, %cst {dimension_numbers = #tpu.dot_dimension_numbers<[1], [0], [0], [1], [0, 0, 1, 1], [], []>} : vector<512x128xf32>, vector<128x128xf32>, vector<512x128xf32> -> vector<512x128xf32>
    %c0_3 = arith.constant 0 : index
    %c0_4 = arith.constant 0 : index
    %3 = vector.load %arg4[%c0_3, %c0_4] : memref<512x128xf32, #tpu.memory_space<vmem>>, vector<512x128xf32>
    tpu.vector_store %arg4[%c0_3, %c0_4], %2 {strides = array<i32>} : memref<512x128xf32, #tpu.memory_space<vmem>>, vector<512x128xf32>,
    return
  }
  func.func @transform_0(%arg0: i32, %arg1: i32) -> (i32, i32) {
    %c0_i32 = arith.constant 0 : i32
    %c0_i32_0 = arith.constant 0 : i32
    return %arg0, %c0_i32 : i32, i32
  }
  func.func @transform_1(%arg0: i32, %arg1: i32) -> (i32, i32) {
    %c0_i32 = arith.constant 0 : i32
    %c0_i32_0 = arith.constant 0 : i32
    return %c0_i32, %arg1 : i32, i32
  }
  func.func @transform_2(%arg0: i32, %arg1: i32) -> (i32, i32) {
    %c0_i32 = arith.constant 0 : i32
    return %arg0, %arg1 : i32, i32
  }
}

module attributes {stable_mosaic.version = 11 : i64} {
  func.func @_inorm_kernel(%arg0: i32, %arg1: memref<1x256x32xf32, #tpu.memory_space<vmem>>, %arg2: memref<1x256x32xf32, #tpu.memory_space<vmem>>) attributes {dimension_semantics = [#tpu.dimension_semantics<parallel>], iteration_bounds = array<i64: 2>, scalar_prefetch = 0 : i64, scratch_operands = 0 : i64, tpu.core_type = #tpu.core_type<tc>, window_params = [{transform_indices = @transform_0, window_bounds = array<i64: 1, 256, 32>}, {transform_indices = @transform_1, window_bounds = array<i64: 1, 256, 32>}]} {
    %c0 = arith.constant 0 : index
    %c0_0 = arith.constant 0 : index
    %c0_1 = arith.constant 0 : index
    %0 = vector.load %arg1[%c0, %c0_0, %c0_1] : memref<1x256x32xf32, #tpu.memory_space<vmem>>, vector<1x256x32xf32>
    %cst = arith.constant dense<0.000000e+00> : vector<1x32xf32>
    %1 = vector.multi_reduction <add>, %0, %cst [1] : vector<1x256x32xf32> to vector<1x32xf32>
    %2 = vector.shape_cast %1 : vector<1x32xf32> to vector<1x1x32xf32>
    %cst_2 = arith.constant 2.560000e+02 : f32
    %3 = vector.broadcast %cst_2 : f32 to vector<1x1x32xf32>
    %4 = arith.divf %2, %3 : vector<1x1x32xf32>
    %5 = vector.broadcast %4 : vector<1x1x32xf32> to vector<1x256x32xf32>
    %6 = arith.subf %0, %5 : vector<1x256x32xf32>
    %7 = arith.mulf %6, %6 : vector<1x256x32xf32>
    %cst_3 = arith.constant dense<0.000000e+00> : vector<1x32xf32>
    %8 = vector.multi_reduction <add>, %7, %cst_3 [1] : vector<1x256x32xf32> to vector<1x32xf32>
    %9 = vector.shape_cast %8 : vector<1x32xf32> to vector<1x1x32xf32>
    %cst_4 = arith.constant 2.560000e+02 : f32
    %10 = vector.broadcast %cst_4 : f32 to vector<1x1x32xf32>
    %11 = arith.divf %9, %10 : vector<1x1x32xf32>
    %cst_5 = arith.constant 9.99999974E-6 : f32
    %12 = vector.broadcast %cst_5 : f32 to vector<1x1x32xf32>
    %13 = arith.addf %11, %12 : vector<1x1x32xf32>
    %14 = math.rsqrt %13 : vector<1x1x32xf32>
    %15 = vector.broadcast %14 : vector<1x1x32xf32> to vector<1x256x32xf32>
    %16 = arith.mulf %6, %15 : vector<1x256x32xf32>
    %cst_6 = arith.constant 0.000000e+00 : f32
    %17 = vector.broadcast %cst_6 : f32 to vector<1x256x32xf32>
    %18 = arith.maximumf %16, %17 : vector<1x256x32xf32>
    %c0_7 = arith.constant 0 : index
    %c0_8 = arith.constant 0 : index
    %c0_9 = arith.constant 0 : index
    %19 = vector.load %arg2[%c0_7, %c0_8, %c0_9] : memref<1x256x32xf32, #tpu.memory_space<vmem>>, vector<1x256x32xf32>
    tpu.vector_store %arg2[%c0_7, %c0_8, %c0_9], %18 {strides = array<i32>} : memref<1x256x32xf32, #tpu.memory_space<vmem>>, vector<1x256x32xf32>,
    return
  }
  func.func @transform_0(%arg0: i32) -> (i32, i32, i32) {
    %c0_i32 = arith.constant 0 : i32
    %c0_i32_0 = arith.constant 0 : i32
    %c0_i32_1 = arith.constant 0 : i32
    return %arg0, %c0_i32, %c0_i32_0 : i32, i32, i32
  }
  func.func @transform_1(%arg0: i32) -> (i32, i32, i32) {
    %c0_i32 = arith.constant 0 : i32
    %c0_i32_0 = arith.constant 0 : i32
    %c0_i32_1 = arith.constant 0 : i32
    return %arg0, %c0_i32, %c0_i32_0 : i32, i32, i32
  }
}

module attributes {stable_mosaic.version = 11 : i64} {
  func.func @_matmul_kernel_single_k(%arg0: i32, %arg1: i32, %arg2: memref<512x384xf32, #tpu.memory_space<vmem>>, %arg3: memref<384x128xf32, #tpu.memory_space<vmem>>, %arg4: memref<512x128xf32, #tpu.memory_space<vmem>>) attributes {dimension_semantics = [#tpu.dimension_semantics<parallel>, #tpu.dimension_semantics<parallel>], iteration_bounds = array<i64: 1, 1>, scalar_prefetch = 0 : i64, scratch_operands = 0 : i64, tpu.core_type = #tpu.core_type<tc>, window_params = [{transform_indices = @transform_0, window_bounds = array<i64: 512, 384>}, {transform_indices = @transform_1, window_bounds = array<i64: 384, 128>}, {transform_indices = @transform_2, window_bounds = array<i64: 512, 128>}]} {
    %c0 = arith.constant 0 : index
    %c0_0 = arith.constant 0 : index
    %0 = vector.load %arg2[%c0, %c0_0] : memref<512x384xf32, #tpu.memory_space<vmem>>, vector<512x384xf32>
    %c0_1 = arith.constant 0 : index
    %c0_2 = arith.constant 0 : index
    %1 = vector.load %arg3[%c0_1, %c0_2] : memref<384x128xf32, #tpu.memory_space<vmem>>, vector<384x128xf32>
    %cst = arith.constant dense<0.000000e+00> : vector<512x128xf32>
    %2 = tpu.matmul %0, %1, %cst {dimension_numbers = #tpu.dot_dimension_numbers<[1], [0], [0], [1], [0, 0, 1, 1], [], []>} : vector<512x384xf32>, vector<384x128xf32>, vector<512x128xf32> -> vector<512x128xf32>
    %c0_3 = arith.constant 0 : index
    %c0_4 = arith.constant 0 : index
    %3 = vector.load %arg4[%c0_3, %c0_4] : memref<512x128xf32, #tpu.memory_space<vmem>>, vector<512x128xf32>
    tpu.vector_store %arg4[%c0_3, %c0_4], %2 {strides = array<i32>} : memref<512x128xf32, #tpu.memory_space<vmem>>, vector<512x128xf32>,
    return
  }
  func.func @transform_0(%arg0: i32, %arg1: i32) -> (i32, i32) {
    %c0_i32 = arith.constant 0 : i32
    %c0_i32_0 = arith.constant 0 : i32
    return %arg0, %c0_i32 : i32, i32
  }
  func.func @transform_1(%arg0: i32, %arg1: i32) -> (i32, i32) {
    %c0_i32 = arith.constant 0 : i32
    %c0_i32_0 = arith.constant 0 : i32
    return %c0_i32, %arg1 : i32, i32
  }
  func.func @transform_2(%arg0: i32, %arg1: i32) -> (i32, i32) {
    %c0_i32 = arith.constant 0 : i32
    return %arg0, %arg1 : i32, i32
  }
}

module attributes {stable_mosaic.version = 11 : i64} {
  func.func @_matmul_kernel_single_k(%arg0: i32, %arg1: i32, %arg2: memref<512x128xf32, #tpu.memory_space<vmem>>, %arg3: memref<128x128xf32, #tpu.memory_space<vmem>>, %arg4: memref<512x128xf32, #tpu.memory_space<vmem>>) attributes {dimension_semantics = [#tpu.dimension_semantics<parallel>, #tpu.dimension_semantics<parallel>], iteration_bounds = array<i64: 1, 1>, scalar_prefetch = 0 : i64, scratch_operands = 0 : i64, tpu.core_type = #tpu.core_type<tc>, window_params = [{transform_indices = @transform_0, window_bounds = array<i64: 512, 128>}, {transform_indices = @transform_1, window_bounds = array<i64: 128, 128>}, {transform_indices = @transform_2, window_bounds = array<i64: 512, 128>}]} {
    %c0 = arith.constant 0 : index
    %c0_0 = arith.constant 0 : index
    %0 = vector.load %arg2[%c0, %c0_0] : memref<512x128xf32, #tpu.memory_space<vmem>>, vector<512x128xf32>
    %c0_1 = arith.constant 0 : index
    %c0_2 = arith.constant 0 : index
    %1 = vector.load %arg3[%c0_1, %c0_2] : memref<128x128xf32, #tpu.memory_space<vmem>>, vector<128x128xf32>
    %cst = arith.constant dense<0.000000e+00> : vector<512x128xf32>
    %2 = tpu.matmul %0, %1, %cst {dimension_numbers = #tpu.dot_dimension_numbers<[1], [0], [0], [1], [0, 0, 1, 1], [], []>} : vector<512x128xf32>, vector<128x128xf32>, vector<512x128xf32> -> vector<512x128xf32>
    %c0_3 = arith.constant 0 : index
    %c0_4 = arith.constant 0 : index
    %3 = vector.load %arg4[%c0_3, %c0_4] : memref<512x128xf32, #tpu.memory_space<vmem>>, vector<512x128xf32>
    tpu.vector_store %arg4[%c0_3, %c0_4], %2 {strides = array<i32>} : memref<512x128xf32, #tpu.memory_space<vmem>>, vector<512x128xf32>,
    return
  }
  func.func @transform_0(%arg0: i32, %arg1: i32) -> (i32, i32) {
    %c0_i32 = arith.constant 0 : i32
    %c0_i32_0 = arith.constant 0 : i32
    return %arg0, %c0_i32 : i32, i32
  }
  func.func @transform_1(%arg0: i32, %arg1: i32) -> (i32, i32) {
    %c0_i32 = arith.constant 0 : i32
    %c0_i32_0 = arith.constant 0 : i32
    return %c0_i32, %arg1 : i32, i32
  }
  func.func @transform_2(%arg0: i32, %arg1: i32) -> (i32, i32) {
    %c0_i32 = arith.constant 0 : i32
    return %arg0, %arg1 : i32, i32
  }
}

module attributes {stable_mosaic.version = 11 : i64} {
  func.func @_inorm_res_relu_kernel(%arg0: i32, %arg1: memref<1x256x128xf32, #tpu.memory_space<vmem>>, %arg2: memref<1x256x128xf32, #tpu.memory_space<vmem>>, %arg3: memref<1x256x128xf32, #tpu.memory_space<vmem>>) attributes {dimension_semantics = [#tpu.dimension_semantics<parallel>], iteration_bounds = array<i64: 2>, scalar_prefetch = 0 : i64, scratch_operands = 0 : i64, tpu.core_type = #tpu.core_type<tc>, window_params = [{transform_indices = @transform_0, window_bounds = array<i64: 1, 256, 128>}, {transform_indices = @transform_1, window_bounds = array<i64: 1, 256, 128>}, {transform_indices = @transform_2, window_bounds = array<i64: 1, 256, 128>}]} {
    %c0 = arith.constant 0 : index
    %c0_0 = arith.constant 0 : index
    %c0_1 = arith.constant 0 : index
    %0 = vector.load %arg1[%c0, %c0_0, %c0_1] : memref<1x256x128xf32, #tpu.memory_space<vmem>>, vector<1x256x128xf32>
    %cst = arith.constant dense<0.000000e+00> : vector<1x128xf32>
    %1 = vector.multi_reduction <add>, %0, %cst [1] : vector<1x256x128xf32> to vector<1x128xf32>
    %2 = vector.shape_cast %1 : vector<1x128xf32> to vector<1x1x128xf32>
    %cst_2 = arith.constant 2.560000e+02 : f32
    %3 = vector.broadcast %cst_2 : f32 to vector<1x1x128xf32>
    %4 = arith.divf %2, %3 : vector<1x1x128xf32>
    %5 = vector.broadcast %4 : vector<1x1x128xf32> to vector<1x256x128xf32>
    %6 = arith.subf %0, %5 : vector<1x256x128xf32>
    %7 = arith.mulf %6, %6 : vector<1x256x128xf32>
    %cst_3 = arith.constant dense<0.000000e+00> : vector<1x128xf32>
    %8 = vector.multi_reduction <add>, %7, %cst_3 [1] : vector<1x256x128xf32> to vector<1x128xf32>
    %9 = vector.shape_cast %8 : vector<1x128xf32> to vector<1x1x128xf32>
    %cst_4 = arith.constant 2.560000e+02 : f32
    %10 = vector.broadcast %cst_4 : f32 to vector<1x1x128xf32>
    %11 = arith.divf %9, %10 : vector<1x1x128xf32>
    %cst_5 = arith.constant 9.99999974E-6 : f32
    %12 = vector.broadcast %cst_5 : f32 to vector<1x1x128xf32>
    %13 = arith.addf %11, %12 : vector<1x1x128xf32>
    %14 = math.rsqrt %13 : vector<1x1x128xf32>
    %15 = vector.broadcast %14 : vector<1x1x128xf32> to vector<1x256x128xf32>
    %16 = arith.mulf %6, %15 : vector<1x256x128xf32>
    %c0_6 = arith.constant 0 : index
    %c0_7 = arith.constant 0 : index
    %c0_8 = arith.constant 0 : index
    %17 = vector.load %arg2[%c0_6, %c0_7, %c0_8] : memref<1x256x128xf32, #tpu.memory_space<vmem>>, vector<1x256x128xf32>
    %18 = arith.addf %16, %17 : vector<1x256x128xf32>
    %cst_9 = arith.constant 0.000000e+00 : f32
    %19 = vector.broadcast %cst_9 : f32 to vector<1x256x128xf32>
    %20 = arith.maximumf %18, %19 : vector<1x256x128xf32>
    %c0_10 = arith.constant 0 : index
    %c0_11 = arith.constant 0 : index
    %c0_12 = arith.constant 0 : index
    %21 = vector.load %arg3[%c0_10, %c0_11, %c0_12] : memref<1x256x128xf32, #tpu.memory_space<vmem>>, vector<1x256x128xf32>
    tpu.vector_store %arg3[%c0_10, %c0_11, %c0_12], %20 {strides = array<i32>} : memref<1x256x128xf32, #tpu.memory_space<vmem>>, vector<1x256x128xf32>,
    return
  }
  func.func @transform_0(%arg0: i32) -> (i32, i32, i32) {
    %c0_i32 = arith.constant 0 : i32
    %c0_i32_0 = arith.constant 0 : i32
    %c0_i32_1 = arith.constant 0 : i32
    return %arg0, %c0_i32, %c0_i32_0 : i32, i32, i32
  }
  func.func @transform_1(%arg0: i32) -> (i32, i32, i32) {
    %c0_i32 = arith.constant 0 : i32
    %c0_i32_0 = arith.constant 0 : i32
    %c0_i32_1 = arith.constant 0 : i32
    return %arg0, %c0_i32, %c0_i32_0 : i32, i32, i32
  }
  func.func @transform_2(%arg0: i32) -> (i32, i32, i32) {
    %c0_i32 = arith.constant 0 : i32
    %c0_i32_0 = arith.constant 0 : i32
    %c0_i32_1 = arith.constant 0 : i32
    return %arg0, %c0_i32, %c0_i32_0 : i32, i32, i32
  }
}

</mosaic_0001>

<llo_original>
// kernel: resblock2_apply.7
$region0: #{resblock2_apply.7}
  #allocation0 [shape = 'u32[]', space=smem, size = 0x4, offset = 0x4, fixed_abs, tag = 'smem constant byte address 0x4 - core index']
  #allocation1 [shape = 'u32[144,128]{1,0:T(1,128)}', space=vmem, size = 0x12000, scoped, tag = 'internal scratch']
  %s0 = inlined_call_operand.vmem [shape: f32[2,256,32], index: 0, kind: input, shape index: {}]
  %s1 = inlined_call_operand.vmem [shape: f32[2,256,32], index: 1, kind: output, shape index: {}]
  %s2 = sld [smem:[#allocation0]]
  $region37: #{resblock2_apply.7} parent=0
    _
  %s4 = ssub.s32 1, %s2
  %s5 = scalar_select 0, %s4, %s2
  loop: start=0, step=1, limit=4
  $region2: #{resblock2_apply.7} parent=0 // loop_pre_header
    _
  $region3: #{resblock2_apply.7} parent=0 // loop_header
    %s7 = sphi 0, %s11
    %p8 = scmp.ge.s32.totalorder %s7, 4
    %s17 = sphi 0, %s19
    %s20 = sphi 0, %s17
    %s21 = sphi 0, %s20
    %s37 = sphi 0, %s21
    %s43 = sphi 0, %s45
    %s46 = sphi 0, %s43
    %s47 = sphi 0, %s46
    %s63 = sphi 0, %s47
  $region4: #{resblock2_apply.7} parent=0 // loop_header_branch
    %10 = sbr.rel (%p8) target = $region8
  $region5: #{resblock2_apply.7} parent=0 // loop_body
    %s12 = ssub.s32 %s7, 1
    %s13 = ssub.s32 %s7, 2
    %s14 = sadd.s32 %s7, 1
    %s15 = ssub.s32 %s7, %s14
    %p16 = scmp.eq.s32.totalorder %s15, 0
    %s18 = sadd.s32 %s17, 1
    %s19 = scalar_select %p16, %s17, %s18
    %p22 = pneg %p16
    %p23 = scmp.eq.s32.totalorder %s7, 1
    %p24 = por %p22, %p23
    %p25 = scmp.ne.s32.totalorder %s17, %s20
    %p26 = scmp.eq.s32.totalorder %s7, 0
    %p27 = por %p25, %p26
    %p28 = scmp.ne.s32.totalorder %s17, %s20
    %p29 = scmp.eq.s32.totalorder %s12, 1
    %p30 = por %p28, %p29
    %p31 = scmp.ne.s32.totalorder %s20, %s21
    %p32 = scmp.eq.s32.totalorder %s12, 0
    %p33 = por %p31, %p32
    %p34 = scmp.ne.s32.totalorder %s20, %s21
    %p35 = scmp.eq.s32.totalorder %s13, 1
    %p36 = por %p34, %p35
    %p38 = scmp.ne.s32.totalorder %s21, %s37
    %p39 = scmp.eq.s32.totalorder %s13, 0
    %p40 = por %p38, %p39
    %s41 = ssub.s32 %s7, %s14
    %p42 = scmp.eq.s32.totalorder %s41, 0
    %s44 = sadd.s32 %s43, 1
    %s45 = scalar_select %p42, %s43, %s44
    %p48 = pneg %p42
    %p49 = scmp.eq.s32.totalorder %s7, 1
    %p50 = por %p48, %p49
    %p51 = scmp.ne.s32.totalorder %s43, %s46
    %p52 = scmp.eq.s32.totalorder %s7, 0
    %p53 = por %p51, %p52
    %p54 = scmp.ne.s32.totalorder %s43, %s46
    %p55 = scmp.eq.s32.totalorder %s12, 1
    %p56 = por %p54, %p55
    %p57 = scmp.ne.s32.totalorder %s46, %s47
    %p58 = scmp.eq.s32.totalorder %s12, 0
    %p59 = por %p57, %p58
    %p60 = scmp.ne.s32.totalorder %s46, %s47
    %p61 = scmp.eq.s32.totalorder %s13, 1
    %p62 = por %p60, %p61
    %p64 = scmp.ne.s32.totalorder %s47, %s63
    %p65 = scmp.eq.s32.totalorder %s13, 0
    %p66 = por %p64, %p65
    %p67 = scmp.le.s32.totalorder 1, %s7
    %p68 = scmp.lt.s32.totalorder %s7, 3
    %p69 = pnand %p67, %p68
    %p70 = pneg %p69
    // Predicated region
    $region9: #{resblock2_apply.7} parent=5 // pred_check
      _
    $region10: #{resblock2_apply.7} parent=5 // pred_check_branch
      %72 = sbr.rel (%p69) target = $region12
    $region11: #{resblock2_apply.7} parent=5 // pred_region
      %s73 = ssub.s32 %s7, 1
    $region12: #{resblock2_apply.7} parent=5 // pred_fallthru
      _
    %p74 = scmp.lt.s32.totalorder %s7, 2
    // Predicated region
    $region13: #{resblock2_apply.7} parent=5 // pred_check
      %p75 = pneg %p74
    $region14: #{resblock2_apply.7} parent=5 // pred_check_branch
      %77 = sbr.rel (%p75) target = $region16
    $region15: #{resblock2_apply.7} parent=5 // pred_region
      // Predicated region
      $region17: #{resblock2_apply.7} parent=15 // pred_check
        %p78 = pneg %p27
      $region18: #{resblock2_apply.7} parent=15 // pred_check_branch
        %80 = sbr.rel (%p78) target = $region20
      $region19: #{resblock2_apply.7} parent=15 // pred_region
        %p81 = scmp.lt.s32.totalorder %s7, 1
        %s82 = scalar_select %p81, %s7, 1
        %s83 = smul.addr %s82, 32
        %s84 = smul.addr %s83, 8
        %s85 = scalar_lea.vmem %s0, %s84
      $region20: #{resblock2_apply.7} parent=15 // pred_fallthru
        _
    $region16: #{resblock2_apply.7} parent=5 // pred_fallthru
      _
    %p86 = scmp.le.s32.totalorder 1, %s7
    %p87 = scmp.lt.s32.totalorder %s7, 3
    %p88 = pnand %p86, %p87
    %p89 = pneg %p88
    // Predicated region
    $region21: #{resblock2_apply.7} parent=5 // pred_check
      _
    $region22: #{resblock2_apply.7} parent=5 // pred_check_branch
      %91 = sbr.rel (%p88) target = $region24
    $region23: #{resblock2_apply.7} parent=5 // pred_region
      %s92 = ssub.s32 %s7, 1
      %p93 = scmp.lt.s32.totalorder %s12, 1
      %s94 = scalar_select %p93, %s12, 1
      %s95 = smul.addr %s94, 32
      %s96 = smul.addr %s95, 8
      %s97 = scalar_lea.vmem %s0, %s96
      %p98 = pneg %p33
      %p99 = pneg %p30
      %p100 = pneg %p59
      %p101 = pneg %p56
      %p102 = scmp.lt.s32.totalorder %s12, 1
      %s103 = scalar_select %p102, %s12, 1
      %s104 = smul.addr %s103, 32
      %s105 = smul.addr %s104, 8
      %s106 = scalar_lea.vmem %s1, %s105
      %p107 = scmp.lt.s32.totalorder %s12, 1
      %s108 = scalar_select %p107, %s12, 1
      %s109 = smul.addr %s108, 32
      %s110 = smul.addr %s109, 8
      %s111 = scalar_lea.vmem %s0, %s110
      %p112 = scmp.lt.s32.totalorder %s12, 1
      %s113 = scalar_select %p112, %s12, 1
      %s114 = smul.addr %s113, 32
      %s115 = smul.addr %s114, 8
      %s116 = scalar_lea.vmem %s1, %s115
      %v117 = vld [vmem:[%s111] sm:$0xff]
      %v118 = vld [vmem:[%s111 + $0x8] sm:$0xff]
      %v119 = vld [vmem:[%s111 + $0x10] sm:$0xff]
      %v120 = vld [vmem:[%s111 + $0x18] sm:$0xff]
      %v121 = vld [vmem:[%s111 + $0x20] sm:$0xff]
      %v122 = vld [vmem:[%s111 + $0x28] sm:$0xff]
      %v123 = vld [vmem:[%s111 + $0x30] sm:$0xff]
      %v124 = vld [vmem:[%s111 + $0x38] sm:$0xff]
      %v125 = vld [vmem:[%s111 + $0x40] sm:$0xff]
      %v126 = vld [vmem:[%s111 + $0x48] sm:$0xff]
      %v127 = vld [vmem:[%s111 + $0x50] sm:$0xff]
      %v128 = vld [vmem:[%s111 + $0x58] sm:$0xff]
      %v129 = vld [vmem:[%s111 + $0x60] sm:$0xff]
      %v130 = vld [vmem:[%s111 + $0x68] sm:$0xff]
      %v131 = vld [vmem:[%s111 + $0x70] sm:$0xff]
      %v132 = vld [vmem:[%s111 + $0x78] sm:$0xff]
      %v133 = vld [vmem:[%s111 + $0x80] sm:$0xff]
      %v134 = vld [vmem:[%s111 + $0x88] sm:$0xff]
      %v135 = vld [vmem:[%s111 + $0x90] sm:$0xff]
      %v136 = vld [vmem:[%s111 + $0x98] sm:$0xff]
      %v137 = vld [vmem:[%s111 + $0xa0] sm:$0xff]
      %v138 = vld [vmem:[%s111 + $0xa8] sm:$0xff]
      %v139 = vld [vmem:[%s111 + $0xb0] sm:$0xff]
      %v140 = vld [vmem:[%s111 + $0xb8] sm:$0xff]
      %v141 = vld [vmem:[%s111 + $0xc0] sm:$0xff]
      %v142 = vld [vmem:[%s111 + $0xc8] sm:$0xff]
      %v143 = vld [vmem:[%s111 + $0xd0] sm:$0xff]
      %v144 = vld [vmem:[%s111 + $0xd8] sm:$0xff]
      %v145 = vld [vmem:[%s111 + $0xe0] sm:$0xff]
      %v146 = vld [vmem:[%s111 + $0xe8] sm:$0xff]
      %v147 = vld [vmem:[%s111 + $0xf0] sm:$0xff]
      %v148 = vld [vmem:[%s111 + $0xf8] sm:$0xff]
      %vm149 = vcmask 261120
      %v150 = vsel %vm149, %v117, 0.0
      %v151 = vsel %vm149, %v118, 0.0
      %v152 = vadd.f32 %v150, %v151
      %v153 = vsel %vm149, %v119, 0.0
      %v154 = vadd.f32 %v152, %v153
      %v155 = vsel %vm149, %v120, 0.0
      %v156 = vadd.f32 %v154, %v155
      %v157 = vsel %vm149, %v121, 0.0
      %v158 = vadd.f32 %v156, %v157
      %v159 = vsel %vm149, %v122, 0.0
      %v160 = vadd.f32 %v158, %v159
      %v161 = vsel %vm149, %v123, 0.0
      %v162 = vadd.f32 %v160, %v161
      %v163 = vsel %vm149, %v124, 0.0
      %v164 = vadd.f32 %v162, %v163
      %v165 = vsel %vm149, %v125, 0.0
      %v166 = vadd.f32 %v164, %v165
      %v167 = vsel %vm149, %v126, 0.0
      %v168 = vadd.f32 %v166, %v167
      %v169 = vsel %vm149, %v127, 0.0
      %v170 = vadd.f32 %v168, %v169
      %v171 = vsel %vm149, %v128, 0.0
      %v172 = vadd.f32 %v170, %v171
      %v173 = vsel %vm149, %v129, 0.0
      %v174 = vadd.f32 %v172, %v173
      %v175 = vsel %vm149, %v130, 0.0
      %v176 = vadd.f32 %v174, %v175
      %v177 = vsel %vm149, %v131, 0.0
      %v178 = vadd.f32 %v176, %v177
      %v179 = vsel %vm149, %v132, 0.0
      %v180 = vadd.f32 %v178, %v179
      %v181 = vsel %vm149, %v133, 0.0
      %v182 = vadd.f32 %v180, %v181
      %v183 = vsel %vm149, %v134, 0.0
      %v184 = vadd.f32 %v182, %v183
      %v185 = vsel %vm149, %v135, 0.0
      %v186 = vadd.f32 %v184, %v185
      %v187 = vsel %vm149, %v136, 0.0
      %v188 = vadd.f32 %v186, %v187
      %v189 = vsel %vm149, %v137, 0.0
      %v190 = vadd.f32 %v188, %v189
      %v191 = vsel %vm149, %v138, 0.0
      %v192 = vadd.f32 %v190, %v191
      %v193 = vsel %vm149, %v139, 0.0
      %v194 = vadd.f32 %v192, %v193
      %v195 = vsel %vm149, %v140, 0.0
      %v196 = vadd.f32 %v194, %v195
      %v197 = vsel %vm149, %v141, 0.0
      %v198 = vadd.f32 %v196, %v197
      %v199 = vsel %vm149, %v142, 0.0
      %v200 = vadd.f32 %v198, %v199
      %v201 = vsel %vm149, %v143, 0.0
      %v202 = vadd.f32 %v200, %v201
      %v203 = vsel %vm149, %v144, 0.0
      %v204 = vadd.f32 %v202, %v203
      %v205 = vsel %vm149, %v145, 0.0
      %v206 = vadd.f32 %v204, %v205
      %v207 = vsel %vm149, %v146, 0.0
      %v208 = vadd.f32 %v206, %v207
      %v209 = vsel %vm149, %v147, 0.0
      %v210 = vadd.f32 %v208, %v209
      %v211 = vsel %vm149, %v148, 0.0
      %v212 = vadd.f32 %v210, %v211
      %v213 = vrot.slane %v212, 4
      %v214 = vadd.f32 %v212, %v213
      %v215 = vrot.slane %v214, 2
      %v216 = vadd.f32 %v214, %v215
      %v217 = vrot.slane %v216, 1
      %v218 = vadd.f32 %v216, %v217
      %v219 = vrcp.pop 256.0
      %v220 = vmul.f32 %v218, %v219
      %v221 = vsub.f32 %v117, %v220
      %v222 = vsub.f32 %v118, %v220
      %v223 = vsub.f32 %v119, %v220
      %v224 = vsub.f32 %v120, %v220
      %v225 = vsub.f32 %v121, %v220
      %v226 = vsub.f32 %v122, %v220
      %v227 = vsub.f32 %v123, %v220
      %v228 = vsub.f32 %v124, %v220
      %v229 = vsub.f32 %v125, %v220
      %v230 = vsub.f32 %v126, %v220
      %v231 = vsub.f32 %v127, %v220
      %v232 = vsub.f32 %v128, %v220
      %v233 = vsub.f32 %v129, %v220
      %v234 = vsub.f32 %v130, %v220
      %v235 = vsub.f32 %v131, %v220
      %v236 = vsub.f32 %v132, %v220
      %v237 = vsub.f32 %v133, %v220
      %v238 = vsub.f32 %v134, %v220
      %v239 = vsub.f32 %v135, %v220
      %v240 = vsub.f32 %v136, %v220
      %v241 = vsub.f32 %v137, %v220
      %v242 = vsub.f32 %v138, %v220
      %v243 = vsub.f32 %v139, %v220
      %v244 = vsub.f32 %v140, %v220
      %v245 = vsub.f32 %v141, %v220
      %v246 = vsub.f32 %v142, %v220
      %v247 = vsub.f32 %v143, %v220
      %v248 = vsub.f32 %v144, %v220
      %v249 = vsub.f32 %v145, %v220
      %v250 = vsub.f32 %v146, %v220
      %v251 = vsub.f32 %v147, %v220
      %v252 = vsub.f32 %v148, %v220
      %v253 = vmul.f32 %v221, %v221
      %v254 = vmul.f32 %v222, %v222
      %v255 = vmul.f32 %v223, %v223
      %v256 = vmul.f32 %v224, %v224
      %v257 = vmul.f32 %v225, %v225
      %v258 = vmul.f32 %v226, %v226
      %v259 = vmul.f32 %v227, %v227
      %v260 = vmul.f32 %v228, %v228
      %v261 = vmul.f32 %v229, %v229
      %v262 = vmul.f32 %v230, %v230
      %v263 = vmul.f32 %v231, %v231
      %v264 = vmul.f32 %v232, %v232
      %v265 = vmul.f32 %v233, %v233
      %v266 = vmul.f32 %v234, %v234
      %v267 = vmul.f32 %v235, %v235
      %v268 = vmul.f32 %v236, %v236
      %v269 = vmul.f32 %v237, %v237
      %v270 = vmul.f32 %v238, %v238
      %v271 = vmul.f32 %v239, %v239
      %v272 = vmul.f32 %v240, %v240
      %v273 = vmul.f32 %v241, %v241
      %v274 = vmul.f32 %v242, %v242
      %v275 = vmul.f32 %v243, %v243
      %v276 = vmul.f32 %v244, %v244
      %v277 = vmul.f32 %v245, %v245
      %v278 = vmul.f32 %v246, %v246
      %v279 = vmul.f32 %v247, %v247
      %v280 = vmul.f32 %v248, %v248
      %v281 = vmul.f32 %v249, %v249
      %v282 = vmul.f32 %v250, %v250
      %v283 = vmul.f32 %v251, %v251
      %v284 = vmul.f32 %v252, %v252
      %v285 = vsel %vm149, %v253, 0.0
      %v286 = vsel %vm149, %v254, 0.0
      %v287 = vadd.f32 %v285, %v286
      %v288 = vsel %vm149, %v255, 0.0
      %v289 = vadd.f32 %v287, %v288
      %v290 = vsel %vm149, %v256, 0.0
      %v291 = vadd.f32 %v289, %v290
      %v292 = vsel %vm149, %v257, 0.0
      %v293 = vadd.f32 %v291, %v292
      %v294 = vsel %vm149, %v258, 0.0
      %v295 = vadd.f32 %v293, %v294
      %v296 = vsel %vm149, %v259, 0.0
      %v297 = vadd.f32 %v295, %v296
      %v298 = vsel %vm149, %v260, 0.0
      %v299 = vadd.f32 %v297, %v298
      %v300 = vsel %vm149, %v261, 0.0
      %v301 = vadd.f32 %v299, %v300
      %v302 = vsel %vm149, %v262, 0.0
      %v303 = vadd.f32 %v301, %v302
      %v304 = vsel %vm149, %v263, 0.0
      %v305 = vadd.f32 %v303, %v304
      %v306 = vsel %vm149, %v264, 0.0
      %v307 = vadd.f32 %v305, %v306
      %v308 = vsel %vm149, %v265, 0.0
      %v309 = vadd.f32 %v307, %v308
      %v310 = vsel %vm149, %v266, 0.0
      %v311 = vadd.f32 %v309, %v310
      %v312 = vsel %vm149, %v267, 0.0
      %v313 = vadd.f32 %v311, %v312
      %v314 = vsel %vm149, %v268, 0.0
      %v315 = vadd.f32 %v313, %v314
      %v316 = vsel %vm149, %v269, 0.0
      %v317 = vadd.f32 %v315, %v316
      %v318 = vsel %vm149, %v270, 0.0
      %v319 = vadd.f32 %v317, %v318
      %v320 = vsel %vm149, %v271, 0.0
      %v321 = vadd.f32 %v319, %v320
      %v322 = vsel %vm149, %v272, 0.0
      %v323 = vadd.f32 %v321, %v322
      %v324 = vsel %vm149, %v273, 0.0
      %v325 = vadd.f32 %v323, %v324
      %v326 = vsel %vm149, %v274, 0.0
      %v327 = vadd.f32 %v325, %v326
      %v328 = vsel %vm149, %v275, 0.0
      %v329 = vadd.f32 %v327, %v328
      %v330 = vsel %vm149, %v276, 0.0
      %v331 = vadd.f32 %v329, %v330
      %v332 = vsel %vm149, %v277, 0.0
      %v333 = vadd.f32 %v331, %v332
      %v334 = vsel %vm149, %v278, 0.0
      %v335 = vadd.f32 %v333, %v334
      %v336 = vsel %vm149, %v279, 0.0
      %v337 = vadd.f32 %v335, %v336
      %v338 = vsel %vm149, %v280, 0.0
      %v339 = vadd.f32 %v337, %v338
      %v340 = vsel %vm149, %v281, 0.0
      %v341 = vadd.f32 %v339, %v340
      %v342 = vsel %vm149, %v282, 0.0
      %v343 = vadd.f32 %v341, %v342
      %v344 = vsel %vm149, %v283, 0.0
      %v345 = vadd.f32 %v343, %v344
      %v346 = vsel %vm149, %v284, 0.0
      %v347 = vadd.f32 %v345, %v346
      %v348 = vrot.slane %v347, 4
      %v349 = vadd.f32 %v347, %v348
      %v350 = vrot.slane %v349, 2
      %v351 = vadd.f32 %v349, %v350
      %v352 = vrot.slane %v351, 1
      %v353 = vadd.f32 %v351, %v352
      %v354 = vmul.f32 %v353, %v219
      %v355 = vadd.f32 %v354, 1e-05
      %v356 = vrsqrt.pop %v355
      %v357 = vmul.f32 %v221, %v356
      %v358 = vmul.f32 %v222, %v356
      %v359 = vmul.f32 %v223, %v356
      %v360 = vmul.f32 %v224, %v356
      %v361 = vmul.f32 %v225, %v356
      %v362 = vmul.f32 %v226, %v356
      %v363 = vmul.f32 %v227, %v356
      %v364 = vmul.f32 %v228, %v356
      %v365 = vmul.f32 %v229, %v356
      %v366 = vmul.f32 %v230, %v356
      %v367 = vmul.f32 %v231, %v356
      %v368 = vmul.f32 %v232, %v356
      %v369 = vmul.f32 %v233, %v356
      %v370 = vmul.f32 %v234, %v356
      %v371 = vmul.f32 %v235, %v356
      %v372 = vmul.f32 %v236, %v356
      %v373 = vmul.f32 %v237, %v356
      %v374 = vmul.f32 %v238, %v356
      %v375 = vmul.f32 %v239, %v356
      %v376 = vmul.f32 %v240, %v356
      %v377 = vmul.f32 %v241, %v356
      %v378 = vmul.f32 %v242, %v356
      %v379 = vmul.f32 %v243, %v356
      %v380 = vmul.f32 %v244, %v356
      %v381 = vmul.f32 %v245, %v356
      %v382 = vmul.f32 %v246, %v356
      %v383 = vmul.f32 %v247, %v356
      %v384 = vmul.f32 %v248, %v356
      %v385 = vmul.f32 %v249, %v356
      %v386 = vmul.f32 %v250, %v356
      %v387 = vmul.f32 %v251, %v356
      %v388 = vmul.f32 %v252, %v356
      %v389 = vmax.f32 %v357, 0.0
      %v390 = vmax.f32 %v358, 0.0
      %v391 = vmax.f32 %v359, 0.0
      %v392 = vmax.f32 %v360, 0.0
      %v393 = vmax.f32 %v361, 0.0
      %v394 = vmax.f32 %v362, 0.0
      %v395 = vmax.f32 %v363, 0.0
      %v396 = vmax.f32 %v364, 0.0
      %v397 = vmax.f32 %v365, 0.0
      %v398 = vmax.f32 %v366, 0.0
      %v399 = vmax.f32 %v367, 0.0
      %v400 = vmax.f32 %v368, 0.0
      %v401 = vmax.f32 %v369, 0.0
      %v402 = vmax.f32 %v370, 0.0
      %v403 = vmax.f32 %v371, 0.0
      %v404 = vmax.f32 %v372, 0.0
      %v405 = vmax.f32 %v373, 0.0
      %v406 = vmax.f32 %v374, 0.0
      %v407 = vmax.f32 %v375, 0.0
      %v408 = vmax.f32 %v376, 0.0
      %v409 = vmax.f32 %v377, 0.0
      %v410 = vmax.f32 %v378, 0.0
      %v411 = vmax.f32 %v379, 0.0
      %v412 = vmax.f32 %v380, 0.0
      %v413 = vmax.f32 %v381, 0.0
      %v414 = vmax.f32 %v382, 0.0
      %v415 = vmax.f32 %v383, 0.0
      %v416 = vmax.f32 %v384, 0.0
      %v417 = vmax.f32 %v385, 0.0
      %v418 = vmax.f32 %v386, 0.0
      %v419 = vmax.f32 %v387, 0.0
      %v420 = vmax.f32 %v388, 0.0
      %421 = vst.msk [vmem:[%s116] sm:$0xff] %vm149, %v389
      %422 = vst.msk [vmem:[%s116 + $0x8] sm:$0xff] %vm149, %v390
      %423 = vst.msk [vmem:[%s116 + $0x10] sm:$0xff] %vm149, %v391
      %424 = vst.msk [vmem:[%s116 + $0x18] sm:$0xff] %vm149, %v392
      %425 = vst.msk [vmem:[%s116 + $0x20] sm:$0xff] %vm149, %v393
      %426 = vst.msk [vmem:[%s116 + $0x28] sm:$0xff] %vm149, %v394
      %427 = vst.msk [vmem:[%s116 + $0x30] sm:$0xff] %vm149, %v395
      %428 = vst.msk [vmem:[%s116 + $0x38] sm:$0xff] %vm149, %v396
      %429 = vst.msk [vmem:[%s116 + $0x40] sm:$0xff] %vm149, %v397
      %430 = vst.msk [vmem:[%s116 + $0x48] sm:$0xff] %vm149, %v398
      %431 = vst.msk [vmem:[%s116 + $0x50] sm:$0xff] %vm149, %v399
      %432 = vst.msk [vmem:[%s116 + $0x58] sm:$0xff] %vm149, %v400
      %433 = vst.msk [vmem:[%s116 + $0x60] sm:$0xff] %vm149, %v401
      %434 = vst.msk [vmem:[%s116 + $0x68] sm:$0xff] %vm149, %v402
      %435 = vst.msk [vmem:[%s116 + $0x70] sm:$0xff] %vm149, %v403
      %436 = vst.msk [vmem:[%s116 + $0x78] sm:$0xff] %vm149, %v404
      %437 = vst.msk [vmem:[%s116 + $0x80] sm:$0xff] %vm149, %v405
      %438 = vst.msk [vmem:[%s116 + $0x88] sm:$0xff] %vm149, %v406
      %439 = vst.msk [vmem:[%s116 + $0x90] sm:$0xff] %vm149, %v407
      %440 = vst.msk [vmem:[%s116 + $0x98] sm:$0xff] %vm149, %v408
      %441 = vst.msk [vmem:[%s116 + $0xa0] sm:$0xff] %vm149, %v409
      %442 = vst.msk [vmem:[%s116 + $0xa8] sm:$0xff] %vm149, %v410
      %443 = vst.msk [vmem:[%s116 + $0xb0] sm:$0xff] %vm149, %v411
      %444 = vst.msk [vmem:[%s116 + $0xb8] sm:$0xff] %vm149, %v412
      %445 = vst.msk [vmem:[%s116 + $0xc0] sm:$0xff] %vm149, %v413
      %446 = vst.msk [vmem:[%s116 + $0xc8] sm:$0xff] %vm149, %v414
      %447 = vst.msk [vmem:[%s116 + $0xd0] sm:$0xff] %vm149, %v415
      %448 = vst.msk [vmem:[%s116 + $0xd8] sm:$0xff] %vm149, %v416
      %449 = vst.msk [vmem:[%s116 + $0xe0] sm:$0xff] %vm149, %v417
      %450 = vst.msk [vmem:[%s116 + $0xe8] sm:$0xff] %vm149, %v418
      %451 = vst.msk [vmem:[%s116 + $0xf0] sm:$0xff] %vm149, %v419
      %452 = vst.msk [vmem:[%s116 + $0xf8] sm:$0xff] %vm149, %v420
      %p453 = scmp.lt.s32.totalorder %s12, 1
      %s454 = scalar_select %p453, %s12, 1
      %s455 = smul.addr %s454, 32
      %s456 = smul.addr %s455, 8
      %s457 = scalar_lea.vmem %s1, %s456
      // Predicated region
      $region25: #{resblock2_apply.7} parent=23 // pred_check
        %p458 = pneg %p56
      $region26: #{resblock2_apply.7} parent=23 // pred_check_branch
        %460 = sbr.rel (%p458) target = $region28
      $region27: #{resblock2_apply.7} parent=23 // pred_region
        _
      $region28: #{resblock2_apply.7} parent=23 // pred_fallthru
        _
    $region24: #{resblock2_apply.7} parent=5 // pred_fallthru
      _
    %p461 = scmp.le.s32.totalorder 2, %s7
    // Predicated region
    $region29: #{resblock2_apply.7} parent=5 // pred_check
      %p462 = pneg %p461
    $region30: #{resblock2_apply.7} parent=5 // pred_check_branch
      %464 = sbr.rel (%p462) target = $region32
    $region31: #{resblock2_apply.7} parent=5 // pred_region
      %s465 = ssub.s32 %s7, 2
      // Predicated region
      $region33: #{resblock2_apply.7} parent=31 // pred_check
        %p466 = pneg %p62
      $region34: #{resblock2_apply.7} parent=31 // pred_check_branch
        %468 = sbr.rel (%p466) target = $region36
      $region35: #{resblock2_apply.7} parent=31 // pred_region
        %p469 = scmp.lt.s32.totalorder %s13, 1
        %s470 = scalar_select %p469, %s13, 1
        %s471 = smul.addr %s470, 32
        %s472 = smul.addr %s471, 8
        %s473 = scalar_lea.vmem %s1, %s472
      $region36: #{resblock2_apply.7} parent=31 // pred_fallthru
        _
    $region32: #{resblock2_apply.7} parent=5 // pred_fallthru
      _
  $region6: #{resblock2_apply.7} parent=0 // loop_footer
    %s11 = sadd.s32 1, %s7
  $region7: #{resblock2_apply.7} parent=0 // loop_footer_branch
    %6 = sbr.rel target = $region3
  $region8: #{resblock2_apply.7} parent=0 // loop_exit
    _

// kernel: resblock2_apply.6
$region0: #{resblock2_apply.6}
  #allocation0 [shape = 'u32[]', space=smem, size = 0x4, offset = 0x4, fixed_abs, tag = 'smem constant byte address 0x4 - core index']
  #allocation1 [shape = 'u32[144,128]{1,0:T(1,128)}', space=vmem, size = 0x12000, scoped, tag = 'internal scratch']
  %s0 = inlined_call_operand.hbm [shape: f32[512,128], index: 0, kind: input, shape index: {}]
  %s1 = inlined_call_operand.vmem [shape: f32[128,128], index: 1, kind: input, shape index: {}]
  %s2 = inlined_call_operand.vmem [shape: f32[512,128], index: 2, kind: output, shape index: {}]
  %s3 = sld [smem:[#allocation0]]
  $region22: #{resblock2_apply.6} parent=0
    _
  %s5 = ssub.s32 1, %s3
  %s6 = scalar_select 0, %s5, %s3
  $region1: #{resblock2_apply.6} parent=0
    #allocation2 [shape = 'u8[262144]{0}', space=vmem, size = 0x40000, scoped, tag = 'input window, operand 0, single buffered']
    #allocation3 [shape = 's32[1]{0}', space=sflag, size = 0x4, scoped, tag = 'scoped memory for resblock2_apply.6']
    %7 = vsyncpa [#allocation3], 0
    // Predicated region
    $region2: #{resblock2_apply.6} parent=1 // pred_check
      _
    $region3: #{resblock2_apply.6} parent=1 // pred_check_branch
      %9 = sbr.rel (0) target = $region5
    $region4: #{resblock2_apply.6} parent=1 // pred_region
      %s11 = ssub.s32 8192, 8192
      %12 = vsyncadd [#allocation3], %s11
      %s13 = sshll.u32 [#allocation2], 4
      %s14 = int_to_ptr.vmem [resolvable:$true] %s13
      %19 = dma.hbm_to_vmem [thread:$0]  %s0, 8192, %s14, [#allocation3], 128, 128, 8
    $region5: #{resblock2_apply.6} parent=1 // pred_fallthru
      _
    // Predicated region
    $region6: #{resblock2_apply.6} parent=1 // pred_check
      _
    $region7: #{resblock2_apply.6} parent=1 // pred_check_branch
      %21 = sbr.rel (0) target = $region9
    $region8: #{resblock2_apply.6} parent=1 // pred_region
      _
    $region9: #{resblock2_apply.6} parent=1 // pred_fallthru
      _
    // Predicated region
    $region10: #{resblock2_apply.6} parent=1 // pred_check
      _
    $region11: #{resblock2_apply.6} parent=1 // pred_check_branch
      %23 = sbr.rel (0) target = $region13
    $region12: #{resblock2_apply.6} parent=1 // pred_region
      %24 = dma.done [#allocation3], 8192
    $region13: #{resblock2_apply.6} parent=1 // pred_fallthru
      _
    %v25 = vld [vmem:[#allocation2] sm:$0xff]
    %v26 = vld [vmem:[#allocation2 + $0x8] sm:$0xff]
    %v27 = vld [vmem:[#allocation2 + $0x10] sm:$0xff]
    %v28 = vld [vmem:[#allocation2 + $0x18] sm:$0xff]
    %v29 = vld [vmem:[#allocation2 + $0x20] sm:$0xff]
    %v30 = vld [vmem:[#allocation2 + $0x28] sm:$0xff]
    %v31 = vld [vmem:[#allocation2 + $0x30] sm:$0xff]
    %v32 = vld [vmem:[#allocation2 + $0x38] sm:$0xff]
    %v33 = vld [vmem:[#allocation2 + $0x40] sm:$0xff]
    %v34 = vld [vmem:[#allocation2 + $0x48] sm:$0xff]
    %v35 = vld [vmem:[#allocation2 + $0x50] sm:$0xff]
    %v36 = vld [vmem:[#allocation2 + $0x58] sm:$0xff]
    %v37 = vld [vmem:[#allocation2 + $0x60] sm:$0xff]
    %v38 = vld [vmem:[#allocation2 + $0x68] sm:$0xff]
    %v39 = vld [vmem:[#allocation2 + $0x70] sm:$0xff]
    %v40 = vld [vmem:[#allocation2 + $0x78] sm:$0xff]
    %v41 = vld [vmem:[#allocation2 + $0x80] sm:$0xff]
    %v42 = vld [vmem:[#allocation2 + $0x88] sm:$0xff]
    %v43 = vld [vmem:[#allocation2 + $0x90] sm:$0xff]
    %v44 = vld [vmem:[#allocation2 + $0x98] sm:$0xff]
    %v45 = vld [vmem:[#allocation2 + $0xa0] sm:$0xff]
    %v46 = vld [vmem:[#allocation2 + $0xa8] sm:$0xff]
    %v47 = vld [vmem:[#allocation2 + $0xb0] sm:$0xff]
    %v48 = vld [vmem:[#allocation2 + $0xb8] sm:$0xff]
    %v49 = vld [vmem:[#allocation2 + $0xc0] sm:$0xff]
    %v50 = vld [vmem:[#allocation2 + $0xc8] sm:$0xff]
    %v51 = vld [vmem:[#allocation2 + $0xd0] sm:$0xff]
    %v52 = vld [vmem:[#allocation2 + $0xd8] sm:$0xff]
    %v53 = vld [vmem:[#allocation2 + $0xe0] sm:$0xff]
    %v54 = vld [vmem:[#allocation2 + $0xe8] sm:$0xff]
    %v55 = vld [vmem:[#allocation2 + $0xf0] sm:$0xff]
    %v56 = vld [vmem:[#allocation2 + $0xf8] sm:$0xff]
    %v57 = vld [vmem:[#allocation2 + $0x100] sm:$0xff]
    %v58 = vld [vmem:[#allocation2 + $0x108] sm:$0xff]
    %v59 = vld [vmem:[#allocation2 + $0x110] sm:$0xff]
    %v60 = vld [vmem:[#allocation2 + $0x118] sm:$0xff]
    %v61 = vld [vmem:[#allocation2 + $0x120] sm:$0xff]
    %v62 = vld [vmem:[#allocation2 + $0x128] sm:$0xff]
    %v63 = vld [vmem:[#allocation2 + $0x130] sm:$0xff]
    %v64 = vld [vmem:[#allocation2 + $0x138] sm:$0xff]
    %v65 = vld [vmem:[#allocation2 + $0x140] sm:$0xff]
    %v66 = vld [vmem:[#allocation2 + $0x148] sm:$0xff]
    %v67 = vld [vmem:[#allocation2 + $0x150] sm:$0xff]
    %v68 = vld [vmem:[#allocation2 + $0x158] sm:$0xff]
    %v69 = vld [vmem:[#allocation2 + $0x160] sm:$0xff]
    %v70 = vld [vmem:[#allocation2 + $0x168] sm:$0xff]
    %v71 = vld [vmem:[#allocation2 + $0x170] sm:$0xff]
    %v72 = vld [vmem:[#allocation2 + $0x178] sm:$0xff]
    %v73 = vld [vmem:[#allocation2 + $0x180] sm:$0xff]
    %v74 = vld [vmem:[#allocation2 + $0x188] sm:$0xff]
    %v75 = vld [vmem:[#allocation2 + $0x190] sm:$0xff]
    %v76 = vld [vmem:[#allocation2 + $0x198] sm:$0xff]
    %v77 = vld [vmem:[#allocation2 + $0x1a0] sm:$0xff]
    %v78 = vld [vmem:[#allocation2 + $0x1a8] sm:$0xff]
    %v79 = vld [vmem:[#allocation2 + $0x1b0] sm:$0xff]
    %v80 = vld [vmem:[#allocation2 + $0x1b8] sm:$0xff]
    %v81 = vld [vmem:[#allocation2 + $0x1c0] sm:$0xff]
    %v82 = vld [vmem:[#allocation2 + $0x1c8] sm:$0xff]
    %v83 = vld [vmem:[#allocation2 + $0x1d0] sm:$0xff]
    %v84 = vld [vmem:[#allocation2 + $0x1d8] sm:$0xff]
    %v85 = vld [vmem:[#allocation2 + $0x1e0] sm:$0xff]
    %v86 = vld [vmem:[#allocation2 + $0x1e8] sm:$0xff]
    %v87 = vld [vmem:[#allocation2 + $0x1f0] sm:$0xff]
    %v88 = vld [vmem:[#allocation2 + $0x1f8] sm:$0xff]
    %v89 = vld [vmem:[%s1] sm:$0xff]
    %v90 = vld [vmem:[%s1 + $0x8] sm:$0xff]
    %v91 = vld [vmem:[%s1 + $0x10] sm:$0xff]
    %v92 = vld [vmem:[%s1 + $0x18] sm:$0xff]
    %v93 = vld [vmem:[%s1 + $0x20] sm:$0xff]
    %v94 = vld [vmem:[%s1 + $0x28] sm:$0xff]
    %v95 = vld [vmem:[%s1 + $0x30] sm:$0xff]
    %v96 = vld [vmem:[%s1 + $0x38] sm:$0xff]
    %v97 = vld [vmem:[%s1 + $0x40] sm:$0xff]
    %v98 = vld [vmem:[%s1 + $0x48] sm:$0xff]
    %v99 = vld [vmem:[%s1 + $0x50] sm:$0xff]
    %v100 = vld [vmem:[%s1 + $0x58] sm:$0xff]
    %v101 = vld [vmem:[%s1 + $0x60] sm:$0xff]
    %v102 = vld [vmem:[%s1 + $0x68] sm:$0xff]
    %v103 = vld [vmem:[%s1 + $0x70] sm:$0xff]
    %v104 = vld [vmem:[%s1 + $0x78] sm:$0xff]
    %105 = vmatprep.subr.mxu0 0.0
    %106 = vmatpush1.msra.mxu0 %v89
    %107 = vmatprep.subr.mxu0 0.0
    %108 = vmatpush1.msra.mxu0 %v90
    %109 = vmatprep.subr.mxu0 0.0
    %110 = vmatpush1.msra.mxu0 %v91
    %111 = vmatprep.subr.mxu0 0.0
    %112 = vmatpush1.msra.mxu0 %v92
    %113 = vmatprep.subr.mxu0 0.0
    %114 = vmatpush1.msra.mxu0 %v93
    %115 = vmatprep.subr.mxu0 0.0
    %116 = vmatpush1.msra.mxu0 %v94
    %117 = vmatprep.subr.mxu0 0.0
    %118 = vmatpush1.msra.mxu0 %v95
    %119 = vmatprep.subr.mxu0 0.0
    %120 = vmatpush1.msra.mxu0 %v96
    %121 = vmatprep.subr.mxu0 0.0
    %122 = vmatpush1.msra.mxu0 %v97
    %123 = vmatprep.subr.mxu0 0.0
    %124 = vmatpush1.msra.mxu0 %v98
    %125 = vmatprep.subr.mxu0 0.0
    %126 = vmatpush1.msra.mxu0 %v99
    %127 = vmatprep.subr.mxu0 0.0
    %128 = vmatpush1.msra.mxu0 %v100
    %129 = vmatprep.subr.mxu0 0.0
    %130 = vmatpush1.msra.mxu0 %v101
    %131 = vmatprep.subr.mxu0 0.0
    %132 = vmatpush1.msra.mxu0 %v102
    %133 = vmatprep.subr.mxu0 0.0
    %134 = vmatpush1.msra.mxu0 %v103
    %135 = vmatprep.subr.mxu0 0.0
    %136 = vmatpush1.msra.mxu0 %v104
    %137 = vmatprep.subr.mxu0 0.0
    %138 = vmatpush1.msra.mxu0 0.0
    %139 = vmatprep.subr.mxu0 0.0
    %140 = vmatpush1.msra.mxu0 0.0
    %141 = vmatprep.subr.mxu0 0.0
    %142 = vmatpush1.msra.mxu0 0.0
    %143 = vmatprep.subr.mxu0 0.0
    %144 = vmatpush1.msra.mxu0 0.0
    %145 = vmatprep.subr.mxu0 0.0
    %146 = vmatpush1.msra.mxu0 0.0
    %147 = vmatprep.subr.mxu0 0.0
    %148 = vmatpush1.msra.mxu0 0.0
    %149 = vmatprep.subr.mxu0 0.0
    %150 = vmatpush1.msra.mxu0 0.0
    %151 = vmatprep.subr.mxu0 0.0
    %152 = vmatpush1.msra.mxu0 0.0
    %153 = vmatprep.subr.mxu0 0.0
    %154 = vmatpush1.msra.mxu0 0.0
    %155 = vmatprep.subr.mxu0 0.0
    %156 = vmatpush1.msra.mxu0 0.0
    %157 = vmatprep.subr.mxu0 0.0
    %158 = vmatpush1.msra.mxu0 0.0
    %159 = vmatprep.subr.mxu0 0.0
    %160 = vmatpush1.msra.mxu0 0.0
    %161 = vmatprep.subr.mxu0 0.0
    %162 = vmatpush1.msra.mxu0 0.0
    %163 = vmatprep.subr.mxu0 0.0
    %164 = vmatpush1.msra.mxu0 0.0
    %165 = vmatprep.subr.mxu0 0.0
    %166 = vmatpush1.msra.mxu0 0.0
    %167 = vmatprep.subr.mxu0 0.0
    %168 = vmatpush1.msra.mxu0 0.0
    %169 = vmatprep.mubr.f32.mxu0 0.0
    %170 = vmatmul.mubr.f32.gmra.mrb[0].mxu0 %v25
    %v171 = vpop.f32.mrb[0].mxu0
    %v172 = vadd.f32 0.0, %v171
    %v173 = vpop.f32.mrb[0].mxu0
    %174 = vmatprep.mubr.f32.mxu0 0.0
    %175 = vmatmul.mubr.f32.gmra.mrb[0].mxu0 %v26
    %v176 = vpop.f32.mrb[0].mxu0
    %v177 = vadd.f32 0.0, %v176
    %v178 = vpop.f32.mrb[0].mxu0
    %179 = vmatprep.mubr.f32.mxu0 0.0
    %180 = vmatmul.mubr.f32.gmra.mrb[0].mxu0 %v27
    %v181 = vpop.f32.mrb[0].mxu0
    %v182 = vadd.f32 0.0, %v181
    %v183 = vpop.f32.mrb[0].mxu0
    %184 = vmatprep.mubr.f32.mxu0 0.0
    %185 = vmatmul.mubr.f32.gmra.mrb[0].mxu0 %v28
    %v186 = vpop.f32.mrb[0].mxu0
    %v187 = vadd.f32 0.0, %v186
    %v188 = vpop.f32.mrb[0].mxu0
    %189 = vmatprep.mubr.f32.mxu0 0.0
    %190 = vmatmul.mubr.f32.gmra.mrb[0].mxu0 %v29
    %v191 = vpop.f32.mrb[0].mxu0
    %v192 = vadd.f32 0.0, %v191
    %v193 = vpop.f32.mrb[0].mxu0
    %194 = vmatprep.mubr.f32.mxu0 0.0
    %195 = vmatmul.mubr.f32.gmra.mrb[0].mxu0 %v30
    %v196 = vpop.f32.mrb[0].mxu0
    %v197 = vadd.f32 0.0, %v196
    %v198 = vpop.f32.mrb[0].mxu0
    %199 = vmatprep.mubr.f32.mxu0 0.0
    %200 = vmatmul.mubr.f32.gmra.mrb[0].mxu0 %v31
    %v201 = vpop.f32.mrb[0].mxu0
    %v202 = vadd.f32 0.0, %v201
    %v203 = vpop.f32.mrb[0].mxu0
    %204 = vmatprep.mubr.f32.mxu0 0.0
    %205 = vmatmul.mubr.f32.gmra.mrb[0].mxu0 %v32
    %v206 = vpop.f32.mrb[0].mxu0
    %v207 = vadd.f32 0.0, %v206
    %v208 = vpop.f32.mrb[0].mxu0
    %209 = vmatprep.mubr.f32.mxu0 0.0
    %210 = vmatmul.mubr.f32.gmra.mrb[0].mxu0 %v33
    %v211 = vpop.f32.mrb[0].mxu0
    %v212 = vadd.f32 0.0, %v211
    %v213 = vpop.f32.mrb[0].mxu0
    %214 = vmatprep.mubr.f32.mxu0 0.0
    %215 = vmatmul.mubr.f32.gmra.mrb[0].mxu0 %v34
    %v216 = vpop.f32.mrb[0].mxu0
    %v217 = vadd.f32 0.0, %v216
    %v218 = vpop.f32.mrb[0].mxu0
    %219 = vmatprep.mubr.f32.mxu0 0.0
    %220 = vmatmul.mubr.f32.gmra.mrb[0].mxu0 %v35
    %v221 = vpop.f32.mrb[0].mxu0
    %v222 = vadd.f32 0.0, %v221
    %v223 = vpop.f32.mrb[0].mxu0
    %224 = vmatprep.mubr.f32.mxu0 0.0
    %225 = vmatmul.mubr.f32.gmra.mrb[0].mxu0 %v36
    %v226 = vpop.f32.mrb[0].mxu0
    %v227 = vadd.f32 0.0, %v226
    %v228 = vpop.f32.mrb[0].mxu0
    %229 = vmatprep.mubr.f32.mxu0 0.0
    %230 = vmatmul.mubr.f32.gmra.mrb[0].mxu0 %v37
    %v231 = vpop.f32.mrb[0].mxu0
    %v232 = vadd.f32 0.0, %v231
    %v233 = vpop.f32.mrb[0].mxu0
    %234 = vmatprep.mubr.f32.mxu0 0.0
    %235 = vmatmul.mubr.f32.gmra.mrb[0].mxu0 %v38
    %v236 = vpop.f32.mrb[0].mxu0
    %v237 = vadd.f32 0.0, %v236
    %v238 = vpop.f32.mrb[0].mxu0
    %239 = vmatprep.mubr.f32.mxu0 0.0
    %240 = vmatmul.mubr.f32.gmra.mrb[0].mxu0 %v39
    %v241 = vpop.f32.mrb[0].mxu0
    %v242 = vadd.f32 0.0, %v241
    %v243 = vpop.f32.mrb[0].mxu0
    %244 = vmatprep.mubr.f32.mxu0 0.0
    %245 = vmatmul.mubr.f32.gmra.mrb[0].mxu0 %v40
    %v246 = vpop.f32.mrb[0].mxu0
    %v247 = vadd.f32 0.0, %v246
    %v248 = vpop.f32.mrb[0].mxu0
    %249 = vmatprep.mubr.f32.mxu0 0.0
    %250 = vmatmul.mubr.f32.gmra.mrb[0].mxu0 %v41
    %v251 = vpop.f32.mrb[0].mxu0
    %v252 = vadd.f32 0.0, %v251
    %v253 = vpop.f32.mrb[0].mxu0
    %254 = vmatprep.mubr.f32.mxu0 0.0
    %255 = vmatmul.mubr.f32.gmra.mrb[0].mxu0 %v42
    %v256 = vpop.f32.mrb[0].mxu0
    %v257 = vadd.f32 0.0, %v256
    %v258 = vpop.f32.mrb[0].mxu0
    %259 = vmatprep.mubr.f32.mxu0 0.0
    %260 = vmatmul.mubr.f32.gmra.mrb[0].mxu0 %v43
    %v261 = vpop.f32.mrb[0].mxu0
    %v262 = vadd.f32 0.0, %v261
    %v263 = vpop.f32.mrb[0].mxu0
    %264 = vmatprep.mubr.f32.mxu0 0.0
    %265 = vmatmul.mubr.f32.gmra.mrb[0].mxu0 %v44
    %v266 = vpop.f32.mrb[0].mxu0
    %v267 = vadd.f32 0.0, %v266
    %v268 = vpop.f32.mrb[0].mxu0
    %269 = vmatprep.mubr.f32.mxu0 0.0
    %270 = vmatmul.mubr.f32.gmra.mrb[0].mxu0 %v45
    %v271 = vpop.f32.mrb[0].mxu0
    %v272 = vadd.f32 0.0, %v271
    %v273 = vpop.f32.mrb[0].mxu0
    %274 = vmatprep.mubr.f32.mxu0 0.0
    %275 = vmatmul.mubr.f32.gmra.mrb[0].mxu0 %v46
    %v276 = vpop.f32.mrb[0].mxu0
    %v277 = vadd.f32 0.0, %v276
    %v278 = vpop.f32.mrb[0].mxu0
    %279 = vmatprep.mubr.f32.mxu0 0.0
    %280 = vmatmul.mubr.f32.gmra.mrb[0].mxu0 %v47
    %v281 = vpop.f32.mrb[0].mxu0
    %v282 = vadd.f32 0.0, %v281
    %v283 = vpop.f32.mrb[0].mxu0
    %284 = vmatprep.mubr.f32.mxu0 0.0
    %285 = vmatmul.mubr.f32.gmra.mrb[0].mxu0 %v48
    %v286 = vpop.f32.mrb[0].mxu0
    %v287 = vadd.f32 0.0, %v286
    %v288 = vpop.f32.mrb[0].mxu0
    %289 = vmatprep.mubr.f32.mxu0 0.0
    %290 = vmatmul.mubr.f32.gmra.mrb[0].mxu0 %v49
    %v291 = vpop.f32.mrb[0].mxu0
    %v292 = vadd.f32 0.0, %v291
    %v293 = vpop.f32.mrb[0].mxu0
    %294 = vmatprep.mubr.f32.mxu0 0.0
    %295 = vmatmul.mubr.f32.gmra.mrb[0].mxu0 %v50
    %v296 = vpop.f32.mrb[0].mxu0
    %v297 = vadd.f32 0.0, %v296
    %v298 = vpop.f32.mrb[0].mxu0
    %299 = vmatprep.mubr.f32.mxu0 0.0
    %300 = vmatmul.mubr.f32.gmra.mrb[0].mxu0 %v51
    %v301 = vpop.f32.mrb[0].mxu0
    %v302 = vadd.f32 0.0, %v301
    %v303 = vpop.f32.mrb[0].mxu0
    %304 = vmatprep.mubr.f32.mxu0 0.0
    %305 = vmatmul.mubr.f32.gmra.mrb[0].mxu0 %v52
    %v306 = vpop.f32.mrb[0].mxu0
    %v307 = vadd.f32 0.0, %v306
    %v308 = vpop.f32.mrb[0].mxu0
    %309 = vmatprep.mubr.f32.mxu0 0.0
    %310 = vmatmul.mubr.f32.gmra.mrb[0].mxu0 %v53
    %v311 = vpop.f32.mrb[0].mxu0
    %v312 = vadd.f32 0.0, %v311
    %v313 = vpop.f32.mrb[0].mxu0
    %314 = vmatprep.mubr.f32.mxu0 0.0
    %315 = vmatmul.mubr.f32.gmra.mrb[0].mxu0 %v54
    %v316 = vpop.f32.mrb[0].mxu0
    %v317 = vadd.f32 0.0, %v316
    %v318 = vpop.f32.mrb[0].mxu0
    %319 = vmatprep.mubr.f32.mxu0 0.0
    %320 = vmatmul.mubr.f32.gmra.mrb[0].mxu0 %v55
    %v321 = vpop.f32.mrb[0].mxu0
    %v322 = vadd.f32 0.0, %v321
    %v323 = vpop.f32.mrb[0].mxu0
    %324 = vmatprep.mubr.f32.mxu0 0.0
    %325 = vmatmul.mubr.f32.gmra.mrb[0].mxu0 %v56
    %v326 = vpop.f32.mrb[0].mxu0
    %v327 = vadd.f32 0.0, %v326
    %v328 = vpop.f32.mrb[0].mxu0
    %329 = vmatprep.mubr.f32.mxu0 0.0
    %330 = vmatmul.mubr.f32.gmra.mrb[0].mxu0 %v57
    %v331 = vpop.f32.mrb[0].mxu0
    %v332 = vadd.f32 0.0, %v331
    %v333 = vpop.f32.mrb[0].mxu0
    %334 = vmatprep.mubr.f32.mxu0 0.0
    %335 = vmatmul.mubr.f32.gmra.mrb[0].mxu0 %v58
    %v336 = vpop.f32.mrb[0].mxu0
    %v337 = vadd.f32 0.0, %v336
    %v338 = vpop.f32.mrb[0].mxu0
    %339 = vmatprep.mubr.f32.mxu0 0.0
    %340 = vmatmul.mubr.f32.gmra.mrb[0].mxu0 %v59
    %v341 = vpop.f32.mrb[0].mxu0
    %v342 = vadd.f32 0.0, %v341
    %v343 = vpop.f32.mrb[0].mxu0
    %344 = vmatprep.mubr.f32.mxu0 0.0
    %345 = vmatmul.mubr.f32.gmra.mrb[0].mxu0 %v60
    %v346 = vpop.f32.mrb[0].mxu0
    %v347 = vadd.f32 0.0, %v346
    %v348 = vpop.f32.mrb[0].mxu0
    %349 = vmatprep.mubr.f32.mxu0 0.0
    %350 = vmatmul.mubr.f32.gmra.mrb[0].mxu0 %v61
    %v351 = vpop.f32.mrb[0].mxu0
    %v352 = vadd.f32 0.0, %v351
    %v353 = vpop.f32.mrb[0].mxu0
    %354 = vmatprep.mubr.f32.mxu0 0.0
    %355 = vmatmul.mubr.f32.gmra.mrb[0].mxu0 %v62
    %v356 = vpop.f32.mrb[0].mxu0
    %v357 = vadd.f32 0.0, %v356
    %v358 = vpop.f32.mrb[0].mxu0
    %359 = vmatprep.mubr.f32.mxu0 0.0
    %360 = vmatmul.mubr.f32.gmra.mrb[0].mxu0 %v63
    %v361 = vpop.f32.mrb[0].mxu0
    %v362 = vadd.f32 0.0, %v361
    %v363 = vpop.f32.mrb[0].mxu0
    %364 = vmatprep.mubr.f32.mxu0 0.0
    %365 = vmatmul.mubr.f32.gmra.mrb[0].mxu0 %v64
    %v366 = vpop.f32.mrb[0].mxu0
    %v367 = vadd.f32 0.0, %v366
    %v368 = vpop.f32.mrb[0].mxu0
    %369 = vmatprep.mubr.f32.mxu0 0.0
    %370 = vmatmul.mubr.f32.gmra.mrb[0].mxu0 %v65
    %v371 = vpop.f32.mrb[0].mxu0
    %v372 = vadd.f32 0.0, %v371
    %v373 = vpop.f32.mrb[0].mxu0
    %374 = vmatprep.mubr.f32.mxu0 0.0
    %375 = vmatmul.mubr.f32.gmra.mrb[0].mxu0 %v66
    %v376 = vpop.f32.mrb[0].mxu0
    %v377 = vadd.f32 0.0, %v376
    %v378 = vpop.f32.mrb[0].mxu0
    %379 = vmatprep.mubr.f32.mxu0 0.0
    %380 = vmatmul.mubr.f32.gmra.mrb[0].mxu0 %v67
    %v381 = vpop.f32.mrb[0].mxu0
    %v382 = vadd.f32 0.0, %v381
    %v383 = vpop.f32.mrb[0].mxu0
    %384 = vmatprep.mubr.f32.mxu0 0.0
    %385 = vmatmul.mubr.f32.gmra.mrb[0].mxu0 %v68
    %v386 = vpop.f32.mrb[0].mxu0
    %v387 = vadd.f32 0.0, %v386
    %v388 = vpop.f32.mrb[0].mxu0
    %389 = vmatprep.mubr.f32.mxu0 0.0
    %390 = vmatmul.mubr.f32.gmra.mrb[0].mxu0 %v69
    %v391 = vpop.f32.mrb[0].mxu0
    %v392 = vadd.f32 0.0, %v391
    %v393 = vpop.f32.mrb[0].mxu0
    %394 = vmatprep.mubr.f32.mxu0 0.0
    %395 = vmatmul.mubr.f32.gmra.mrb[0].mxu0 %v70
    %v396 = vpop.f32.mrb[0].mxu0
    %v397 = vadd.f32 0.0, %v396
    %v398 = vpop.f32.mrb[0].mxu0
    %399 = vmatprep.mubr.f32.mxu0 0.0
    %400 = vmatmul.mubr.f32.gmra.mrb[0].mxu0 %v71
    %v401 = vpop.f32.mrb[0].mxu0
    %v402 = vadd.f32 0.0, %v401
    %v403 = vpop.f32.mrb[0].mxu0
    %404 = vmatprep.mubr.f32.mxu0 0.0
    %405 = vmatmul.mubr.f32.gmra.mrb[0].mxu0 %v72
    %v406 = vpop.f32.mrb[0].mxu0
    %v407 = vadd.f32 0.0, %v406
    %v408 = vpop.f32.mrb[0].mxu0
    %409 = vmatprep.mubr.f32.mxu0 0.0
    %410 = vmatmul.mubr.f32.gmra.mrb[0].mxu0 %v73
    %v411 = vpop.f32.mrb[0].mxu0
    %v412 = vadd.f32 0.0, %v411
    %v413 = vpop.f32.mrb[0].mxu0
    %414 = vmatprep.mubr.f32.mxu0 0.0
    %415 = vmatmul.mubr.f32.gmra.mrb[0].mxu0 %v74
    %v416 = vpop.f32.mrb[0].mxu0
    %v417 = vadd.f32 0.0, %v416
    %v418 = vpop.f32.mrb[0].mxu0
    %419 = vmatprep.mubr.f32.mxu0 0.0
    %420 = vmatmul.mubr.f32.gmra.mrb[0].mxu0 %v75
    %v421 = vpop.f32.mrb[0].mxu0
    %v422 = vadd.f32 0.0, %v421
    %v423 = vpop.f32.mrb[0].mxu0
    %424 = vmatprep.mubr.f32.mxu0 0.0
    %425 = vmatmul.mubr.f32.gmra.mrb[0].mxu0 %v76
    %v426 = vpop.f32.mrb[0].mxu0
    %v427 = vadd.f32 0.0, %v426
    %v428 = vpop.f32.mrb[0].mxu0
    %429 = vmatprep.mubr.f32.mxu0 0.0
    %430 = vmatmul.mubr.f32.gmra.mrb[0].mxu0 %v77
    %v431 = vpop.f32.mrb[0].mxu0
    %v432 = vadd.f32 0.0, %v431
    %v433 = vpop.f32.mrb[0].mxu0
    %434 = vmatprep.mubr.f32.mxu0 0.0
    %435 = vmatmul.mubr.f32.gmra.mrb[0].mxu0 %v78
    %v436 = vpop.f32.mrb[0].mxu0
    %v437 = vadd.f32 0.0, %v436
    %v438 = vpop.f32.mrb[0].mxu0
    %439 = vmatprep.mubr.f32.mxu0 0.0
    %440 = vmatmul.mubr.f32.gmra.mrb[0].mxu0 %v79
    %v441 = vpop.f32.mrb[0].mxu0
    %v442 = vadd.f32 0.0, %v441
    %v443 = vpop.f32.mrb[0].mxu0
    %444 = vmatprep.mubr.f32.mxu0 0.0
    %445 = vmatmul.mubr.f32.gmra.mrb[0].mxu0 %v80
    %v446 = vpop.f32.mrb[0].mxu0
    %v447 = vadd.f32 0.0, %v446
    %v448 = vpop.f32.mrb[0].mxu0
    %449 = vmatprep.mubr.f32.mxu0 0.0
    %450 = vmatmul.mubr.f32.gmra.mrb[0].mxu0 %v81
    %v451 = vpop.f32.mrb[0].mxu0
    %v452 = vadd.f32 0.0, %v451
    %v453 = vpop.f32.mrb[0].mxu0
    %454 = vmatprep.mubr.f32.mxu0 0.0
    %455 = vmatmul.mubr.f32.gmra.mrb[0].mxu0 %v82
    %v456 = vpop.f32.mrb[0].mxu0
    %v457 = vadd.f32 0.0, %v456
    %v458 = vpop.f32.mrb[0].mxu0
    %459 = vmatprep.mubr.f32.mxu0 0.0
    %460 = vmatmul.mubr.f32.gmra.mrb[0].mxu0 %v83
    %v461 = vpop.f32.mrb[0].mxu0
    %v462 = vadd.f32 0.0, %v461
    %v463 = vpop.f32.mrb[0].mxu0
    %464 = vmatprep.mubr.f32.mxu0 0.0
    %465 = vmatmul.mubr.f32.gmra.mrb[0].mxu0 %v84
    %v466 = vpop.f32.mrb[0].mxu0
    %v467 = vadd.f32 0.0, %v466
    %v468 = vpop.f32.mrb[0].mxu0
    %469 = vmatprep.mubr.f32.mxu0 0.0
    %470 = vmatmul.mubr.f32.gmra.mrb[0].mxu0 %v85
    %v471 = vpop.f32.mrb[0].mxu0
    %v472 = vadd.f32 0.0, %v471
    %v473 = vpop.f32.mrb[0].mxu0
    %474 = vmatprep.mubr.f32.mxu0 0.0
    %475 = vmatmul.mubr.f32.gmra.mrb[0].mxu0 %v86
    %v476 = vpop.f32.mrb[0].mxu0
    %v477 = vadd.f32 0.0, %v476
    %v478 = vpop.f32.mrb[0].mxu0
    %479 = vmatprep.mubr.f32.mxu0 0.0
    %480 = vmatmul.mubr.f32.gmra.mrb[0].mxu0 %v87
    %v481 = vpop.f32.mrb[0].mxu0
    %v482 = vadd.f32 0.0, %v481
    %v483 = vpop.f32.mrb[0].mxu0
    %484 = vmatprep.mubr.f32.mxu0 0.0
    %485 = vmatmul.mubr.f32.gmra.mrb[0].mxu0 %v88
    %v486 = vpop.f32.mrb[0].mxu0
    %v487 = vadd.f32 0.0, %v486
    %v488 = vpop.f32.mrb[0].mxu0
    %489 = vdwg.mxu0
    %490 = vst [vmem:[%s2] sm:$0xff] %v172
    %491 = vst [vmem:[%s2 + $0x8] sm:$0xff] %v177
    %492 = vst [vmem:[%s2 + $0x10] sm:$0xff] %v182
    %493 = vst [vmem:[%s2 + $0x18] sm:$0xff] %v187
    %494 = vst [vmem:[%s2 + $0x20] sm:$0xff] %v192
    %495 = vst [vmem:[%s2 + $0x28] sm:$0xff] %v197
    %496 = vst [vmem:[%s2 + $0x30] sm:$0xff] %v202
    %497 = vst [vmem:[%s2 + $0x38] sm:$0xff] %v207
    %498 = vst [vmem:[%s2 + $0x40] sm:$0xff] %v212
    %499 = vst [vmem:[%s2 + $0x48] sm:$0xff] %v217
    %500 = vst [vmem:[%s2 + $0x50] sm:$0xff] %v222
    %501 = vst [vmem:[%s2 + $0x58] sm:$0xff] %v227
    %502 = vst [vmem:[%s2 + $0x60] sm:$0xff] %v232
    %503 = vst [vmem:[%s2 + $0x68] sm:$0xff] %v237
    %504 = vst [vmem:[%s2 + $0x70] sm:$0xff] %v242
    %505 = vst [vmem:[%s2 + $0x78] sm:$0xff] %v247
    %506 = vst [vmem:[%s2 + $0x80] sm:$0xff] %v252
    %507 = vst [vmem:[%s2 + $0x88] sm:$0xff] %v257
    %508 = vst [vmem:[%s2 + $0x90] sm:$0xff] %v262
    %509 = vst [vmem:[%s2 + $0x98] sm:$0xff] %v267
    %510 = vst [vmem:[%s2 + $0xa0] sm:$0xff] %v272
    %511 = vst [vmem:[%s2 + $0xa8] sm:$0xff] %v277
    %512 = vst [vmem:[%s2 + $0xb0] sm:$0xff] %v282
    %513 = vst [vmem:[%s2 + $0xb8] sm:$0xff] %v287
    %514 = vst [vmem:[%s2 + $0xc0] sm:$0xff] %v292
    %515 = vst [vmem:[%s2 + $0xc8] sm:$0xff] %v297
    %516 = vst [vmem:[%s2 + $0xd0] sm:$0xff] %v302
    %517 = vst [vmem:[%s2 + $0xd8] sm:$0xff] %v307
    %518 = vst [vmem:[%s2 + $0xe0] sm:$0xff] %v312
    %519 = vst [vmem:[%s2 + $0xe8] sm:$0xff] %v317
    %520 = vst [vmem:[%s2 + $0xf0] sm:$0xff] %v322
    %521 = vst [vmem:[%s2 + $0xf8] sm:$0xff] %v327
    %522 = vst [vmem:[%s2 + $0x100] sm:$0xff] %v332
    %523 = vst [vmem:[%s2 + $0x108] sm:$0xff] %v337
    %524 = vst [vmem:[%s2 + $0x110] sm:$0xff] %v342
    %525 = vst [vmem:[%s2 + $0x118] sm:$0xff] %v347
    %526 = vst [vmem:[%s2 + $0x120] sm:$0xff] %v352
    %527 = vst [vmem:[%s2 + $0x128] sm:$0xff] %v357
    %528 = vst [vmem:[%s2 + $0x130] sm:$0xff] %v362
    %529 = vst [vmem:[%s2 + $0x138] sm:$0xff] %v367
    %530 = vst [vmem:[%s2 + $0x140] sm:$0xff] %v372
    %531 = vst [vmem:[%s2 + $0x148] sm:$0xff] %v377
    %532 = vst [vmem:[%s2 + $0x150] sm:$0xff] %v382
    %533 = vst [vmem:[%s2 + $0x158] sm:$0xff] %v387
    %534 = vst [vmem:[%s2 + $0x160] sm:$0xff] %v392
    %535 = vst [vmem:[%s2 + $0x168] sm:$0xff] %v397
    %536 = vst [vmem:[%s2 + $0x170] sm:$0xff] %v402
    %537 = vst [vmem:[%s2 + $0x178] sm:$0xff] %v407
    %538 = vst [vmem:[%s2 + $0x180] sm:$0xff] %v412
    %539 = vst [vmem:[%s2 + $0x188] sm:$0xff] %v417
    %540 = vst [vmem:[%s2 + $0x190] sm:$0xff] %v422
    %541 = vst [vmem:[%s2 + $0x198] sm:$0xff] %v427
    %542 = vst [vmem:[%s2 + $0x1a0] sm:$0xff] %v432
    %543 = vst [vmem:[%s2 + $0x1a8] sm:$0xff] %v437
    %544 = vst [vmem:[%s2 + $0x1b0] sm:$0xff] %v442
    %545 = vst [vmem:[%s2 + $0x1b8] sm:$0xff] %v447
    %546 = vst [vmem:[%s2 + $0x1c0] sm:$0xff] %v452
    %547 = vst [vmem:[%s2 + $0x1c8] sm:$0xff] %v457
    %548 = vst [vmem:[%s2 + $0x1d0] sm:$0xff] %v462
    %549 = vst [vmem:[%s2 + $0x1d8] sm:$0xff] %v467
    %550 = vst [vmem:[%s2 + $0x1e0] sm:$0xff] %v472
    %551 = vst [vmem:[%s2 + $0x1e8] sm:$0xff] %v477
    %552 = vst [vmem:[%s2 + $0x1f0] sm:$0xff] %v482
    %553 = vst [vmem:[%s2 + $0x1f8] sm:$0xff] %v487
    // Predicated region
    $region14: #{resblock2_apply.6} parent=1 // pred_check
      _
    $region15: #{resblock2_apply.6} parent=1 // pred_check_branch
      %555 = sbr.rel (0) target = $region17
    $region16: #{resblock2_apply.6} parent=1 // pred_region
      _
    $region17: #{resblock2_apply.6} parent=1 // pred_fallthru
      _
    // Predicated region
    $region18: #{resblock2_apply.6} parent=1 // pred_check
      _
    $region19: #{resblock2_apply.6} parent=1 // pred_check_branch
      %557 = sbr.rel (0) target = $region21
    $region20: #{resblock2_apply.6} parent=1 // pred_region
      _
    $region21: #{resblock2_apply.6} parent=1 // pred_fallthru
      _
    %558 = vsyncpa [#allocation3], 1

// kernel: resblock2_apply.8
$region0: #{resblock2_apply.8}
  #allocation0 [shape = 'u32[]', space=smem, size = 0x4, offset = 0x4, fixed_abs, tag = 'smem constant byte address 0x4 - core index']
  #allocation1 [shape = 'u32[144,128]{1,0:T(1,128)}', space=vmem, size = 0x12000, scoped, tag = 'internal scratch']
  %s0 = inlined_call_operand.vmem [shape: f32[512,384], index: 0, kind: input, shape index: {}]
  %s1 = inlined_call_operand.vmem [shape: f32[384,128], index: 1, kind: input, shape index: {}]
  %s2 = inlined_call_operand.vmem [shape: f32[512,128], index: 2, kind: output, shape index: {}]
  %s3 = sld [smem:[#allocation0]]
  $region18: #{resblock2_apply.8} parent=0
    _
  %s5 = ssub.s32 1, %s3
  %s6 = scalar_select 0, %s5, %s3
  // Predicated region
  $region2: #{resblock2_apply.8} parent=0 // pred_check
    _
  $region3: #{resblock2_apply.8} parent=0 // pred_check_branch
    %8 = sbr.rel (0) target = $region5
  $region4: #{resblock2_apply.8} parent=0 // pred_region
    _
  $region5: #{resblock2_apply.8} parent=0 // pred_fallthru
    _
  // Predicated region
  $region6: #{resblock2_apply.8} parent=0 // pred_check
    _
  $region7: #{resblock2_apply.8} parent=0 // pred_check_branch
    %10 = sbr.rel (0) target = $region9
  $region8: #{resblock2_apply.8} parent=0 // pred_region
    _
  $region9: #{resblock2_apply.8} parent=0 // pred_fallthru
    _
  %v11 = vld [vmem:[%s0] sm:$0xff]
  %v12 = vld [vmem:[%s0 + $0x8] sm:$0xff]
  %v13 = vld [vmem:[%s0 + $0x10] sm:$0xff]
  %v14 = vld [vmem:[%s0 + $0x18] sm:$0xff]
  %v15 = vld [vmem:[%s0 + $0x20] sm:$0xff]
  %v16 = vld [vmem:[%s0 + $0x28] sm:$0xff]
  %v17 = vld [vmem:[%s0 + $0x30] sm:$0xff]
  %v18 = vld [vmem:[%s0 + $0x38] sm:$0xff]
  %v19 = vld [vmem:[%s0 + $0x40] sm:$0xff]
  %v20 = vld [vmem:[%s0 + $0x48] sm:$0xff]
  %v21 = vld [vmem:[%s0 + $0x50] sm:$0xff]
  %v22 = vld [vmem:[%s0 + $0x58] sm:$0xff]
  %v23 = vld [vmem:[%s0 + $0x60] sm:$0xff]
  %v24 = vld [vmem:[%s0 + $0x68] sm:$0xff]
  %v25 = vld [vmem:[%s0 + $0x70] sm:$0xff]
  %v26 = vld [vmem:[%s0 + $0x78] sm:$0xff]
  %v27 = vld [vmem:[%s0 + $0x80] sm:$0xff]
  %v28 = vld [vmem:[%s0 + $0x88] sm:$0xff]
  %v29 = vld [vmem:[%s0 + $0x90] sm:$0xff]
  %v30 = vld [vmem:[%s0 + $0x98] sm:$0xff]
  %v31 = vld [vmem:[%s0 + $0xa0] sm:$0xff]
  %v32 = vld [vmem:[%s0 + $0xa8] sm:$0xff]
  %v33 = vld [vmem:[%s0 + $0xb0] sm:$0xff]
  %v34 = vld [vmem:[%s0 + $0xb8] sm:$0xff]
  %v35 = vld [vmem:[%s0 + $0xc0] sm:$0xff]
  %v36 = vld [vmem:[%s0 + $0xc8] sm:$0xff]
  %v37 = vld [vmem:[%s0 + $0xd0] sm:$0xff]
  %v38 = vld [vmem:[%s0 + $0xd8] sm:$0xff]
  %v39 = vld [vmem:[%s0 + $0xe0] sm:$0xff]
  %v40 = vld [vmem:[%s0 + $0xe8] sm:$0xff]
  %v41 = vld [vmem:[%s0 + $0xf0] sm:$0xff]
  %v42 = vld [vmem:[%s0 + $0xf8] sm:$0xff]
  %v43 = vld [vmem:[%s0 + $0x100] sm:$0xff]
  %v44 = vld [vmem:[%s0 + $0x108] sm:$0xff]
  %v45 = vld [vmem:[%s0 + $0x110] sm:$0xff]
  %v46 = vld [vmem:[%s0 + $0x118] sm:$0xff]
  %v47 = vld [vmem:[%s0 + $0x120] sm:$0xff]
  %v48 = vld [vmem:[%s0 + $0x128] sm:$0xff]
  %v49 = vld [vmem:[%s0 + $0x130] sm:$0xff]
  %v50 = vld [vmem:[%s0 + $0x138] sm:$0xff]
  %v51 = vld [vmem:[%s0 + $0x140] sm:$0xff]
  %v52 = vld [vmem:[%s0 + $0x148] sm:$0xff]
  %v53 = vld [vmem:[%s0 + $0x150] sm:$0xff]
  %v54 = vld [vmem:[%s0 + $0x158] sm:$0xff]
  %v55 = vld [vmem:[%s0 + $0x160] sm:$0xff]
  %v56 = vld [vmem:[%s0 + $0x168] sm:$0xff]
  %v57 = vld [vmem:[%s0 + $0x170] sm:$0xff]
  %v58 = vld [vmem:[%s0 + $0x178] sm:$0xff]
  %v59 = vld [vmem:[%s0 + $0x180] sm:$0xff]
  %v60 = vld [vmem:[%s0 + $0x188] sm:$0xff]
  %v61 = vld [vmem:[%s0 + $0x190] sm:$0xff]
  %v62 = vld [vmem:[%s0 + $0x198] sm:$0xff]
  %v63 = vld [vmem:[%s0 + $0x1a0] sm:$0xff]
  %v64 = vld [vmem:[%s0 + $0x1a8] sm:$0xff]
  %v65 = vld [vmem:[%s0 + $0x1b0] sm:$0xff]
  %v66 = vld [vmem:[%s0 + $0x1b8] sm:$0xff]
  %v67 = vld [vmem:[%s0 + $0x1c0] sm:$0xff]
  %v68 = vld [vmem:[%s0 + $0x1c8] sm:$0xff]
  %v69 = vld [vmem:[%s0 + $0x1d0] sm:$0xff]
  %v70 = vld [vmem:[%s0 + $0x1d8] sm:$0xff]
  %v71 = vld [vmem:[%s0 + $0x1e0] sm:$0xff]
  %v72 = vld [vmem:[%s0 + $0x1e8] sm:$0xff]
  %v73 = vld [vmem:[%s0 + $0x1f0] sm:$0xff]
  %v74 = vld [vmem:[%s0 + $0x1f8] sm:$0xff]
  %v75 = vld [vmem:[%s0 + $0x200] sm:$0xff]
  %v76 = vld [vmem:[%s0 + $0x208] sm:$0xff]
  %v77 = vld [vmem:[%s0 + $0x210] sm:$0xff]
  %v78 = vld [vmem:[%s0 + $0x218] sm:$0xff]
  %v79 = vld [vmem:[%s0 + $0x220] sm:$0xff]
  %v80 = vld [vmem:[%s0 + $0x228] sm:$0xff]
  %v81 = vld [vmem:[%s0 + $0x230] sm:$0xff]
  %v82 = vld [vmem:[%s0 + $0x238] sm:$0xff]
  %v83 = vld [vmem:[%s0 + $0x240] sm:$0xff]
  %v84 = vld [vmem:[%s0 + $0x248] sm:$0xff]
  %v85 = vld [vmem:[%s0 + $0x250] sm:$0xff]
  %v86 = vld [vmem:[%s0 + $0x258] sm:$0xff]
  %v87 = vld [vmem:[%s0 + $0x260] sm:$0xff]
  %v88 = vld [vmem:[%s0 + $0x268] sm:$0xff]
  %v89 = vld [vmem:[%s0 + $0x270] sm:$0xff]
  %v90 = vld [vmem:[%s0 + $0x278] sm:$0xff]
  %v91 = vld [vmem:[%s0 + $0x280] sm:$0xff]
  %v92 = vld [vmem:[%s0 + $0x288] sm:$0xff]
  %v93 = vld [vmem:[%s0 + $0x290] sm:$0xff]
  %v94 = vld [vmem:[%s0 + $0x298] sm:$0xff]
  %v95 = vld [vmem:[%s0 + $0x2a0] sm:$0xff]
  %v96 = vld [vmem:[%s0 + $0x2a8] sm:$0xff]
  %v97 = vld [vmem:[%s0 + $0x2b0] sm:$0xff]
  %v98 = vld [vmem:[%s0 + $0x2b8] sm:$0xff]
  %v99 = vld [vmem:[%s0 + $0x2c0] sm:$0xff]
  %v100 = vld [vmem:[%s0 + $0x2c8] sm:$0xff]
  %v101 = vld [vmem:[%s0 + $0x2d0] sm:$0xff]
  %v102 = vld [vmem:[%s0 + $0x2d8] sm:$0xff]
  %v103 = vld [vmem:[%s0 + $0x2e0] sm:$0xff]
  %v104 = vld [vmem:[%s0 + $0x2e8] sm:$0xff]
  %v105 = vld [vmem:[%s0 + $0x2f0] sm:$0xff]
  %v106 = vld [vmem:[%s0 + $0x2f8] sm:$0xff]
  %v107 = vld [vmem:[%s0 + $0x300] sm:$0xff]
  %v108 = vld [vmem:[%s0 + $0x308] sm:$0xff]
  %v109 = vld [vmem:[%s0 + $0x310] sm:$0xff]
  %v110 = vld [vmem:[%s0 + $0x318] sm:$0xff]
  %v111 = vld [vmem:[%s0 + $0x320] sm:$0xff]
  %v112 = vld [vmem:[%s0 + $0x328] sm:$0xff]
  %v113 = vld [vmem:[%s0 + $0x330] sm:$0xff]
  %v114 = vld [vmem:[%s0 + $0x338] sm:$0xff]
  %v115 = vld [vmem:[%s0 + $0x340] sm:$0xff]
  %v116 = vld [vmem:[%s0 + $0x348] sm:$0xff]
  %v117 = vld [vmem:[%s0 + $0x350] sm:$0xff]
  %v118 = vld [vmem:[%s0 + $0x358] sm:$0xff]
  %v119 = vld [vmem:[%s0 + $0x360] sm:$0xff]
  %v120 = vld [vmem:[%s0 + $0x368] sm:$0xff]
  %v121 = vld [vmem:[%s0 + $0x370] sm:$0xff]
  %v122 = vld [vmem:[%s0 + $0x378] sm:$0xff]
  %v123 = vld [vmem:[%s0 + $0x380] sm:$0xff]
  %v124 = vld [vmem:[%s0 + $0x388] sm:$0xff]
  %v125 = vld [vmem:[%s0 + $0x390] sm:$0xff]
  %v126 = vld [vmem:[%s0 + $0x398] sm:$0xff]
  %v127 = vld [vmem:[%s0 + $0x3a0] sm:$0xff]
  %v128 = vld [vmem:[%s0 + $0x3a8] sm:$0xff]
  %v129 = vld [vmem:[%s0 + $0x3b0] sm:$0xff]
  %v130 = vld [vmem:[%s0 + $0x3b8] sm:$0xff]
  %v131 = vld [vmem:[%s0 + $0x3c0] sm:$0xff]
  %v132 = vld [vmem:[%s0 + $0x3c8] sm:$0xff]
  %v133 = vld [vmem:[%s0 + $0x3d0] sm:$0xff]
  %v134 = vld [vmem:[%s0 + $0x3d8] sm:$0xff]
  %v135 = vld [vmem:[%s0 + $0x3e0] sm:$0xff]
  %v136 = vld [vmem:[%s0 + $0x3e8] sm:$0xff]
  %v137 = vld [vmem:[%s0 + $0x3f0] sm:$0xff]
  %v138 = vld [vmem:[%s0 + $0x3f8] sm:$0xff]
  %v139 = vld [vmem:[%s0 + $0x400] sm:$0xff]
  %v140 = vld [vmem:[%s0 + $0x408] sm:$0xff]
  %v141 = vld [vmem:[%s0 + $0x410] sm:$0xff]
  %v142 = vld [vmem:[%s0 + $0x418] sm:$0xff]
  %v143 = vld [vmem:[%s0 + $0x420] sm:$0xff]
  %v144 = vld [vmem:[%s0 + $0x428] sm:$0xff]
  %v145 = vld [vmem:[%s0 + $0x430] sm:$0xff]
  %v146 = vld [vmem:[%s0 + $0x438] sm:$0xff]
  %v147 = vld [vmem:[%s0 + $0x440] sm:$0xff]
  %v148 = vld [vmem:[%s0 + $0x448] sm:$0xff]
  %v149 = vld [vmem:[%s0 + $0x450] sm:$0xff]
  %v150 = vld [vmem:[%s0 + $0x458] sm:$0xff]
  %v151 = vld [vmem:[%s0 + $0x460] sm:$0xff]
  %v152 = vld [vmem:[%s0 + $0x468] sm:$0xff]
  %v153 = vld [vmem:[%s0 + $0x470] sm:$0xff]
  %v154 = vld [vmem:[%s0 + $0x478] sm:$0xff]
  %v155 = vld [vmem:[%s0 + $0x480] sm:$0xff]
  %v156 = vld [vmem:[%s0 + $0x488] sm:$0xff]
  %v157 = vld [vmem:[%s0 + $0x490] sm:$0xff]
  %v158 = vld [vmem:[%s0 + $0x498] sm:$0xff]
  %v159 = vld [vmem:[%s0 + $0x4a0] sm:$0xff]
  %v160 = vld [vmem:[%s0 + $0x4a8] sm:$0xff]
  %v161 = vld [vmem:[%s0 + $0x4b0] sm:$0xff]
  %v162 = vld [vmem:[%s0 + $0x4b8] sm:$0xff]
  %v163 = vld [vmem:[%s0 + $0x4c0] sm:$0xff]
  %v164 = vld [vmem:[%s0 + $0x4c8] sm:$0xff]
  %v165 = vld [vmem:[%s0 + $0x4d0] sm:$0xff]
  %v166 = vld [vmem:[%s0 + $0x4d8] sm:$0xff]
  %v167 = vld [vmem:[%s0 + $0x4e0] sm:$0xff]
  %v168 = vld [vmem:[%s0 + $0x4e8] sm:$0xff]
  %v169 = vld [vmem:[%s0 + $0x4f0] sm:$0xff]
  %v170 = vld [vmem:[%s0 + $0x4f8] sm:$0xff]
  %v171 = vld [vmem:[%s0 + $0x500] sm:$0xff]
  %v172 = vld [vmem:[%s0 + $0x508] sm:$0xff]
  %v173 = vld [vmem:[%s0 + $0x510] sm:$0xff]
  %v174 = vld [vmem:[%s0 + $0x518] sm:$0xff]
  %v175 = vld [vmem:[%s0 + $0x520] sm:$0xff]
  %v176 = vld [vmem:[%s0 + $0x528] sm:$0xff]
  %v177 = vld [vmem:[%s0 + $0x530] sm:$0xff]
  %v178 = vld [vmem:[%s0 + $0x538] sm:$0xff]
  %v179 = vld [vmem:[%s0 + $0x540] sm:$0xff]
  %v180 = vld [vmem:[%s0 + $0x548] sm:$0xff]
  %v181 = vld [vmem:[%s0 + $0x550] sm:$0xff]
  %v182 = vld [vmem:[%s0 + $0x558] sm:$0xff]
  %v183 = vld [vmem:[%s0 + $0x560] sm:$0xff]
  %v184 = vld [vmem:[%s0 + $0x568] sm:$0xff]
  %v185 = vld [vmem:[%s0 + $0x570] sm:$0xff]
  %v186 = vld [vmem:[%s0 + $0x578] sm:$0xff]
  %v187 = vld [vmem:[%s0 + $0x580] sm:$0xff]
  %v188 = vld [vmem:[%s0 + $0x588] sm:$0xff]
  %v189 = vld [vmem:[%s0 + $0x590] sm:$0xff]
  %v190 = vld [vmem:[%s0 + $0x598] sm:$0xff]
  %v191 = vld [vmem:[%s0 + $0x5a0] sm:$0xff]
  %v192 = vld [vmem:[%s0 + $0x5a8] sm:$0xff]
  %v193 = vld [vmem:[%s0 + $0x5b0] sm:$0xff]
  %v194 = vld [vmem:[%s0 + $0x5b8] sm:$0xff]
  %v195 = vld [vmem:[%s0 + $0x5c0] sm:$0xff]
  %v196 = vld [vmem:[%s0 + $0x5c8] sm:$0xff]
  %v197 = vld [vmem:[%s0 + $0x5d0] sm:$0xff]
  %v198 = vld [vmem:[%s0 + $0x5d8] sm:$0xff]
  %v199 = vld [vmem:[%s0 + $0x5e0] sm:$0xff]
  %v200 = vld [vmem:[%s0 + $0x5e8] sm:$0xff]
  %v201 = vld [vmem:[%s0 + $0x5f0] sm:$0xff]
  %v202 = vld [vmem:[%s0 + $0x5f8] sm:$0xff]
  %v203 = vld [vmem:[%s1] sm:$0xff]
  %v204 = vld [vmem:[%s1 + $0x8] sm:$0xff]
  %v205 = vld [vmem:[%s1 + $0x10] sm:$0xff]
  %v206 = vld [vmem:[%s1 + $0x18] sm:$0xff]
  %v207 = vld [vmem:[%s1 + $0x20] sm:$0xff]
  %v208 = vld [vmem:[%s1 + $0x28] sm:$0xff]
  %v209 = vld [vmem:[%s1 + $0x30] sm:$0xff]
  %v210 = vld [vmem:[%s1 + $0x38] sm:$0xff]
  %v211 = vld [vmem:[%s1 + $0x40] sm:$0xff]
  %v212 = vld [vmem:[%s1 + $0x48] sm:$0xff]
  %v213 = vld [vmem:[%s1 + $0x50] sm:$0xff]
  %v214 = vld [vmem:[%s1 + $0x58] sm:$0xff]
  %v215 = vld [vmem:[%s1 + $0x60] sm:$0xff]
  %v216 = vld [vmem:[%s1 + $0x68] sm:$0xff]
  %v217 = vld [vmem:[%s1 + $0x70] sm:$0xff]
  %v218 = vld [vmem:[%s1 + $0x78] sm:$0xff]
  %v219 = vld [vmem:[%s1 + $0x80] sm:$0xff]
  %v220 = vld [vmem:[%s1 + $0x88] sm:$0xff]
  %v221 = vld [vmem:[%s1 + $0x90] sm:$0xff]
  %v222 = vld [vmem:[%s1 + $0x98] sm:$0xff]
  %v223 = vld [vmem:[%s1 + $0xa0] sm:$0xff]
  %v224 = vld [vmem:[%s1 + $0xa8] sm:$0xff]
  %v225 = vld [vmem:[%s1 + $0xb0] sm:$0xff]
  %v226 = vld [vmem:[%s1 + $0xb8] sm:$0xff]
  %v227 = vld [vmem:[%s1 + $0xc0] sm:$0xff]
  %v228 = vld [vmem:[%s1 + $0xc8] sm:$0xff]
  %v229 = vld [vmem:[%s1 + $0xd0] sm:$0xff]
  %v230 = vld [vmem:[%s1 + $0xd8] sm:$0xff]
  %v231 = vld [vmem:[%s1 + $0xe0] sm:$0xff]
  %v232 = vld [vmem:[%s1 + $0xe8] sm:$0xff]
  %v233 = vld [vmem:[%s1 + $0xf0] sm:$0xff]
  %v234 = vld [vmem:[%s1 + $0xf8] sm:$0xff]
  %v235 = vld [vmem:[%s1 + $0x100] sm:$0xff]
  %v236 = vld [vmem:[%s1 + $0x108] sm:$0xff]
  %v237 = vld [vmem:[%s1 + $0x110] sm:$0xff]
  %v238 = vld [vmem:[%s1 + $0x118] sm:$0xff]
  %v239 = vld [vmem:[%s1 + $0x120] sm:$0xff]
  %v240 = vld [vmem:[%s1 + $0x128] sm:$0xff]
  %v241 = vld [vmem:[%s1 + $0x130] sm:$0xff]
  %v242 = vld [vmem:[%s1 + $0x138] sm:$0xff]
  %v243 = vld [vmem:[%s1 + $0x140] sm:$0xff]
  %v244 = vld [vmem:[%s1 + $0x148] sm:$0xff]
  %v245 = vld [vmem:[%s1 + $0x150] sm:$0xff]
  %v246 = vld [vmem:[%s1 + $0x158] sm:$0xff]
  %v247 = vld [vmem:[%s1 + $0x160] sm:$0xff]
  %v248 = vld [vmem:[%s1 + $0x168] sm:$0xff]
  %v249 = vld [vmem:[%s1 + $0x170] sm:$0xff]
  %v250 = vld [vmem:[%s1 + $0x178] sm:$0xff]
  %251 = vmatprep.subr.mxu0 0.0
  %252 = vmatpush1.msra.mxu0 %v203
  %253 = vmatprep.subr.mxu0 0.0
  %254 = vmatpush1.msra.mxu0 %v204
  %255 = vmatprep.subr.mxu0 0.0
  %256 = vmatpush1.msra.mxu0 %v205
  %257 = vmatprep.subr.mxu0 0.0
  %258 = vmatpush1.msra.mxu0 %v206
  %259 = vmatprep.subr.mxu0 0.0
  %260 = vmatpush1.msra.mxu0 %v207
  %261 = vmatprep.subr.mxu0 0.0
  %262 = vmatpush1.msra.mxu0 %v208
  %263 = vmatprep.subr.mxu0 0.0
  %264 = vmatpush1.msra.mxu0 %v209
  %265 = vmatprep.subr.mxu0 0.0
  %266 = vmatpush1.msra.mxu0 %v210
  %267 = vmatprep.subr.mxu0 0.0
  %268 = vmatpush1.msra.mxu0 %v211
  %269 = vmatprep.subr.mxu0 0.0
  %270 = vmatpush1.msra.mxu0 %v212
  %271 = vmatprep.subr.mxu0 0.0
  %272 = vmatpush1.msra.mxu0 %v213
  %273 = vmatprep.subr.mxu0 0.0
  %274 = vmatpush1.msra.mxu0 %v214
  %275 = vmatprep.subr.mxu0 0.0
  %276 = vmatpush1.msra.mxu0 %v215
  %277 = vmatprep.subr.mxu0 0.0
  %278 = vmatpush1.msra.mxu0 %v216
  %279 = vmatprep.subr.mxu0 0.0
  %280 = vmatpush1.msra.mxu0 %v217
  %281 = vmatprep.subr.mxu0 0.0
  %282 = vmatpush1.msra.mxu0 %v218
  %283 = vmatprep.subr.mxu0 0.0
  %284 = vmatpush1.msra.mxu0 %v219
  %285 = vmatprep.subr.mxu0 0.0
  %286 = vmatpush1.msra.mxu0 %v220
  %287 = vmatprep.subr.mxu0 0.0
  %288 = vmatpush1.msra.mxu0 %v221
  %289 = vmatprep.subr.mxu0 0.0
  %290 = vmatpush1.msra.mxu0 %v222
  %291 = vmatprep.subr.mxu0 0.0
  %292 = vmatpush1.msra.mxu0 %v223
  %293 = vmatprep.subr.mxu0 0.0
  %294 = vmatpush1.msra.mxu0 %v224
  %295 = vmatprep.subr.mxu0 0.0
  %296 = vmatpush1.msra.mxu0 %v225
  %297 = vmatprep.subr.mxu0 0.0
  %298 = vmatpush1.msra.mxu0 %v226
  %299 = vmatprep.subr.mxu0 0.0
  %300 = vmatpush1.msra.mxu0 %v227
  %301 = vmatprep.subr.mxu0 0.0
  %302 = vmatpush1.msra.mxu0 %v228
  %303 = vmatprep.subr.mxu0 0.0
  %304 = vmatpush1.msra.mxu0 %v229
  %305 = vmatprep.subr.mxu0 0.0
  %306 = vmatpush1.msra.mxu0 %v230
  %307 = vmatprep.subr.mxu0 0.0
  %308 = vmatpush1.msra.mxu0 %v231
  %309 = vmatprep.subr.mxu0 0.0
  %310 = vmatpush1.msra.mxu0 %v232
  %311 = vmatprep.subr.mxu0 0.0
  %312 = vmatpush1.msra.mxu0 %v233
  %313 = vmatprep.subr.mxu0 0.0
  %314 = vmatpush1.msra.mxu0 %v234
  %315 = vmatprep.mubr.f32.mxu0 %v12
  %316 = vmatmul.mubr.f32.gmra.mrb[0].mxu0 %v11
  %v317 = vpop.f32.mrb[0].mxu0
  %v318 = vadd.f32 0.0, %v317
  %v319 = vpop.f32.mrb[0].mxu0
  %320 = vmatprep.mubr.f32.mxu0 %v15
  %321 = vmatmul.mubr.f32.gmra.mrb[0].mxu0 %v14
  %v322 = vpop.f32.mrb[0].mxu0
  %v323 = vadd.f32 0.0, %v322
  %v324 = vpop.f32.mrb[0].mxu0
  %325 = vmatprep.mubr.f32.mxu0 %v18
  %326 = vmatmul.mubr.f32.gmra.mrb[0].mxu0 %v17
  %v327 = vpop.f32.mrb[0].mxu0
  %v328 = vadd.f32 0.0, %v327
  %v329 = vpop.f32.mrb[0].mxu0
  %330 = vmatprep.mubr.f32.mxu0 %v21
  %331 = vmatmul.mubr.f32.gmra.mrb[0].mxu0 %v20
  %v332 = vpop.f32.mrb[0].mxu0
  %v333 = vadd.f32 0.0, %v332
  %v334 = vpop.f32.mrb[0].mxu0
  %335 = vmatprep.mubr.f32.mxu0 %v24
  %336 = vmatmul.mubr.f32.gmra.mrb[0].mxu0 %v23
  %v337 = vpop.f32.mrb[0].mxu0
  %v338 = vadd.f32 0.0, %v337
  %v339 = vpop.f32.mrb[0].mxu0
  %340 = vmatprep.mubr.f32.mxu0 %v27
  %341 = vmatmul.mubr.f32.gmra.mrb[0].mxu0 %v26
  %v342 = vpop.f32.mrb[0].mxu0
  %v343 = vadd.f32 0.0, %v342
  %v344 = vpop.f32.mrb[0].mxu0
  %345 = vmatprep.mubr.f32.mxu0 %v30
  %346 = vmatmul.mubr.f32.gmra.mrb[0].mxu0 %v29
  %v347 = vpop.f32.mrb[0].mxu0
  %v348 = vadd.f32 0.0, %v347
  %v349 = vpop.f32.mrb[0].mxu0
  %350 = vmatprep.mubr.f32.mxu0 %v33
  %351 = vmatmul.mubr.f32.gmra.mrb[0].mxu0 %v32
  %v352 = vpop.f32.mrb[0].mxu0
  %v353 = vadd.f32 0.0, %v352
  %v354 = vpop.f32.mrb[0].mxu0
  %355 = vmatprep.mubr.f32.mxu0 %v36
  %356 = vmatmul.mubr.f32.gmra.mrb[0].mxu0 %v35
  %v357 = vpop.f32.mrb[0].mxu0
  %v358 = vadd.f32 0.0, %v357
  %v359 = vpop.f32.mrb[0].mxu0
  %360 = vmatprep.mubr.f32.mxu0 %v39
  %361 = vmatmul.mubr.f32.gmra.mrb[0].mxu0 %v38
  %v362 = vpop.f32.mrb[0].mxu0
  %v363 = vadd.f32 0.0, %v362
  %v364 = vpop.f32.mrb[0].mxu0
  %365 = vmatprep.mubr.f32.mxu0 %v42
  %366 = vmatmul.mubr.f32.gmra.mrb[0].mxu0 %v41
  %v367 = vpop.f32.mrb[0].mxu0
  %v368 = vadd.f32 0.0, %v367
  %v369 = vpop.f32.mrb[0].mxu0
  %370 = vmatprep.mubr.f32.mxu0 %v45
  %371 = vmatmul.mubr.f32.gmra.mrb[0].mxu0 %v44
  %v372 = vpop.f32.mrb[0].mxu0
  %v373 = vadd.f32 0.0, %v372
  %v374 = vpop.f32.mrb[0].mxu0
  %375 = vmatprep.mubr.f32.mxu0 %v48
  %376 = vmatmul.mubr.f32.gmra.mrb[0].mxu0 %v47
  %v377 = vpop.f32.mrb[0].mxu0
  %v378 = vadd.f32 0.0, %v377
  %v379 = vpop.f32.mrb[0].mxu0
  %380 = vmatprep.mubr.f32.mxu0 %v51
  %381 = vmatmul.mubr.f32.gmra.mrb[0].mxu0 %v50
  %v382 = vpop.f32.mrb[0].mxu0
  %v383 = vadd.f32 0.0, %v382
  %v384 = vpop.f32.mrb[0].mxu0
  %385 = vmatprep.mubr.f32.mxu0 %v54
  %386 = vmatmul.mubr.f32.gmra.mrb[0].mxu0 %v53
  %v387 = vpop.f32.mrb[0].mxu0
  %v388 = vadd.f32 0.0, %v387
  %v389 = vpop.f32.mrb[0].mxu0
  %390 = vmatprep.mubr.f32.mxu0 %v57
  %391 = vmatmul.mubr.f32.gmra.mrb[0].mxu0 %v56
  %v392 = vpop.f32.mrb[0].mxu0
  %v393 = vadd.f32 0.0, %v392
  %v394 = vpop.f32.mrb[0].mxu0
  %395 = vmatprep.mubr.f32.mxu0 %v60
  %396 = vmatmul.mubr.f32.gmra.mrb[0].mxu0 %v59
  %v397 = vpop.f32.mrb[0].mxu0
  %v398 = vadd.f32 0.0, %v397
  %v399 = vpop.f32.mrb[0].mxu0
  %400 = vmatprep.mubr.f32.mxu0 %v63
  %401 = vmatmul.mubr.f32.gmra.mrb[0].mxu0 %v62
  %v402 = vpop.f32.mrb[0].mxu0
  %v403 = vadd.f32 0.0, %v402
  %v404 = vpop.f32.mrb[0].mxu0
  %405 = vmatprep.mubr.f32.mxu0 %v66
  %406 = vmatmul.mubr.f32.gmra.mrb[0].mxu0 %v65
  %v407 = vpop.f32.mrb[0].mxu0
  %v408 = vadd.f32 0.0, %v407
  %v409 = vpop.f32.mrb[0].mxu0
  %410 = vmatprep.mubr.f32.mxu0 %v69
  %411 = vmatmul.mubr.f32.gmra.mrb[0].mxu0 %v68
  %v412 = vpop.f32.mrb[0].mxu0
  %v413 = vadd.f32 0.0, %v412
  %v414 = vpop.f32.mrb[0].mxu0
  %415 = vmatprep.mubr.f32.mxu0 %v72
  %416 = vmatmul.mubr.f32.gmra.mrb[0].mxu0 %v71
  %v417 = vpop.f32.mrb[0].mxu0
  %v418 = vadd.f32 0.0, %v417
  %v419 = vpop.f32.mrb[0].mxu0
  %420 = vmatprep.mubr.f32.mxu0 %v75
  %421 = vmatmul.mubr.f32.gmra.mrb[0].mxu0 %v74
  %v422 = vpop.f32.mrb[0].mxu0
  %v423 = vadd.f32 0.0, %v422
  %v424 = vpop.f32.mrb[0].mxu0
  %425 = vmatprep.mubr.f32.mxu0 %v78
  %426 = vmatmul.mubr.f32.gmra.mrb[0].mxu0 %v77
  %v427 = vpop.f32.mrb[0].mxu0
  %v428 = vadd.f32 0.0, %v427
  %v429 = vpop.f32.mrb[0].mxu0
  %430 = vmatprep.mubr.f32.mxu0 %v81
  %431 = vmatmul.mubr.f32.gmra.mrb[0].mxu0 %v80
  %v432 = vpop.f32.mrb[0].mxu0
  %v433 = vadd.f32 0.0, %v432
  %v434 = vpop.f32.mrb[0].mxu0
  %435 = vmatprep.mubr.f32.mxu0 %v84
  %436 = vmatmul.mubr.f32.gmra.mrb[0].mxu0 %v83
  %v437 = vpop.f32.mrb[0].mxu0
  %v438 = vadd.f32 0.0, %v437
  %v439 = vpop.f32.mrb[0].mxu0
  %440 = vmatprep.mubr.f32.mxu0 %v87
  %441 = vmatmul.mubr.f32.gmra.mrb[0].mxu0 %v86
  %v442 = vpop.f32.mrb[0].mxu0
  %v443 = vadd.f32 0.0, %v442
  %v444 = vpop.f32.mrb[0].mxu0
  %445 = vmatprep.mubr.f32.mxu0 %v90
  %446 = vmatmul.mubr.f32.gmra.mrb[0].mxu0 %v89
  %v447 = vpop.f32.mrb[0].mxu0
  %v448 = vadd.f32 0.0, %v447
  %v449 = vpop.f32.mrb[0].mxu0
  %450 = vmatprep.mubr.f32.mxu0 %v93
  %451 = vmatmul.mubr.f32.gmra.mrb[0].mxu0 %v92
  %v452 = vpop.f32.mrb[0].mxu0
  %v453 = vadd.f32 0.0, %v452
  %v454 = vpop.f32.mrb[0].mxu0
  %455 = vmatprep.mubr.f32.mxu0 %v96
  %456 = vmatmul.mubr.f32.gmra.mrb[0].mxu0 %v95
  %v457 = vpop.f32.mrb[0].mxu0
  %v458 = vadd.f32 0.0, %v457
  %v459 = vpop.f32.mrb[0].mxu0
  %460 = vmatprep.mubr.f32.mxu0 %v99
  %461 = vmatmul.mubr.f32.gmra.mrb[0].mxu0 %v98
  %v462 = vpop.f32.mrb[0].mxu0
  %v463 = vadd.f32 0.0, %v462
  %v464 = vpop.f32.mrb[0].mxu0
  %465 = vmatprep.mubr.f32.mxu0 %v102
  %466 = vmatmul.mubr.f32.gmra.mrb[0].mxu0 %v101
  %v467 = vpop.f32.mrb[0].mxu0
  %v468 = vadd.f32 0.0, %v467
  %v469 = vpop.f32.mrb[0].mxu0
  %470 = vmatprep.mubr.f32.mxu0 %v105
  %471 = vmatmul.mubr.f32.gmra.mrb[0].mxu0 %v104
  %v472 = vpop.f32.mrb[0].mxu0
  %v473 = vadd.f32 0.0, %v472
  %v474 = vpop.f32.mrb[0].mxu0
  %475 = vmatprep.mubr.f32.mxu0 %v108
  %476 = vmatmul.mubr.f32.gmra.mrb[0].mxu0 %v107
  %v477 = vpop.f32.mrb[0].mxu0
  %v478 = vadd.f32 0.0, %v477
  %v479 = vpop.f32.mrb[0].mxu0
  %480 = vmatprep.mubr.f32.mxu0 %v111
  %481 = vmatmul.mubr.f32.gmra.mrb[0].mxu0 %v110
  %v482 = vpop.f32.mrb[0].mxu0
  %v483 = vadd.f32 0.0, %v482
  %v484 = vpop.f32.mrb[0].mxu0
  %485 = vmatprep.mubr.f32.mxu0 %v114
  %486 = vmatmul.mubr.f32.gmra.mrb[0].mxu0 %v113
  %v487 = vpop.f32.mrb[0].mxu0
  %v488 = vadd.f32 0.0, %v487
  %v489 = vpop.f32.mrb[0].mxu0
  %490 = vmatprep.mubr.f32.mxu0 %v117
  %491 = vmatmul.mubr.f32.gmra.mrb[0].mxu0 %v116
  %v492 = vpop.f32.mrb[0].mxu0
  %v493 = vadd.f32 0.0, %v492
  %v494 = vpop.f32.mrb[0].mxu0
  %495 = vmatprep.mubr.f32.mxu0 %v120
  %496 = vmatmul.mubr.f32.gmra.mrb[0].mxu0 %v119
  %v497 = vpop.f32.mrb[0].mxu0
  %v498 = vadd.f32 0.0, %v497
  %v499 = vpop.f32.mrb[0].mxu0
  %500 = vmatprep.mubr.f32.mxu0 %v123
  %501 = vmatmul.mubr.f32.gmra.mrb[0].mxu0 %v122
  %v502 = vpop.f32.mrb[0].mxu0
  %v503 = vadd.f32 0.0, %v502
  %v504 = vpop.f32.mrb[0].mxu0
  %505 = vmatprep.mubr.f32.mxu0 %v126
  %506 = vmatmul.mubr.f32.gmra.mrb[0].mxu0 %v125
  %v507 = vpop.f32.mrb[0].mxu0
  %v508 = vadd.f32 0.0, %v507
  %v509 = vpop.f32.mrb[0].mxu0
  %510 = vmatprep.mubr.f32.mxu0 %v129
  %511 = vmatmul.mubr.f32.gmra.mrb[0].mxu0 %v128
  %v512 = vpop.f32.mrb[0].mxu0
  %v513 = vadd.f32 0.0, %v512
  %v514 = vpop.f32.mrb[0].mxu0
  %515 = vmatprep.mubr.f32.mxu0 %v132
  %516 = vmatmul.mubr.f32.gmra.mrb[0].mxu0 %v131
  %v517 = vpop.f32.mrb[0].mxu0
  %v518 = vadd.f32 0.0, %v517
  %v519 = vpop.f32.mrb[0].mxu0
  %520 = vmatprep.mubr.f32.mxu0 %v135
  %521 = vmatmul.mubr.f32.gmra.mrb[0].mxu0 %v134
  %v522 = vpop.f32.mrb[0].mxu0
  %v523 = vadd.f32 0.0, %v522
  %v524 = vpop.f32.mrb[0].mxu0
  %525 = vmatprep.mubr.f32.mxu0 %v138
  %526 = vmatmul.mubr.f32.gmra.mrb[0].mxu0 %v137
  %v527 = vpop.f32.mrb[0].mxu0
  %v528 = vadd.f32 0.0, %v527
  %v529 = vpop.f32.mrb[0].mxu0
  %530 = vmatprep.mubr.f32.mxu0 %v141
  %531 = vmatmul.mubr.f32.gmra.mrb[0].mxu0 %v140
  %v532 = vpop.f32.mrb[0].mxu0
  %v533 = vadd.f32 0.0, %v532
  %v534 = vpop.f32.mrb[0].mxu0
  %535 = vmatprep.mubr.f32.mxu0 %v144
  %536 = vmatmul.mubr.f32.gmra.mrb[0].mxu0 %v143
  %v537 = vpop.f32.mrb[0].mxu0
  %v538 = vadd.f32 0.0, %v537
  %v539 = vpop.f32.mrb[0].mxu0
  %540 = vmatprep.mubr.f32.mxu0 %v147
  %541 = vmatmul.mubr.f32.gmra.mrb[0].mxu0 %v146
  %v542 = vpop.f32.mrb[0].mxu0
  %v543 = vadd.f32 0.0, %v542
  %v544 = vpop.f32.mrb[0].mxu0
  %545 = vmatprep.mubr.f32.mxu0 %v150
  %546 = vmatmul.mubr.f32.gmra.mrb[0].mxu0 %v149
  %v547 = vpop.f32.mrb[0].mxu0
  %v548 = vadd.f32 0.0, %v547
  %v549 = vpop.f32.mrb[0].mxu0
  %550 = vmatprep.mubr.f32.mxu0 %v153
  %551 = vmatmul.mubr.f32.gmra.mrb[0].mxu0 %v152
  %v552 = vpop.f32.mrb[0].mxu0
  %v553 = vadd.f32 0.0, %v552
  %v554 = vpop.f32.mrb[0].mxu0
  %555 = vmatprep.mubr.f32.mxu0 %v156
  %556 = vmatmul.mubr.f32.gmra.mrb[0].mxu0 %v155
  %v557 = vpop.f32.mrb[0].mxu0
  %v558 = vadd.f32 0.0, %v557
  %v559 = vpop.f32.mrb[0].mxu0
  %560 = vmatprep.mubr.f32.mxu0 %v159
  %561 = vmatmul.mubr.f32.gmra.mrb[0].mxu0 %v158
  %v562 = vpop.f32.mrb[0].mxu0
  %v563 = vadd.f32 0.0, %v562
  %v564 = vpop.f32.mrb[0].mxu0
  %565 = vmatprep.mubr.f32.mxu0 %v162
  %566 = vmatmul.mubr.f32.gmra.mrb[0].mxu0 %v161
  %v567 = vpop.f32.mrb[0].mxu0
  %v568 = vadd.f32 0.0, %v567
  %v569 = vpop.f32.mrb[0].mxu0
  %570 = vmatprep.mubr.f32.mxu0 %v165
  %571 = vmatmul.mubr.f32.gmra.mrb[0].mxu0 %v164
  %v572 = vpop.f32.mrb[0].mxu0
  %v573 = vadd.f32 0.0, %v572
  %v574 = vpop.f32.mrb[0].mxu0
  %575 = vmatprep.mubr.f32.mxu0 %v168
  %576 = vmatmul.mubr.f32.gmra.mrb[0].mxu0 %v167
  %v577 = vpop.f32.mrb[0].mxu0
  %v578 = vadd.f32 0.0, %v577
  %v579 = vpop.f32.mrb[0].mxu0
  %580 = vmatprep.mubr.f32.mxu0 %v171
  %581 = vmatmul.mubr.f32.gmra.mrb[0].mxu0 %v170
  %v582 = vpop.f32.mrb[0].mxu0
  %v583 = vadd.f32 0.0, %v582
  %v584 = vpop.f32.mrb[0].mxu0
  %585 = vmatprep.mubr.f32.mxu0 %v174
  %586 = vmatmul.mubr.f32.gmra.mrb[0].mxu0 %v173
  %v587 = vpop.f32.mrb[0].mxu0
  %v588 = vadd.f32 0.0, %v587
  %v589 = vpop.f32.mrb[0].mxu0
  %590 = vmatprep.mubr.f32.mxu0 %v177
  %591 = vmatmul.mubr.f32.gmra.mrb[0].mxu0 %v176
  %v592 = vpop.f32.mrb[0].mxu0
  %v593 = vadd.f32 0.0, %v592
  %v594 = vpop.f32.mrb[0].mxu0
  %595 = vmatprep.mubr.f32.mxu0 %v180
  %596 = vmatmul.mubr.f32.gmra.mrb[0].mxu0 %v179
  %v597 = vpop.f32.mrb[0].mxu0
  %v598 = vadd.f32 0.0, %v597
  %v599 = vpop.f32.mrb[0].mxu0
  %600 = vmatprep.mubr.f32.mxu0 %v183
  %601 = vmatmul.mubr.f32.gmra.mrb[0].mxu0 %v182
  %v602 = vpop.f32.mrb[0].mxu0
  %v603 = vadd.f32 0.0, %v602
  %v604 = vpop.f32.mrb[0].mxu0
  %605 = vmatprep.mubr.f32.mxu0 %v186
  %606 = vmatmul.mubr.f32.gmra.mrb[0].mxu0 %v185
  %v607 = vpop.f32.mrb[0].mxu0
  %v608 = vadd.f32 0.0, %v607
  %v609 = vpop.f32.mrb[0].mxu0
  %610 = vmatprep.mubr.f32.mxu0 %v189
  %611 = vmatmul.mubr.f32.gmra.mrb[0].mxu0 %v188
  %v612 = vpop.f32.mrb[0].mxu0
  %v613 = vadd.f32 0.0, %v612
  %v614 = vpop.f32.mrb[0].mxu0
  %615 = vmatprep.mubr.f32.mxu0 %v192
  %616 = vmatmul.mubr.f32.gmra.mrb[0].mxu0 %v191
  %v617 = vpop.f32.mrb[0].mxu0
  %v618 = vadd.f32 0.0, %v617
  %v619 = vpop.f32.mrb[0].mxu0
  %620 = vmatprep.mubr.f32.mxu0 %v195
  %621 = vmatmul.mubr.f32.gmra.mrb[0].mxu0 %v194
  %v622 = vpop.f32.mrb[0].mxu0
  %v623 = vadd.f32 0.0, %v622
  %v624 = vpop.f32.mrb[0].mxu0
  %625 = vmatprep.mubr.f32.mxu0 %v198
  %626 = vmatmul.mubr.f32.gmra.mrb[0].mxu0 %v197
  %v627 = vpop.f32.mrb[0].mxu0
  %v628 = vadd.f32 0.0, %v627
  %v629 = vpop.f32.mrb[0].mxu0
  %630 = vmatprep.mubr.f32.mxu0 %v201
  %631 = vmatmul.mubr.f32.gmra.mrb[0].mxu0 %v200
  %v632 = vpop.f32.mrb[0].mxu0
  %v633 = vadd.f32 0.0, %v632
  %v634 = vpop.f32.mrb[0].mxu0
  %635 = vdwg.mxu0
  %636 = vmatprep.subr.mxu0 0.0
  %637 = vmatpush1.msra.mxu0 %v235
  %638 = vmatprep.subr.mxu0 0.0
  %639 = vmatpush1.msra.mxu0 %v236
  %640 = vmatprep.subr.mxu0 0.0
  %641 = vmatpush1.msra.mxu0 %v237
  %642 = vmatprep.subr.mxu0 0.0
  %643 = vmatpush1.msra.mxu0 %v238
  %644 = vmatprep.subr.mxu0 0.0
  %645 = vmatpush1.msra.mxu0 %v239
  %646 = vmatprep.subr.mxu0 0.0
  %647 = vmatpush1.msra.mxu0 %v240
  %648 = vmatprep.subr.mxu0 0.0
  %649 = vmatpush1.msra.mxu0 %v241
  %650 = vmatprep.subr.mxu0 0.0
  %651 = vmatpush1.msra.mxu0 %v242
  %652 = vmatprep.subr.mxu0 0.0
  %653 = vmatpush1.msra.mxu0 %v243
  %654 = vmatprep.subr.mxu0 0.0
  %655 = vmatpush1.msra.mxu0 %v244
  %656 = vmatprep.subr.mxu0 0.0
  %657 = vmatpush1.msra.mxu0 %v245
  %658 = vmatprep.subr.mxu0 0.0
  %659 = vmatpush1.msra.mxu0 %v246
  %660 = vmatprep.subr.mxu0 0.0
  %661 = vmatpush1.msra.mxu0 %v247
  %662 = vmatprep.subr.mxu0 0.0
  %663 = vmatpush1.msra.mxu0 %v248
  %664 = vmatprep.subr.mxu0 0.0
  %665 = vmatpush1.msra.mxu0 %v249
  %666 = vmatprep.subr.mxu0 0.0
  %667 = vmatpush1.msra.mxu0 %v250
  %668 = vmatprep.subr.mxu0 0.0
  %669 = vmatpush1.msra.mxu0 0.0
  %670 = vmatprep.subr.mxu0 0.0
  %671 = vmatpush1.msra.mxu0 0.0
  %672 = vmatprep.subr.mxu0 0.0
  %673 = vmatpush1.msra.mxu0 0.0
  %674 = vmatprep.subr.mxu0 0.0
  %675 = vmatpush1.msra.mxu0 0.0
  %676 = vmatprep.subr.mxu0 0.0
  %677 = vmatpush1.msra.mxu0 0.0
  %678 = vmatprep.subr.mxu0 0.0
  %679 = vmatpush1.msra.mxu0 0.0
  %680 = vmatprep.subr.mxu0 0.0
  %681 = vmatpush1.msra.mxu0 0.0
  %682 = vmatprep.subr.mxu0 0.0
  %683 = vmatpush1.msra.mxu0 0.0
  %684 = vmatprep.subr.mxu0 0.0
  %685 = vmatpush1.msra.mxu0 0.0
  %686 = vmatprep.subr.mxu0 0.0
  %687 = vmatpush1.msra.mxu0 0.0
  %688 = vmatprep.subr.mxu0 0.0
  %689 = vmatpush1.msra.mxu0 0.0
  %690 = vmatprep.subr.mxu0 0.0
  %691 = vmatpush1.msra.mxu0 0.0
  %692 = vmatprep.subr.mxu0 0.0
  %693 = vmatpush1.msra.mxu0 0.0
  %694 = vmatprep.subr.mxu0 0.0
  %695 = vmatpush1.msra.mxu0 0.0
  %696 = vmatprep.subr.mxu0 0.0
  %697 = vmatpush1.msra.mxu0 0.0
  %698 = vmatprep.subr.mxu0 0.0
  %699 = vmatpush1.msra.mxu0 0.0
  %700 = vmatprep.mubr.f32.mxu0 0.0
  %701 = vmatmul.mubr.f32.gmra.mrb[0].mxu0 %v13
  %v702 = vpop.f32.mrb[0].mxu0
  %v703 = vadd.f32 %v318, %v702
  %v704 = vpop.f32.mrb[0].mxu0
  %705 = vmatprep.mubr.f32.mxu0 0.0
  %706 = vmatmul.mubr.f32.gmra.mrb[0].mxu0 %v16
  %v707 = vpop.f32.mrb[0].mxu0
  %v708 = vadd.f32 %v323, %v707
  %v709 = vpop.f32.mrb[0].mxu0
  %710 = vmatprep.mubr.f32.mxu0 0.0
  %711 = vmatmul.mubr.f32.gmra.mrb[0].mxu0 %v19
  %v712 = vpop.f32.mrb[0].mxu0
  %v713 = vadd.f32 %v328, %v712
  %v714 = vpop.f32.mrb[0].mxu0
  %715 = vmatprep.mubr.f32.mxu0 0.0
  %716 = vmatmul.mubr.f32.gmra.mrb[0].mxu0 %v22
  %v717 = vpop.f32.mrb[0].mxu0
  %v718 = vadd.f32 %v333, %v717
  %v719 = vpop.f32.mrb[0].mxu0
  %720 = vmatprep.mubr.f32.mxu0 0.0
  %721 = vmatmul.mubr.f32.gmra.mrb[0].mxu0 %v25
  %v722 = vpop.f32.mrb[0].mxu0
  %v723 = vadd.f32 %v338, %v722
  %v724 = vpop.f32.mrb[0].mxu0
  %725 = vmatprep.mubr.f32.mxu0 0.0
  %726 = vmatmul.mubr.f32.gmra.mrb[0].mxu0 %v28
  %v727 = vpop.f32.mrb[0].mxu0
  %v728 = vadd.f32 %v343, %v727
  %v729 = vpop.f32.mrb[0].mxu0
  %730 = vmatprep.mubr.f32.mxu0 0.0
  %731 = vmatmul.mubr.f32.gmra.mrb[0].mxu0 %v31
  %v732 = vpop.f32.mrb[0].mxu0
  %v733 = vadd.f32 %v348, %v732
  %v734 = vpop.f32.mrb[0].mxu0
  %735 = vmatprep.mubr.f32.mxu0 0.0
  %736 = vmatmul.mubr.f32.gmra.mrb[0].mxu0 %v34
  %v737 = vpop.f32.mrb[0].mxu0
  %v738 = vadd.f32 %v353, %v737
  %v739 = vpop.f32.mrb[0].mxu0
  %740 = vmatprep.mubr.f32.mxu0 0.0
  %741 = vmatmul.mubr.f32.gmra.mrb[0].mxu0 %v37
  %v742 = vpop.f32.mrb[0].mxu0
  %v743 = vadd.f32 %v358, %v742
  %v744 = vpop.f32.mrb[0].mxu0
  %745 = vmatprep.mubr.f32.mxu0 0.0
  %746 = vmatmul.mubr.f32.gmra.mrb[0].mxu0 %v40
  %v747 = vpop.f32.mrb[0].mxu0
  %v748 = vadd.f32 %v363, %v747
  %v749 = vpop.f32.mrb[0].mxu0
  %750 = vmatprep.mubr.f32.mxu0 0.0
  %751 = vmatmul.mubr.f32.gmra.mrb[0].mxu0 %v43
  %v752 = vpop.f32.mrb[0].mxu0
  %v753 = vadd.f32 %v368, %v752
  %v754 = vpop.f32.mrb[0].mxu0
  %755 = vmatprep.mubr.f32.mxu0 0.0
  %756 = vmatmul.mubr.f32.gmra.mrb[0].mxu0 %v46
  %v757 = vpop.f32.mrb[0].mxu0
  %v758 = vadd.f32 %v373, %v757
  %v759 = vpop.f32.mrb[0].mxu0
  %760 = vmatprep.mubr.f32.mxu0 0.0
  %761 = vmatmul.mubr.f32.gmra.mrb[0].mxu0 %v49
  %v762 = vpop.f32.mrb[0].mxu0
  %v763 = vadd.f32 %v378, %v762
  %v764 = vpop.f32.mrb[0].mxu0
  %765 = vmatprep.mubr.f32.mxu0 0.0
  %766 = vmatmul.mubr.f32.gmra.mrb[0].mxu0 %v52
  %v767 = vpop.f32.mrb[0].mxu0
  %v768 = vadd.f32 %v383, %v767
  %v769 = vpop.f32.mrb[0].mxu0
  %770 = vmatprep.mubr.f32.mxu0 0.0
  %771 = vmatmul.mubr.f32.gmra.mrb[0].mxu0 %v55
  %v772 = vpop.f32.mrb[0].mxu0
  %v773 = vadd.f32 %v388, %v772
  %v774 = vpop.f32.mrb[0].mxu0
  %775 = vmatprep.mubr.f32.mxu0 0.0
  %776 = vmatmul.mubr.f32.gmra.mrb[0].mxu0 %v58
  %v777 = vpop.f32.mrb[0].mxu0
  %v778 = vadd.f32 %v393, %v777
  %v779 = vpop.f32.mrb[0].mxu0
  %780 = vmatprep.mubr.f32.mxu0 0.0
  %781 = vmatmul.mubr.f32.gmra.mrb[0].mxu0 %v61
  %v782 = vpop.f32.mrb[0].mxu0
  %v783 = vadd.f32 %v398, %v782
  %v784 = vpop.f32.mrb[0].mxu0
  %785 = vmatprep.mubr.f32.mxu0 0.0
  %786 = vmatmul.mubr.f32.gmra.mrb[0].mxu0 %v64
  %v787 = vpop.f32.mrb[0].mxu0
  %v788 = vadd.f32 %v403, %v787
  %v789 = vpop.f32.mrb[0].mxu0
  %790 = vmatprep.mubr.f32.mxu0 0.0
  %791 = vmatmul.mubr.f32.gmra.mrb[0].mxu0 %v67
  %v792 = vpop.f32.mrb[0].mxu0
  %v793 = vadd.f32 %v408, %v792
  %v794 = vpop.f32.mrb[0].mxu0
  %795 = vmatprep.mubr.f32.mxu0 0.0
  %796 = vmatmul.mubr.f32.gmra.mrb[0].mxu0 %v70
  %v797 = vpop.f32.mrb[0].mxu0
  %v798 = vadd.f32 %v413, %v797
  %v799 = vpop.f32.mrb[0].mxu0
  %800 = vmatprep.mubr.f32.mxu0 0.0
  %801 = vmatmul.mubr.f32.gmra.mrb[0].mxu0 %v73
  %v802 = vpop.f32.mrb[0].mxu0
  %v803 = vadd.f32 %v418, %v802
  %v804 = vpop.f32.mrb[0].mxu0
  %805 = vmatprep.mubr.f32.mxu0 0.0
  %806 = vmatmul.mubr.f32.gmra.mrb[0].mxu0 %v76
  %v807 = vpop.f32.mrb[0].mxu0
  %v808 = vadd.f32 %v423, %v807
  %v809 = vpop.f32.mrb[0].mxu0
  %810 = vmatprep.mubr.f32.mxu0 0.0
  %811 = vmatmul.mubr.f32.gmra.mrb[0].mxu0 %v79
  %v812 = vpop.f32.mrb[0].mxu0
  %v813 = vadd.f32 %v428, %v812
  %v814 = vpop.f32.mrb[0].mxu0
  %815 = vmatprep.mubr.f32.mxu0 0.0
  %816 = vmatmul.mubr.f32.gmra.mrb[0].mxu0 %v82
  %v817 = vpop.f32.mrb[0].mxu0
  %v818 = vadd.f32 %v433, %v817
  %v819 = vpop.f32.mrb[0].mxu0
  %820 = vmatprep.mubr.f32.mxu0 0.0
  %821 = vmatmul.mubr.f32.gmra.mrb[0].mxu0 %v85
  %v822 = vpop.f32.mrb[0].mxu0
  %v823 = vadd.f32 %v438, %v822
  %v824 = vpop.f32.mrb[0].mxu0
  %825 = vmatprep.mubr.f32.mxu0 0.0
  %826 = vmatmul.mubr.f32.gmra.mrb[0].mxu0 %v88
  %v827 = vpop.f32.mrb[0].mxu0
  %v828 = vadd.f32 %v443, %v827
  %v829 = vpop.f32.mrb[0].mxu0
  %830 = vmatprep.mubr.f32.mxu0 0.0
  %831 = vmatmul.mubr.f32.gmra.mrb[0].mxu0 %v91
  %v832 = vpop.f32.mrb[0].mxu0
  %v833 = vadd.f32 %v448, %v832
  %v834 = vpop.f32.mrb[0].mxu0
  %835 = vmatprep.mubr.f32.mxu0 0.0
  %836 = vmatmul.mubr.f32.gmra.mrb[0].mxu0 %v94
  %v837 = vpop.f32.mrb[0].mxu0
  %v838 = vadd.f32 %v453, %v837
  %v839 = vpop.f32.mrb[0].mxu0
  %840 = vmatprep.mubr.f32.mxu0 0.0
  %841 = vmatmul.mubr.f32.gmra.mrb[0].mxu0 %v97
  %v842 = vpop.f32.mrb[0].mxu0
  %v843 = vadd.f32 %v458, %v842
  %v844 = vpop.f32.mrb[0].mxu0
  %845 = vmatprep.mubr.f32.mxu0 0.0
  %846 = vmatmul.mubr.f32.gmra.mrb[0].mxu0 %v100
  %v847 = vpop.f32.mrb[0].mxu0
  %v848 = vadd.f32 %v463, %v847
  %v849 = vpop.f32.mrb[0].mxu0
  %850 = vmatprep.mubr.f32.mxu0 0.0
  %851 = vmatmul.mubr.f32.gmra.mrb[0].mxu0 %v103
  %v852 = vpop.f32.mrb[0].mxu0
  %v853 = vadd.f32 %v468, %v852
  %v854 = vpop.f32.mrb[0].mxu0
  %855 = vmatprep.mubr.f32.mxu0 0.0
  %856 = vmatmul.mubr.f32.gmra.mrb[0].mxu0 %v106
  %v857 = vpop.f32.mrb[0].mxu0
  %v858 = vadd.f32 %v473, %v857
  %v859 = vpop.f32.mrb[0].mxu0
  %860 = vmatprep.mubr.f32.mxu0 0.0
  %861 = vmatmul.mubr.f32.gmra.mrb[0].mxu0 %v109
  %v862 = vpop.f32.mrb[0].mxu0
  %v863 = vadd.f32 %v478, %v862
  %v864 = vpop.f32.mrb[0].mxu0
  %865 = vmatprep.mubr.f32.mxu0 0.0
  %866 = vmatmul.mubr.f32.gmra.mrb[0].mxu0 %v112
  %v867 = vpop.f32.mrb[0].mxu0
  %v868 = vadd.f32 %v483, %v867
  %v869 = vpop.f32.mrb[0].mxu0
  %870 = vmatprep.mubr.f32.mxu0 0.0
  %871 = vmatmul.mubr.f32.gmra.mrb[0].mxu0 %v115
  %v872 = vpop.f32.mrb[0].mxu0
  %v873 = vadd.f32 %v488, %v872
  %v874 = vpop.f32.mrb[0].mxu0
  %875 = vmatprep.mubr.f32.mxu0 0.0
  %876 = vmatmul.mubr.f32.gmra.mrb[0].mxu0 %v118
  %v877 = vpop.f32.mrb[0].mxu0
  %v878 = vadd.f32 %v493, %v877
  %v879 = vpop.f32.mrb[0].mxu0
  %880 = vmatprep.mubr.f32.mxu0 0.0
  %881 = vmatmul.mubr.f32.gmra.mrb[0].mxu0 %v121
  %v882 = vpop.f32.mrb[0].mxu0
  %v883 = vadd.f32 %v498, %v882
  %v884 = vpop.f32.mrb[0].mxu0
  %885 = vmatprep.mubr.f32.mxu0 0.0
  %886 = vmatmul.mubr.f32.gmra.mrb[0].mxu0 %v124
  %v887 = vpop.f32.mrb[0].mxu0
  %v888 = vadd.f32 %v503, %v887
  %v889 = vpop.f32.mrb[0].mxu0
  %890 = vmatprep.mubr.f32.mxu0 0.0
  %891 = vmatmul.mubr.f32.gmra.mrb[0].mxu0 %v127
  %v892 = vpop.f32.mrb[0].mxu0
  %v893 = vadd.f32 %v508, %v892
  %v894 = vpop.f32.mrb[0].mxu0
  %895 = vmatprep.mubr.f32.mxu0 0.0
  %896 = vmatmul.mubr.f32.gmra.mrb[0].mxu0 %v130
  %v897 = vpop.f32.mrb[0].mxu0
  %v898 = vadd.f32 %v513, %v897
  %v899 = vpop.f32.mrb[0].mxu0
  %900 = vmatprep.mubr.f32.mxu0 0.0
  %901 = vmatmul.mubr.f32.gmra.mrb[0].mxu0 %v133
  %v902 = vpop.f32.mrb[0].mxu0
  %v903 = vadd.f32 %v518, %v902
  %v904 = vpop.f32.mrb[0].mxu0
  %905 = vmatprep.mubr.f32.mxu0 0.0
  %906 = vmatmul.mubr.f32.gmra.mrb[0].mxu0 %v136
  %v907 = vpop.f32.mrb[0].mxu0
  %v908 = vadd.f32 %v523, %v907
  %v909 = vpop.f32.mrb[0].mxu0
  %910 = vmatprep.mubr.f32.mxu0 0.0
  %911 = vmatmul.mubr.f32.gmra.mrb[0].mxu0 %v139
  %v912 = vpop.f32.mrb[0].mxu0
  %v913 = vadd.f32 %v528, %v912
  %v914 = vpop.f32.mrb[0].mxu0
  %915 = vmatprep.mubr.f32.mxu0 0.0
  %916 = vmatmul.mubr.f32.gmra.mrb[0].mxu0 %v142
  %v917 = vpop.f32.mrb[0].mxu0
  %v918 = vadd.f32 %v533, %v917
  %v919 = vpop.f32.mrb[0].mxu0
  %920 = vmatprep.mubr.f32.mxu0 0.0
  %921 = vmatmul.mubr.f32.gmra.mrb[0].mxu0 %v145
  %v922 = vpop.f32.mrb[0].mxu0
  %v923 = vadd.f32 %v538, %v922
  %v924 = vpop.f32.mrb[0].mxu0
  %925 = vmatprep.mubr.f32.mxu0 0.0
  %926 = vmatmul.mubr.f32.gmra.mrb[0].mxu0 %v148
  %v927 = vpop.f32.mrb[0].mxu0
  %v928 = vadd.f32 %v543, %v927
  %v929 = vpop.f32.mrb[0].mxu0
  %930 = vmatprep.mubr.f32.mxu0 0.0
  %931 = vmatmul.mubr.f32.gmra.mrb[0].mxu0 %v151
  %v932 = vpop.f32.mrb[0].mxu0
  %v933 = vadd.f32 %v548, %v932
  %v934 = vpop.f32.mrb[0].mxu0
  %935 = vmatprep.mubr.f32.mxu0 0.0
  %936 = vmatmul.mubr.f32.gmra.mrb[0].mxu0 %v154
  %v937 = vpop.f32.mrb[0].mxu0
  %v938 = vadd.f32 %v553, %v937
  %v939 = vpop.f32.mrb[0].mxu0
  %940 = vmatprep.mubr.f32.mxu0 0.0
  %941 = vmatmul.mubr.f32.gmra.mrb[0].mxu0 %v157
  %v942 = vpop.f32.mrb[0].mxu0
  %v943 = vadd.f32 %v558, %v942
  %v944 = vpop.f32.mrb[0].mxu0
  %945 = vmatprep.mubr.f32.mxu0 0.0
  %946 = vmatmul.mubr.f32.gmra.mrb[0].mxu0 %v160
  %v947 = vpop.f32.mrb[0].mxu0
  %v948 = vadd.f32 %v563, %v947
  %v949 = vpop.f32.mrb[0].mxu0
  %950 = vmatprep.mubr.f32.mxu0 0.0
  %951 = vmatmul.mubr.f32.gmra.mrb[0].mxu0 %v163
  %v952 = vpop.f32.mrb[0].mxu0
  %v953 = vadd.f32 %v568, %v952
  %v954 = vpop.f32.mrb[0].mxu0
  %955 = vmatprep.mubr.f32.mxu0 0.0
  %956 = vmatmul.mubr.f32.gmra.mrb[0].mxu0 %v166
  %v957 = vpop.f32.mrb[0].mxu0
  %v958 = vadd.f32 %v573, %v957
  %v959 = vpop.f32.mrb[0].mxu0
  %960 = vmatprep.mubr.f32.mxu0 0.0
  %961 = vmatmul.mubr.f32.gmra.mrb[0].mxu0 %v169
  %v962 = vpop.f32.mrb[0].mxu0
  %v963 = vadd.f32 %v578, %v962
  %v964 = vpop.f32.mrb[0].mxu0
  %965 = vmatprep.mubr.f32.mxu0 0.0
  %966 = vmatmul.mubr.f32.gmra.mrb[0].mxu0 %v172
  %v967 = vpop.f32.mrb[0].mxu0
  %v968 = vadd.f32 %v583, %v967
  %v969 = vpop.f32.mrb[0].mxu0
  %970 = vmatprep.mubr.f32.mxu0 0.0
  %971 = vmatmul.mubr.f32.gmra.mrb[0].mxu0 %v175
  %v972 = vpop.f32.mrb[0].mxu0
  %v973 = vadd.f32 %v588, %v972
  %v974 = vpop.f32.mrb[0].mxu0
  %975 = vmatprep.mubr.f32.mxu0 0.0
  %976 = vmatmul.mubr.f32.gmra.mrb[0].mxu0 %v178
  %v977 = vpop.f32.mrb[0].mxu0
  %v978 = vadd.f32 %v593, %v977
  %v979 = vpop.f32.mrb[0].mxu0
  %980 = vmatprep.mubr.f32.mxu0 0.0
  %981 = vmatmul.mubr.f32.gmra.mrb[0].mxu0 %v181
  %v982 = vpop.f32.mrb[0].mxu0
  %v983 = vadd.f32 %v598, %v982
  %v984 = vpop.f32.mrb[0].mxu0
  %985 = vmatprep.mubr.f32.mxu0 0.0
  %986 = vmatmul.mubr.f32.gmra.mrb[0].mxu0 %v184
  %v987 = vpop.f32.mrb[0].mxu0
  %v988 = vadd.f32 %v603, %v987
  %v989 = vpop.f32.mrb[0].mxu0
  %990 = vmatprep.mubr.f32.mxu0 0.0
  %991 = vmatmul.mubr.f32.gmra.mrb[0].mxu0 %v187
  %v992 = vpop.f32.mrb[0].mxu0
  %v993 = vadd.f32 %v608, %v992
  %v994 = vpop.f32.mrb[0].mxu0
  %995 = vmatprep.mubr.f32.mxu0 0.0
  %996 = vmatmul.mubr.f32.gmra.mrb[0].mxu0 %v190
  %v997 = vpop.f32.mrb[0].mxu0
  %v998 = vadd.f32 %v613, %v997
  %v999 = vpop.f32.mrb[0].mxu0
  %1000 = vmatprep.mubr.f32.mxu0 0.0
  %1001 = vmatmul.mubr.f32.gmra.mrb[0].mxu0 %v193
  %v1002 = vpop.f32.mrb[0].mxu0
  %v1003 = vadd.f32 %v618, %v1002
  %v1004 = vpop.f32.mrb[0].mxu0
  %1005 = vmatprep.mubr.f32.mxu0 0.0
  %1006 = vmatmul.mubr.f32.gmra.mrb[0].mxu0 %v196
  %v1007 = vpop.f32.mrb[0].mxu0
  %v1008 = vadd.f32 %v623, %v1007
  %v1009 = vpop.f32.mrb[0].mxu0
  %1010 = vmatprep.mubr.f32.mxu0 0.0
  %1011 = vmatmul.mubr.f32.gmra.mrb[0].mxu0 %v199
  %v1012 = vpop.f32.mrb[0].mxu0
  %v1013 = vadd.f32 %v628, %v1012
  %v1014 = vpop.f32.mrb[0].mxu0
  %1015 = vmatprep.mubr.f32.mxu0 0.0
  %1016 = vmatmul.mubr.f32.gmra.mrb[0].mxu0 %v202
  %v1017 = vpop.f32.mrb[0].mxu0
  %v1018 = vadd.f32 %v633, %v1017
  %v1019 = vpop.f32.mrb[0].mxu0
  %1020 = vdwg.mxu0
  %1021 = vst [vmem:[%s2] sm:$0xff] %v703
  %1022 = vst [vmem:[%s2 + $0x8] sm:$0xff] %v708
  %1023 = vst [vmem:[%s2 + $0x10] sm:$0xff] %v713
  %1024 = vst [vmem:[%s2 + $0x18] sm:$0xff] %v718
  %1025 = vst [vmem:[%s2 + $0x20] sm:$0xff] %v723
  %1026 = vst [vmem:[%s2 + $0x28] sm:$0xff] %v728
  %1027 = vst [vmem:[%s2 + $0x30] sm:$0xff] %v733
  %1028 = vst [vmem:[%s2 + $0x38] sm:$0xff] %v738
  %1029 = vst [vmem:[%s2 + $0x40] sm:$0xff] %v743
  %1030 = vst [vmem:[%s2 + $0x48] sm:$0xff] %v748
  %1031 = vst [vmem:[%s2 + $0x50] sm:$0xff] %v753
  %1032 = vst [vmem:[%s2 + $0x58] sm:$0xff] %v758
  %1033 = vst [vmem:[%s2 + $0x60] sm:$0xff] %v763
  %1034 = vst [vmem:[%s2 + $0x68] sm:$0xff] %v768
  %1035 = vst [vmem:[%s2 + $0x70] sm:$0xff] %v773
  %1036 = vst [vmem:[%s2 + $0x78] sm:$0xff] %v778
  %1037 = vst [vmem:[%s2 + $0x80] sm:$0xff] %v783
  %1038 = vst [vmem:[%s2 + $0x88] sm:$0xff] %v788
  %1039 = vst [vmem:[%s2 + $0x90] sm:$0xff] %v793
  %1040 = vst [vmem:[%s2 + $0x98] sm:$0xff] %v798
  %1041 = vst [vmem:[%s2 + $0xa0] sm:$0xff] %v803
  %1042 = vst [vmem:[%s2 + $0xa8] sm:$0xff] %v808
  %1043 = vst [vmem:[%s2 + $0xb0] sm:$0xff] %v813
  %1044 = vst [vmem:[%s2 + $0xb8] sm:$0xff] %v818
  %1045 = vst [vmem:[%s2 + $0xc0] sm:$0xff] %v823
  %1046 = vst [vmem:[%s2 + $0xc8] sm:$0xff] %v828
  %1047 = vst [vmem:[%s2 + $0xd0] sm:$0xff] %v833
  %1048 = vst [vmem:[%s2 + $0xd8] sm:$0xff] %v838
  %1049 = vst [vmem:[%s2 + $0xe0] sm:$0xff] %v843
  %1050 = vst [vmem:[%s2 + $0xe8] sm:$0xff] %v848
  %1051 = vst [vmem:[%s2 + $0xf0] sm:$0xff] %v853
  %1052 = vst [vmem:[%s2 + $0xf8] sm:$0xff] %v858
  %1053 = vst [vmem:[%s2 + $0x100] sm:$0xff] %v863
  %1054 = vst [vmem:[%s2 + $0x108] sm:$0xff] %v868
  %1055 = vst [vmem:[%s2 + $0x110] sm:$0xff] %v873
  %1056 = vst [vmem:[%s2 + $0x118] sm:$0xff] %v878
  %1057 = vst [vmem:[%s2 + $0x120] sm:$0xff] %v883
  %1058 = vst [vmem:[%s2 + $0x128] sm:$0xff] %v888
  %1059 = vst [vmem:[%s2 + $0x130] sm:$0xff] %v893
  %1060 = vst [vmem:[%s2 + $0x138] sm:$0xff] %v898
  %1061 = vst [vmem:[%s2 + $0x140] sm:$0xff] %v903
  %1062 = vst [vmem:[%s2 + $0x148] sm:$0xff] %v908
  %1063 = vst [vmem:[%s2 + $0x150] sm:$0xff] %v913
  %1064 = vst [vmem:[%s2 + $0x158] sm:$0xff] %v918
  %1065 = vst [vmem:[%s2 + $0x160] sm:$0xff] %v923
  %1066 = vst [vmem:[%s2 + $0x168] sm:$0xff] %v928
  %1067 = vst [vmem:[%s2 + $0x170] sm:$0xff] %v933
  %1068 = vst [vmem:[%s2 + $0x178] sm:$0xff] %v938
  %1069 = vst [vmem:[%s2 + $0x180] sm:$0xff] %v943
  %1070 = vst [vmem:[%s2 + $0x188] sm:$0xff] %v948
  %1071 = vst [vmem:[%s2 + $0x190] sm:$0xff] %v953
  %1072 = vst [vmem:[%s2 + $0x198] sm:$0xff] %v958
  %1073 = vst [vmem:[%s2 + $0x1a0] sm:$0xff] %v963
  %1074 = vst [vmem:[%s2 + $0x1a8] sm:$0xff] %v968
  %1075 = vst [vmem:[%s2 + $0x1b0] sm:$0xff] %v973
  %1076 = vst [vmem:[%s2 + $0x1b8] sm:$0xff] %v978
  %1077 = vst [vmem:[%s2 + $0x1c0] sm:$0xff] %v983
  %1078 = vst [vmem:[%s2 + $0x1c8] sm:$0xff] %v988
  %1079 = vst [vmem:[%s2 + $0x1d0] sm:$0xff] %v993
  %1080 = vst [vmem:[%s2 + $0x1d8] sm:$0xff] %v998
  %1081 = vst [vmem:[%s2 + $0x1e0] sm:$0xff] %v1003
  %1082 = vst [vmem:[%s2 + $0x1e8] sm:$0xff] %v1008
  %1083 = vst [vmem:[%s2 + $0x1f0] sm:$0xff] %v1013
  %1084 = vst [vmem:[%s2 + $0x1f8] sm:$0xff] %v1018
  // Predicated region
  $region10: #{resblock2_apply.8} parent=0 // pred_check
    _
  $region11: #{resblock2_apply.8} parent=0 // pred_check_branch
    %1086 = sbr.rel (0) target = $region13
  $region12: #{resblock2_apply.8} parent=0 // pred_region
    _
  $region13: #{resblock2_apply.8} parent=0 // pred_fallthru
    _
  // Predicated region
  $region14: #{resblock2_apply.8} parent=0 // pred_check
    _
  $region15: #{resblock2_apply.8} parent=0 // pred_check_branch
    %1088 = sbr.rel (0) target = $region17
  $region16: #{resblock2_apply.8} parent=0 // pred_region
    _
  $region17: #{resblock2_apply.8} parent=0 // pred_fallthru
    _

// kernel: resblock2_apply.10
$region0: #{resblock2_apply.10}
  #allocation0 [shape = 'u32[]', space=smem, size = 0x4, offset = 0x4, fixed_abs, tag = 'smem constant byte address 0x4 - core index']
  #allocation1 [shape = 'u32[144,128]{1,0:T(1,128)}', space=vmem, size = 0x12000, scoped, tag = 'internal scratch']
  %s0 = inlined_call_operand.vmem [shape: f32[512,128], index: 0, kind: input, shape index: {}]
  %s1 = inlined_call_operand.vmem [shape: f32[128,128], index: 1, kind: input, shape index: {}]
  %s2 = inlined_call_operand.vmem [shape: f32[512,128], index: 2, kind: output, shape index: {}]
  %s3 = sld [smem:[#allocation0]]
  $region18: #{resblock2_apply.10} parent=0
    _
  %s5 = ssub.s32 1, %s3
  %s6 = scalar_select 0, %s5, %s3
  // Predicated region
  $region2: #{resblock2_apply.10} parent=0 // pred_check
    _
  $region3: #{resblock2_apply.10} parent=0 // pred_check_branch
    %8 = sbr.rel (0) target = $region5
  $region4: #{resblock2_apply.10} parent=0 // pred_region
    _
  $region5: #{resblock2_apply.10} parent=0 // pred_fallthru
    _
  // Predicated region
  $region6: #{resblock2_apply.10} parent=0 // pred_check
    _
  $region7: #{resblock2_apply.10} parent=0 // pred_check_branch
    %10 = sbr.rel (0) target = $region9
  $region8: #{resblock2_apply.10} parent=0 // pred_region
    _
  $region9: #{resblock2_apply.10} parent=0 // pred_fallthru
    _
  %v11 = vld [vmem:[%s0] sm:$0xff]
  %v12 = vld [vmem:[%s0 + $0x8] sm:$0xff]
  %v13 = vld [vmem:[%s0 + $0x10] sm:$0xff]
  %v14 = vld [vmem:[%s0 + $0x18] sm:$0xff]
  %v15 = vld [vmem:[%s0 + $0x20] sm:$0xff]
  %v16 = vld [vmem:[%s0 + $0x28] sm:$0xff]
  %v17 = vld [vmem:[%s0 + $0x30] sm:$0xff]
  %v18 = vld [vmem:[%s0 + $0x38] sm:$0xff]
  %v19 = vld [vmem:[%s0 + $0x40] sm:$0xff]
  %v20 = vld [vmem:[%s0 + $0x48] sm:$0xff]
  %v21 = vld [vmem:[%s0 + $0x50] sm:$0xff]
  %v22 = vld [vmem:[%s0 + $0x58] sm:$0xff]
  %v23 = vld [vmem:[%s0 + $0x60] sm:$0xff]
  %v24 = vld [vmem:[%s0 + $0x68] sm:$0xff]
  %v25 = vld [vmem:[%s0 + $0x70] sm:$0xff]
  %v26 = vld [vmem:[%s0 + $0x78] sm:$0xff]
  %v27 = vld [vmem:[%s0 + $0x80] sm:$0xff]
  %v28 = vld [vmem:[%s0 + $0x88] sm:$0xff]
  %v29 = vld [vmem:[%s0 + $0x90] sm:$0xff]
  %v30 = vld [vmem:[%s0 + $0x98] sm:$0xff]
  %v31 = vld [vmem:[%s0 + $0xa0] sm:$0xff]
  %v32 = vld [vmem:[%s0 + $0xa8] sm:$0xff]
  %v33 = vld [vmem:[%s0 + $0xb0] sm:$0xff]
  %v34 = vld [vmem:[%s0 + $0xb8] sm:$0xff]
  %v35 = vld [vmem:[%s0 + $0xc0] sm:$0xff]
  %v36 = vld [vmem:[%s0 + $0xc8] sm:$0xff]
  %v37 = vld [vmem:[%s0 + $0xd0] sm:$0xff]
  %v38 = vld [vmem:[%s0 + $0xd8] sm:$0xff]
  %v39 = vld [vmem:[%s0 + $0xe0] sm:$0xff]
  %v40 = vld [vmem:[%s0 + $0xe8] sm:$0xff]
  %v41 = vld [vmem:[%s0 + $0xf0] sm:$0xff]
  %v42 = vld [vmem:[%s0 + $0xf8] sm:$0xff]
  %v43 = vld [vmem:[%s0 + $0x100] sm:$0xff]
  %v44 = vld [vmem:[%s0 + $0x108] sm:$0xff]
  %v45 = vld [vmem:[%s0 + $0x110] sm:$0xff]
  %v46 = vld [vmem:[%s0 + $0x118] sm:$0xff]
  %v47 = vld [vmem:[%s0 + $0x120] sm:$0xff]
  %v48 = vld [vmem:[%s0 + $0x128] sm:$0xff]
  %v49 = vld [vmem:[%s0 + $0x130] sm:$0xff]
  %v50 = vld [vmem:[%s0 + $0x138] sm:$0xff]
  %v51 = vld [vmem:[%s0 + $0x140] sm:$0xff]
  %v52 = vld [vmem:[%s0 + $0x148] sm:$0xff]
  %v53 = vld [vmem:[%s0 + $0x150] sm:$0xff]
  %v54 = vld [vmem:[%s0 + $0x158] sm:$0xff]
  %v55 = vld [vmem:[%s0 + $0x160] sm:$0xff]
  %v56 = vld [vmem:[%s0 + $0x168] sm:$0xff]
  %v57 = vld [vmem:[%s0 + $0x170] sm:$0xff]
  %v58 = vld [vmem:[%s0 + $0x178] sm:$0xff]
  %v59 = vld [vmem:[%s0 + $0x180] sm:$0xff]
  %v60 = vld [vmem:[%s0 + $0x188] sm:$0xff]
  %v61 = vld [vmem:[%s0 + $0x190] sm:$0xff]
  %v62 = vld [vmem:[%s0 + $0x198] sm:$0xff]
  %v63 = vld [vmem:[%s0 + $0x1a0] sm:$0xff]
  %v64 = vld [vmem:[%s0 + $0x1a8] sm:$0xff]
  %v65 = vld [vmem:[%s0 + $0x1b0] sm:$0xff]
  %v66 = vld [vmem:[%s0 + $0x1b8] sm:$0xff]
  %v67 = vld [vmem:[%s0 + $0x1c0] sm:$0xff]
  %v68 = vld [vmem:[%s0 + $0x1c8] sm:$0xff]
  %v69 = vld [vmem:[%s0 + $0x1d0] sm:$0xff]
  %v70 = vld [vmem:[%s0 + $0x1d8] sm:$0xff]
  %v71 = vld [vmem:[%s0 + $0x1e0] sm:$0xff]
  %v72 = vld [vmem:[%s0 + $0x1e8] sm:$0xff]
  %v73 = vld [vmem:[%s0 + $0x1f0] sm:$0xff]
  %v74 = vld [vmem:[%s0 + $0x1f8] sm:$0xff]
  %v75 = vld [vmem:[%s1] sm:$0xff]
  %v76 = vld [vmem:[%s1 + $0x8] sm:$0xff]
  %v77 = vld [vmem:[%s1 + $0x10] sm:$0xff]
  %v78 = vld [vmem:[%s1 + $0x18] sm:$0xff]
  %v79 = vld [vmem:[%s1 + $0x20] sm:$0xff]
  %v80 = vld [vmem:[%s1 + $0x28] sm:$0xff]
  %v81 = vld [vmem:[%s1 + $0x30] sm:$0xff]
  %v82 = vld [vmem:[%s1 + $0x38] sm:$0xff]
  %v83 = vld [vmem:[%s1 + $0x40] sm:$0xff]
  %v84 = vld [vmem:[%s1 + $0x48] sm:$0xff]
  %v85 = vld [vmem:[%s1 + $0x50] sm:$0xff]
  %v86 = vld [vmem:[%s1 + $0x58] sm:$0xff]
  %v87 = vld [vmem:[%s1 + $0x60] sm:$0xff]
  %v88 = vld [vmem:[%s1 + $0x68] sm:$0xff]
  %v89 = vld [vmem:[%s1 + $0x70] sm:$0xff]
  %v90 = vld [vmem:[%s1 + $0x78] sm:$0xff]
  %91 = vmatprep.subr.mxu0 0.0
  %92 = vmatpush1.msra.mxu0 %v75
  %93 = vmatprep.subr.mxu0 0.0
  %94 = vmatpush1.msra.mxu0 %v76
  %95 = vmatprep.subr.mxu0 0.0
  %96 = vmatpush1.msra.mxu0 %v77
  %97 = vmatprep.subr.mxu0 0.0
  %98 = vmatpush1.msra.mxu0 %v78
  %99 = vmatprep.subr.mxu0 0.0
  %100 = vmatpush1.msra.mxu0 %v79
  %101 = vmatprep.subr.mxu0 0.0
  %102 = vmatpush1.msra.mxu0 %v80
  %103 = vmatprep.subr.mxu0 0.0
  %104 = vmatpush1.msra.mxu0 %v81
  %105 = vmatprep.subr.mxu0 0.0
  %106 = vmatpush1.msra.mxu0 %v82
  %107 = vmatprep.subr.mxu0 0.0
  %108 = vmatpush1.msra.mxu0 %v83
  %109 = vmatprep.subr.mxu0 0.0
  %110 = vmatpush1.msra.mxu0 %v84
  %111 = vmatprep.subr.mxu0 0.0
  %112 = vmatpush1.msra.mxu0 %v85
  %113 = vmatprep.subr.mxu0 0.0
  %114 = vmatpush1.msra.mxu0 %v86
  %115 = vmatprep.subr.mxu0 0.0
  %116 = vmatpush1.msra.mxu0 %v87
  %117 = vmatprep.subr.mxu0 0.0
  %118 = vmatpush1.msra.mxu0 %v88
  %119 = vmatprep.subr.mxu0 0.0
  %120 = vmatpush1.msra.mxu0 %v89
  %121 = vmatprep.subr.mxu0 0.0
  %122 = vmatpush1.msra.mxu0 %v90
  %123 = vmatprep.subr.mxu0 0.0
  %124 = vmatpush1.msra.mxu0 0.0
  %125 = vmatprep.subr.mxu0 0.0
  %126 = vmatpush1.msra.mxu0 0.0
  %127 = vmatprep.subr.mxu0 0.0
  %128 = vmatpush1.msra.mxu0 0.0
  %129 = vmatprep.subr.mxu0 0.0
  %130 = vmatpush1.msra.mxu0 0.0
  %131 = vmatprep.subr.mxu0 0.0
  %132 = vmatpush1.msra.mxu0 0.0
  %133 = vmatprep.subr.mxu0 0.0
  %134 = vmatpush1.msra.mxu0 0.0
  %135 = vmatprep.subr.mxu0 0.0
  %136 = vmatpush1.msra.mxu0 0.0
  %137 = vmatprep.subr.mxu0 0.0
  %138 = vmatpush1.msra.mxu0 0.0
  %139 = vmatprep.subr.mxu0 0.0
  %140 = vmatpush1.msra.mxu0 0.0
  %141 = vmatprep.subr.mxu0 0.0
  %142 = vmatpush1.msra.mxu0 0.0
  %143 = vmatprep.subr.mxu0 0.0
  %144 = vmatpush1.msra.mxu0 0.0
  %145 = vmatprep.subr.mxu0 0.0
  %146 = vmatpush1.msra.mxu0 0.0
  %147 = vmatprep.subr.mxu0 0.0
  %148 = vmatpush1.msra.mxu0 0.0
  %149 = vmatprep.subr.mxu0 0.0
  %150 = vmatpush1.msra.mxu0 0.0
  %151 = vmatprep.subr.mxu0 0.0
  %152 = vmatpush1.msra.mxu0 0.0
  %153 = vmatprep.subr.mxu0 0.0
  %154 = vmatpush1.msra.mxu0 0.0
  %155 = vmatprep.mubr.f32.mxu0 0.0
  %156 = vmatmul.mubr.f32.gmra.mrb[0].mxu0 %v11
  %v157 = vpop.f32.mrb[0].mxu0
  %v158 = vadd.f32 0.0, %v157
  %v159 = vpop.f32.mrb[0].mxu0
  %160 = vmatprep.mubr.f32.mxu0 0.0
  %161 = vmatmul.mubr.f32.gmra.mrb[0].mxu0 %v12
  %v162 = vpop.f32.mrb[0].mxu0
  %v163 = vadd.f32 0.0, %v162
  %v164 = vpop.f32.mrb[0].mxu0
  %165 = vmatprep.mubr.f32.mxu0 0.0
  %166 = vmatmul.mubr.f32.gmra.mrb[0].mxu0 %v13
  %v167 = vpop.f32.mrb[0].mxu0
  %v168 = vadd.f32 0.0, %v167
  %v169 = vpop.f32.mrb[0].mxu0
  %170 = vmatprep.mubr.f32.mxu0 0.0
  %171 = vmatmul.mubr.f32.gmra.mrb[0].mxu0 %v14
  %v172 = vpop.f32.mrb[0].mxu0
  %v173 = vadd.f32 0.0, %v172
  %v174 = vpop.f32.mrb[0].mxu0
  %175 = vmatprep.mubr.f32.mxu0 0.0
  %176 = vmatmul.mubr.f32.gmra.mrb[0].mxu0 %v15
  %v177 = vpop.f32.mrb[0].mxu0
  %v178 = vadd.f32 0.0, %v177
  %v179 = vpop.f32.mrb[0].mxu0
  %180 = vmatprep.mubr.f32.mxu0 0.0
  %181 = vmatmul.mubr.f32.gmra.mrb[0].mxu0 %v16
  %v182 = vpop.f32.mrb[0].mxu0
  %v183 = vadd.f32 0.0, %v182
  %v184 = vpop.f32.mrb[0].mxu0
  %185 = vmatprep.mubr.f32.mxu0 0.0
  %186 = vmatmul.mubr.f32.gmra.mrb[0].mxu0 %v17
  %v187 = vpop.f32.mrb[0].mxu0
  %v188 = vadd.f32 0.0, %v187
  %v189 = vpop.f32.mrb[0].mxu0
  %190 = vmatprep.mubr.f32.mxu0 0.0
  %191 = vmatmul.mubr.f32.gmra.mrb[0].mxu0 %v18
  %v192 = vpop.f32.mrb[0].mxu0
  %v193 = vadd.f32 0.0, %v192
  %v194 = vpop.f32.mrb[0].mxu0
  %195 = vmatprep.mubr.f32.mxu0 0.0
  %196 = vmatmul.mubr.f32.gmra.mrb[0].mxu0 %v19
  %v197 = vpop.f32.mrb[0].mxu0
  %v198 = vadd.f32 0.0, %v197
  %v199 = vpop.f32.mrb[0].mxu0
  %200 = vmatprep.mubr.f32.mxu0 0.0
  %201 = vmatmul.mubr.f32.gmra.mrb[0].mxu0 %v20
  %v202 = vpop.f32.mrb[0].mxu0
  %v203 = vadd.f32 0.0, %v202
  %v204 = vpop.f32.mrb[0].mxu0
  %205 = vmatprep.mubr.f32.mxu0 0.0
  %206 = vmatmul.mubr.f32.gmra.mrb[0].mxu0 %v21
  %v207 = vpop.f32.mrb[0].mxu0
  %v208 = vadd.f32 0.0, %v207
  %v209 = vpop.f32.mrb[0].mxu0
  %210 = vmatprep.mubr.f32.mxu0 0.0
  %211 = vmatmul.mubr.f32.gmra.mrb[0].mxu0 %v22
  %v212 = vpop.f32.mrb[0].mxu0
  %v213 = vadd.f32 0.0, %v212
  %v214 = vpop.f32.mrb[0].mxu0
  %215 = vmatprep.mubr.f32.mxu0 0.0
  %216 = vmatmul.mubr.f32.gmra.mrb[0].mxu0 %v23
  %v217 = vpop.f32.mrb[0].mxu0
  %v218 = vadd.f32 0.0, %v217
  %v219 = vpop.f32.mrb[0].mxu0
  %220 = vmatprep.mubr.f32.mxu0 0.0
  %221 = vmatmul.mubr.f32.gmra.mrb[0].mxu0 %v24
  %v222 = vpop.f32.mrb[0].mxu0
  %v223 = vadd.f32 0.0, %v222
  %v224 = vpop.f32.mrb[0].mxu0
  %225 = vmatprep.mubr.f32.mxu0 0.0
  %226 = vmatmul.mubr.f32.gmra.mrb[0].mxu0 %v25
  %v227 = vpop.f32.mrb[0].mxu0
  %v228 = vadd.f32 0.0, %v227
  %v229 = vpop.f32.mrb[0].mxu0
  %230 = vmatprep.mubr.f32.mxu0 0.0
  %231 = vmatmul.mubr.f32.gmra.mrb[0].mxu0 %v26
  %v232 = vpop.f32.mrb[0].mxu0
  %v233 = vadd.f32 0.0, %v232
  %v234 = vpop.f32.mrb[0].mxu0
  %235 = vmatprep.mubr.f32.mxu0 0.0
  %236 = vmatmul.mubr.f32.gmra.mrb[0].mxu0 %v27
  %v237 = vpop.f32.mrb[0].mxu0
  %v238 = vadd.f32 0.0, %v237
  %v239 = vpop.f32.mrb[0].mxu0
  %240 = vmatprep.mubr.f32.mxu0 0.0
  %241 = vmatmul.mubr.f32.gmra.mrb[0].mxu0 %v28
  %v242 = vpop.f32.mrb[0].mxu0
  %v243 = vadd.f32 0.0, %v242
  %v244 = vpop.f32.mrb[0].mxu0
  %245 = vmatprep.mubr.f32.mxu0 0.0
  %246 = vmatmul.mubr.f32.gmra.mrb[0].mxu0 %v29
  %v247 = vpop.f32.mrb[0].mxu0
  %v248 = vadd.f32 0.0, %v247
  %v249 = vpop.f32.mrb[0].mxu0
  %250 = vmatprep.mubr.f32.mxu0 0.0
  %251 = vmatmul.mubr.f32.gmra.mrb[0].mxu0 %v30
  %v252 = vpop.f32.mrb[0].mxu0
  %v253 = vadd.f32 0.0, %v252
  %v254 = vpop.f32.mrb[0].mxu0
  %255 = vmatprep.mubr.f32.mxu0 0.0
  %256 = vmatmul.mubr.f32.gmra.mrb[0].mxu0 %v31
  %v257 = vpop.f32.mrb[0].mxu0
  %v258 = vadd.f32 0.0, %v257
  %v259 = vpop.f32.mrb[0].mxu0
  %260 = vmatprep.mubr.f32.mxu0 0.0
  %261 = vmatmul.mubr.f32.gmra.mrb[0].mxu0 %v32
  %v262 = vpop.f32.mrb[0].mxu0
  %v263 = vadd.f32 0.0, %v262
  %v264 = vpop.f32.mrb[0].mxu0
  %265 = vmatprep.mubr.f32.mxu0 0.0
  %266 = vmatmul.mubr.f32.gmra.mrb[0].mxu0 %v33
  %v267 = vpop.f32.mrb[0].mxu0
  %v268 = vadd.f32 0.0, %v267
  %v269 = vpop.f32.mrb[0].mxu0
  %270 = vmatprep.mubr.f32.mxu0 0.0
  %271 = vmatmul.mubr.f32.gmra.mrb[0].mxu0 %v34
  %v272 = vpop.f32.mrb[0].mxu0
  %v273 = vadd.f32 0.0, %v272
  %v274 = vpop.f32.mrb[0].mxu0
  %275 = vmatprep.mubr.f32.mxu0 0.0
  %276 = vmatmul.mubr.f32.gmra.mrb[0].mxu0 %v35
  %v277 = vpop.f32.mrb[0].mxu0
  %v278 = vadd.f32 0.0, %v277
  %v279 = vpop.f32.mrb[0].mxu0
  %280 = vmatprep.mubr.f32.mxu0 0.0
  %281 = vmatmul.mubr.f32.gmra.mrb[0].mxu0 %v36
  %v282 = vpop.f32.mrb[0].mxu0
  %v283 = vadd.f32 0.0, %v282
  %v284 = vpop.f32.mrb[0].mxu0
  %285 = vmatprep.mubr.f32.mxu0 0.0
  %286 = vmatmul.mubr.f32.gmra.mrb[0].mxu0 %v37
  %v287 = vpop.f32.mrb[0].mxu0
  %v288 = vadd.f32 0.0, %v287
  %v289 = vpop.f32.mrb[0].mxu0
  %290 = vmatprep.mubr.f32.mxu0 0.0
  %291 = vmatmul.mubr.f32.gmra.mrb[0].mxu0 %v38
  %v292 = vpop.f32.mrb[0].mxu0
  %v293 = vadd.f32 0.0, %v292
  %v294 = vpop.f32.mrb[0].mxu0
  %295 = vmatprep.mubr.f32.mxu0 0.0
  %296 = vmatmul.mubr.f32.gmra.mrb[0].mxu0 %v39
  %v297 = vpop.f32.mrb[0].mxu0
  %v298 = vadd.f32 0.0, %v297
  %v299 = vpop.f32.mrb[0].mxu0
  %300 = vmatprep.mubr.f32.mxu0 0.0
  %301 = vmatmul.mubr.f32.gmra.mrb[0].mxu0 %v40
  %v302 = vpop.f32.mrb[0].mxu0
  %v303 = vadd.f32 0.0, %v302
  %v304 = vpop.f32.mrb[0].mxu0
  %305 = vmatprep.mubr.f32.mxu0 0.0
  %306 = vmatmul.mubr.f32.gmra.mrb[0].mxu0 %v41
  %v307 = vpop.f32.mrb[0].mxu0
  %v308 = vadd.f32 0.0, %v307
  %v309 = vpop.f32.mrb[0].mxu0
  %310 = vmatprep.mubr.f32.mxu0 0.0
  %311 = vmatmul.mubr.f32.gmra.mrb[0].mxu0 %v42
  %v312 = vpop.f32.mrb[0].mxu0
  %v313 = vadd.f32 0.0, %v312
  %v314 = vpop.f32.mrb[0].mxu0
  %315 = vmatprep.mubr.f32.mxu0 0.0
  %316 = vmatmul.mubr.f32.gmra.mrb[0].mxu0 %v43
  %v317 = vpop.f32.mrb[0].mxu0
  %v318 = vadd.f32 0.0, %v317
  %v319 = vpop.f32.mrb[0].mxu0
  %320 = vmatprep.mubr.f32.mxu0 0.0
  %321 = vmatmul.mubr.f32.gmra.mrb[0].mxu0 %v44
  %v322 = vpop.f32.mrb[0].mxu0
  %v323 = vadd.f32 0.0, %v322
  %v324 = vpop.f32.mrb[0].mxu0
  %325 = vmatprep.mubr.f32.mxu0 0.0
  %326 = vmatmul.mubr.f32.gmra.mrb[0].mxu0 %v45
  %v327 = vpop.f32.mrb[0].mxu0
  %v328 = vadd.f32 0.0, %v327
  %v329 = vpop.f32.mrb[0].mxu0
  %330 = vmatprep.mubr.f32.mxu0 0.0
  %331 = vmatmul.mubr.f32.gmra.mrb[0].mxu0 %v46
  %v332 = vpop.f32.mrb[0].mxu0
  %v333 = vadd.f32 0.0, %v332
  %v334 = vpop.f32.mrb[0].mxu0
  %335 = vmatprep.mubr.f32.mxu0 0.0
  %336 = vmatmul.mubr.f32.gmra.mrb[0].mxu0 %v47
  %v337 = vpop.f32.mrb[0].mxu0
  %v338 = vadd.f32 0.0, %v337
  %v339 = vpop.f32.mrb[0].mxu0
  %340 = vmatprep.mubr.f32.mxu0 0.0
  %341 = vmatmul.mubr.f32.gmra.mrb[0].mxu0 %v48
  %v342 = vpop.f32.mrb[0].mxu0
  %v343 = vadd.f32 0.0, %v342
  %v344 = vpop.f32.mrb[0].mxu0
  %345 = vmatprep.mubr.f32.mxu0 0.0
  %346 = vmatmul.mubr.f32.gmra.mrb[0].mxu0 %v49
  %v347 = vpop.f32.mrb[0].mxu0
  %v348 = vadd.f32 0.0, %v347
  %v349 = vpop.f32.mrb[0].mxu0
  %350 = vmatprep.mubr.f32.mxu0 0.0
  %351 = vmatmul.mubr.f32.gmra.mrb[0].mxu0 %v50
  %v352 = vpop.f32.mrb[0].mxu0
  %v353 = vadd.f32 0.0, %v352
  %v354 = vpop.f32.mrb[0].mxu0
  %355 = vmatprep.mubr.f32.mxu0 0.0
  %356 = vmatmul.mubr.f32.gmra.mrb[0].mxu0 %v51
  %v357 = vpop.f32.mrb[0].mxu0
  %v358 = vadd.f32 0.0, %v357
  %v359 = vpop.f32.mrb[0].mxu0
  %360 = vmatprep.mubr.f32.mxu0 0.0
  %361 = vmatmul.mubr.f32.gmra.mrb[0].mxu0 %v52
  %v362 = vpop.f32.mrb[0].mxu0
  %v363 = vadd.f32 0.0, %v362
  %v364 = vpop.f32.mrb[0].mxu0
  %365 = vmatprep.mubr.f32.mxu0 0.0
  %366 = vmatmul.mubr.f32.gmra.mrb[0].mxu0 %v53
  %v367 = vpop.f32.mrb[0].mxu0
  %v368 = vadd.f32 0.0, %v367
  %v369 = vpop.f32.mrb[0].mxu0
  %370 = vmatprep.mubr.f32.mxu0 0.0
  %371 = vmatmul.mubr.f32.gmra.mrb[0].mxu0 %v54
  %v372 = vpop.f32.mrb[0].mxu0
  %v373 = vadd.f32 0.0, %v372
  %v374 = vpop.f32.mrb[0].mxu0
  %375 = vmatprep.mubr.f32.mxu0 0.0
  %376 = vmatmul.mubr.f32.gmra.mrb[0].mxu0 %v55
  %v377 = vpop.f32.mrb[0].mxu0
  %v378 = vadd.f32 0.0, %v377
  %v379 = vpop.f32.mrb[0].mxu0
  %380 = vmatprep.mubr.f32.mxu0 0.0
  %381 = vmatmul.mubr.f32.gmra.mrb[0].mxu0 %v56
  %v382 = vpop.f32.mrb[0].mxu0
  %v383 = vadd.f32 0.0, %v382
  %v384 = vpop.f32.mrb[0].mxu0
  %385 = vmatprep.mubr.f32.mxu0 0.0
  %386 = vmatmul.mubr.f32.gmra.mrb[0].mxu0 %v57
  %v387 = vpop.f32.mrb[0].mxu0
  %v388 = vadd.f32 0.0, %v387
  %v389 = vpop.f32.mrb[0].mxu0
  %390 = vmatprep.mubr.f32.mxu0 0.0
  %391 = vmatmul.mubr.f32.gmra.mrb[0].mxu0 %v58
  %v392 = vpop.f32.mrb[0].mxu0
  %v393 = vadd.f32 0.0, %v392
  %v394 = vpop.f32.mrb[0].mxu0
  %395 = vmatprep.mubr.f32.mxu0 0.0
  %396 = vmatmul.mubr.f32.gmra.mrb[0].mxu0 %v59
  %v397 = vpop.f32.mrb[0].mxu0
  %v398 = vadd.f32 0.0, %v397
  %v399 = vpop.f32.mrb[0].mxu0
  %400 = vmatprep.mubr.f32.mxu0 0.0
  %401 = vmatmul.mubr.f32.gmra.mrb[0].mxu0 %v60
  %v402 = vpop.f32.mrb[0].mxu0
  %v403 = vadd.f32 0.0, %v402
  %v404 = vpop.f32.mrb[0].mxu0
  %405 = vmatprep.mubr.f32.mxu0 0.0
  %406 = vmatmul.mubr.f32.gmra.mrb[0].mxu0 %v61
  %v407 = vpop.f32.mrb[0].mxu0
  %v408 = vadd.f32 0.0, %v407
  %v409 = vpop.f32.mrb[0].mxu0
  %410 = vmatprep.mubr.f32.mxu0 0.0
  %411 = vmatmul.mubr.f32.gmra.mrb[0].mxu0 %v62
  %v412 = vpop.f32.mrb[0].mxu0
  %v413 = vadd.f32 0.0, %v412
  %v414 = vpop.f32.mrb[0].mxu0
  %415 = vmatprep.mubr.f32.mxu0 0.0
  %416 = vmatmul.mubr.f32.gmra.mrb[0].mxu0 %v63
  %v417 = vpop.f32.mrb[0].mxu0
  %v418 = vadd.f32 0.0, %v417
  %v419 = vpop.f32.mrb[0].mxu0
  %420 = vmatprep.mubr.f32.mxu0 0.0
  %421 = vmatmul.mubr.f32.gmra.mrb[0].mxu0 %v64
  %v422 = vpop.f32.mrb[0].mxu0
  %v423 = vadd.f32 0.0, %v422
  %v424 = vpop.f32.mrb[0].mxu0
  %425 = vmatprep.mubr.f32.mxu0 0.0
  %426 = vmatmul.mubr.f32.gmra.mrb[0].mxu0 %v65
  %v427 = vpop.f32.mrb[0].mxu0
  %v428 = vadd.f32 0.0, %v427
  %v429 = vpop.f32.mrb[0].mxu0
  %430 = vmatprep.mubr.f32.mxu0 0.0
  %431 = vmatmul.mubr.f32.gmra.mrb[0].mxu0 %v66
  %v432 = vpop.f32.mrb[0].mxu0
  %v433 = vadd.f32 0.0, %v432
  %v434 = vpop.f32.mrb[0].mxu0
  %435 = vmatprep.mubr.f32.mxu0 0.0
  %436 = vmatmul.mubr.f32.gmra.mrb[0].mxu0 %v67
  %v437 = vpop.f32.mrb[0].mxu0
  %v438 = vadd.f32 0.0, %v437
  %v439 = vpop.f32.mrb[0].mxu0
  %440 = vmatprep.mubr.f32.mxu0 0.0
  %441 = vmatmul.mubr.f32.gmra.mrb[0].mxu0 %v68
  %v442 = vpop.f32.mrb[0].mxu0
  %v443 = vadd.f32 0.0, %v442
  %v444 = vpop.f32.mrb[0].mxu0
  %445 = vmatprep.mubr.f32.mxu0 0.0
  %446 = vmatmul.mubr.f32.gmra.mrb[0].mxu0 %v69
  %v447 = vpop.f32.mrb[0].mxu0
  %v448 = vadd.f32 0.0, %v447
  %v449 = vpop.f32.mrb[0].mxu0
  %450 = vmatprep.mubr.f32.mxu0 0.0
  %451 = vmatmul.mubr.f32.gmra.mrb[0].mxu0 %v70
  %v452 = vpop.f32.mrb[0].mxu0
  %v453 = vadd.f32 0.0, %v452
  %v454 = vpop.f32.mrb[0].mxu0
  %455 = vmatprep.mubr.f32.mxu0 0.0
  %456 = vmatmul.mubr.f32.gmra.mrb[0].mxu0 %v71
  %v457 = vpop.f32.mrb[0].mxu0
  %v458 = vadd.f32 0.0, %v457
  %v459 = vpop.f32.mrb[0].mxu0
  %460 = vmatprep.mubr.f32.mxu0 0.0
  %461 = vmatmul.mubr.f32.gmra.mrb[0].mxu0 %v72
  %v462 = vpop.f32.mrb[0].mxu0
  %v463 = vadd.f32 0.0, %v462
  %v464 = vpop.f32.mrb[0].mxu0
  %465 = vmatprep.mubr.f32.mxu0 0.0
  %466 = vmatmul.mubr.f32.gmra.mrb[0].mxu0 %v73
  %v467 = vpop.f32.mrb[0].mxu0
  %v468 = vadd.f32 0.0, %v467
  %v469 = vpop.f32.mrb[0].mxu0
  %470 = vmatprep.mubr.f32.mxu0 0.0
  %471 = vmatmul.mubr.f32.gmra.mrb[0].mxu0 %v74
  %v472 = vpop.f32.mrb[0].mxu0
  %v473 = vadd.f32 0.0, %v472
  %v474 = vpop.f32.mrb[0].mxu0
  %475 = vdwg.mxu0
  %476 = vst [vmem:[%s2] sm:$0xff] %v158
  %477 = vst [vmem:[%s2 + $0x8] sm:$0xff] %v163
  %478 = vst [vmem:[%s2 + $0x10] sm:$0xff] %v168
  %479 = vst [vmem:[%s2 + $0x18] sm:$0xff] %v173
  %480 = vst [vmem:[%s2 + $0x20] sm:$0xff] %v178
  %481 = vst [vmem:[%s2 + $0x28] sm:$0xff] %v183
  %482 = vst [vmem:[%s2 + $0x30] sm:$0xff] %v188
  %483 = vst [vmem:[%s2 + $0x38] sm:$0xff] %v193
  %484 = vst [vmem:[%s2 + $0x40] sm:$0xff] %v198
  %485 = vst [vmem:[%s2 + $0x48] sm:$0xff] %v203
  %486 = vst [vmem:[%s2 + $0x50] sm:$0xff] %v208
  %487 = vst [vmem:[%s2 + $0x58] sm:$0xff] %v213
  %488 = vst [vmem:[%s2 + $0x60] sm:$0xff] %v218
  %489 = vst [vmem:[%s2 + $0x68] sm:$0xff] %v223
  %490 = vst [vmem:[%s2 + $0x70] sm:$0xff] %v228
  %491 = vst [vmem:[%s2 + $0x78] sm:$0xff] %v233
  %492 = vst [vmem:[%s2 + $0x80] sm:$0xff] %v238
  %493 = vst [vmem:[%s2 + $0x88] sm:$0xff] %v243
  %494 = vst [vmem:[%s2 + $0x90] sm:$0xff] %v248
  %495 = vst [vmem:[%s2 + $0x98] sm:$0xff] %v253
  %496 = vst [vmem:[%s2 + $0xa0] sm:$0xff] %v258
  %497 = vst [vmem:[%s2 + $0xa8] sm:$0xff] %v263
  %498 = vst [vmem:[%s2 + $0xb0] sm:$0xff] %v268
  %499 = vst [vmem:[%s2 + $0xb8] sm:$0xff] %v273
  %500 = vst [vmem:[%s2 + $0xc0] sm:$0xff] %v278
  %501 = vst [vmem:[%s2 + $0xc8] sm:$0xff] %v283
  %502 = vst [vmem:[%s2 + $0xd0] sm:$0xff] %v288
  %503 = vst [vmem:[%s2 + $0xd8] sm:$0xff] %v293
  %504 = vst [vmem:[%s2 + $0xe0] sm:$0xff] %v298
  %505 = vst [vmem:[%s2 + $0xe8] sm:$0xff] %v303
  %506 = vst [vmem:[%s2 + $0xf0] sm:$0xff] %v308
  %507 = vst [vmem:[%s2 + $0xf8] sm:$0xff] %v313
  %508 = vst [vmem:[%s2 + $0x100] sm:$0xff] %v318
  %509 = vst [vmem:[%s2 + $0x108] sm:$0xff] %v323
  %510 = vst [vmem:[%s2 + $0x110] sm:$0xff] %v328
  %511 = vst [vmem:[%s2 + $0x118] sm:$0xff] %v333
  %512 = vst [vmem:[%s2 + $0x120] sm:$0xff] %v338
  %513 = vst [vmem:[%s2 + $0x128] sm:$0xff] %v343
  %514 = vst [vmem:[%s2 + $0x130] sm:$0xff] %v348
  %515 = vst [vmem:[%s2 + $0x138] sm:$0xff] %v353
  %516 = vst [vmem:[%s2 + $0x140] sm:$0xff] %v358
  %517 = vst [vmem:[%s2 + $0x148] sm:$0xff] %v363
  %518 = vst [vmem:[%s2 + $0x150] sm:$0xff] %v368
  %519 = vst [vmem:[%s2 + $0x158] sm:$0xff] %v373
  %520 = vst [vmem:[%s2 + $0x160] sm:$0xff] %v378
  %521 = vst [vmem:[%s2 + $0x168] sm:$0xff] %v383
  %522 = vst [vmem:[%s2 + $0x170] sm:$0xff] %v388
  %523 = vst [vmem:[%s2 + $0x178] sm:$0xff] %v393
  %524 = vst [vmem:[%s2 + $0x180] sm:$0xff] %v398
  %525 = vst [vmem:[%s2 + $0x188] sm:$0xff] %v403
  %526 = vst [vmem:[%s2 + $0x190] sm:$0xff] %v408
  %527 = vst [vmem:[%s2 + $0x198] sm:$0xff] %v413
  %528 = vst [vmem:[%s2 + $0x1a0] sm:$0xff] %v418
  %529 = vst [vmem:[%s2 + $0x1a8] sm:$0xff] %v423
  %530 = vst [vmem:[%s2 + $0x1b0] sm:$0xff] %v428
  %531 = vst [vmem:[%s2 + $0x1b8] sm:$0xff] %v433
  %532 = vst [vmem:[%s2 + $0x1c0] sm:$0xff] %v438
  %533 = vst [vmem:[%s2 + $0x1c8] sm:$0xff] %v443
  %534 = vst [vmem:[%s2 + $0x1d0] sm:$0xff] %v448
  %535 = vst [vmem:[%s2 + $0x1d8] sm:$0xff] %v453
  %536 = vst [vmem:[%s2 + $0x1e0] sm:$0xff] %v458
  %537 = vst [vmem:[%s2 + $0x1e8] sm:$0xff] %v463
  %538 = vst [vmem:[%s2 + $0x1f0] sm:$0xff] %v468
  %539 = vst [vmem:[%s2 + $0x1f8] sm:$0xff] %v473
  // Predicated region
  $region10: #{resblock2_apply.10} parent=0 // pred_check
    _
  $region11: #{resblock2_apply.10} parent=0 // pred_check_branch
    %541 = sbr.rel (0) target = $region13
  $region12: #{resblock2_apply.10} parent=0 // pred_region
    _
  $region13: #{resblock2_apply.10} parent=0 // pred_fallthru
    _
  // Predicated region
  $region14: #{resblock2_apply.10} parent=0 // pred_check
    _
  $region15: #{resblock2_apply.10} parent=0 // pred_check_branch
    %543 = sbr.rel (0) target = $region17
  $region16: #{resblock2_apply.10} parent=0 // pred_region
    _
  $region17: #{resblock2_apply.10} parent=0 // pred_fallthru
    _

// kernel: resblock2_apply.11
$region0: #{resblock2_apply.11}
  #allocation0 [shape = 'u32[]', space=smem, size = 0x4, offset = 0x4, fixed_abs, tag = 'smem constant byte address 0x4 - core index']
  #allocation1 [shape = 'u32[144,128]{1,0:T(1,128)}', space=vmem, size = 0x12000, scoped, tag = 'internal scratch']
  %s0 = inlined_call_operand.vmem [shape: f32[2,256,128], index: 0, kind: input, shape index: {}]
  %s1 = inlined_call_operand.vmem [shape: f32[2,256,128], index: 1, kind: input, shape index: {}]
  %s2 = inlined_call_operand.hbm [shape: f32[2,256,128], index: 2, kind: output, shape index: {}]
  %s3 = sld [smem:[#allocation0]]
  $region41: #{resblock2_apply.11} parent=0
    _
  %s5 = ssub.s32 1, %s3
  %s6 = scalar_select 0, %s5, %s3
  $region1: #{resblock2_apply.11} parent=0
    #allocation2 [shape = 'u8[262144]{0}', space=vmem, size = 0x40000, scoped, tag = 'output window, operand 0']
    #allocation3 [shape = 's32[2]{0}', space=sflag, size = 0x8, scoped, tag = 'scoped memory for resblock2_apply.11']
    %7 = vsyncpa [#allocation3], 0
    %s8 = scalar_lea.sflag [#allocation3], 1
    %9 = vsyncpa %s8, 0
    loop: start=0, step=1, limit=4
    $region2: #{resblock2_apply.11} parent=1 // loop_pre_header
      _
    $region3: #{resblock2_apply.11} parent=1 // loop_header
      %s11 = sphi 0, %s15
      %p12 = scmp.ge.s32.totalorder %s11, 4
      %s21 = sphi 0, %s23
      %s24 = sphi 0, %s21
      %s25 = sphi 0, %s24
      %s41 = sphi 0, %s25
      %s47 = sphi 0, %s49
      %s50 = sphi 0, %s47
      %s51 = sphi 0, %s50
      %s67 = sphi 0, %s51
      %s73 = sphi 0, %s75
      %s76 = sphi 0, %s73
      %s77 = sphi 0, %s76
      %s93 = sphi 0, %s77
    $region4: #{resblock2_apply.11} parent=1 // loop_header_branch
      %14 = sbr.rel (%p12) target = $region8
    $region5: #{resblock2_apply.11} parent=1 // loop_body
      %s16 = ssub.s32 %s11, 1
      %s17 = ssub.s32 %s11, 2
      %s18 = sadd.s32 %s11, 1
      %s19 = ssub.s32 %s11, %s18
      %p20 = scmp.eq.s32.totalorder %s19, 0
      %s22 = sadd.s32 %s21, 1
      %s23 = scalar_select %p20, %s21, %s22
      %p26 = pneg %p20
      %p27 = scmp.eq.s32.totalorder %s11, 1
      %p28 = por %p26, %p27
      %p29 = scmp.ne.s32.totalorder %s21, %s24
      %p30 = scmp.eq.s32.totalorder %s11, 0
      %p31 = por %p29, %p30
      %p32 = scmp.ne.s32.totalorder %s21, %s24
      %p33 = scmp.eq.s32.totalorder %s16, 1
      %p34 = por %p32, %p33
      %p35 = scmp.ne.s32.totalorder %s24, %s25
      %p36 = scmp.eq.s32.totalorder %s16, 0
      %p37 = por %p35, %p36
      %p38 = scmp.ne.s32.totalorder %s24, %s25
      %p39 = scmp.eq.s32.totalorder %s17, 1
      %p40 = por %p38, %p39
      %p42 = scmp.ne.s32.totalorder %s25, %s41
      %p43 = scmp.eq.s32.totalorder %s17, 0
      %p44 = por %p42, %p43
      %s45 = ssub.s32 %s11, %s18
      %p46 = scmp.eq.s32.totalorder %s45, 0
      %s48 = sadd.s32 %s47, 1
      %s49 = scalar_select %p46, %s47, %s48
      %p52 = pneg %p46
      %p53 = scmp.eq.s32.totalorder %s11, 1
      %p54 = por %p52, %p53
      %p55 = scmp.ne.s32.totalorder %s47, %s50
      %p56 = scmp.eq.s32.totalorder %s11, 0
      %p57 = por %p55, %p56
      %p58 = scmp.ne.s32.totalorder %s47, %s50
      %p59 = scmp.eq.s32.totalorder %s16, 1
      %p60 = por %p58, %p59
      %p61 = scmp.ne.s32.totalorder %s50, %s51
      %p62 = scmp.eq.s32.totalorder %s16, 0
      %p63 = por %p61, %p62
      %p64 = scmp.ne.s32.totalorder %s50, %s51
      %p65 = scmp.eq.s32.totalorder %s17, 1
      %p66 = por %p64, %p65
      %p68 = scmp.ne.s32.totalorder %s51, %s67
      %p69 = scmp.eq.s32.totalorder %s17, 0
      %p70 = por %p68, %p69
      %s71 = ssub.s32 %s11, %s18
      %p72 = scmp.eq.s32.totalorder %s71, 0
      %s74 = sadd.s32 %s73, 1
      %s75 = scalar_select %p72, %s73, %s74
      %p78 = pneg %p72
      %p79 = scmp.eq.s32.totalorder %s11, 1
      %p80 = por %p78, %p79
      %p81 = scmp.ne.s32.totalorder %s73, %s76
      %p82 = scmp.eq.s32.totalorder %s11, 0
      %p83 = por %p81, %p82
      %p84 = scmp.ne.s32.totalorder %s73, %s76
      %p85 = scmp.eq.s32.totalorder %s16, 1
      %p86 = por %p84, %p85
      %p87 = scmp.ne.s32.totalorder %s76, %s77
      %p88 = scmp.eq.s32.totalorder %s16, 0
      %p89 = por %p87, %p88
      %p90 = scmp.ne.s32.totalorder %s76, %s77
      %p91 = scmp.eq.s32.totalorder %s17, 1
      %p92 = por %p90, %p91
      %p94 = scmp.ne.s32.totalorder %s77, %s93
      %p95 = scmp.eq.s32.totalorder %s17, 0
      %p96 = por %p94, %p95
      %p97 = scmp.le.s32.totalorder 1, %s11
      %p98 = scmp.lt.s32.totalorder %s11, 3
      %p99 = pnand %p97, %p98
      %p100 = pneg %p99
      // Predicated region
      $region9: #{resblock2_apply.11} parent=5 // pred_check
        _
      $region10: #{resblock2_apply.11} parent=5 // pred_check_branch
        %102 = sbr.rel (%p99) target = $region12
      $region11: #{resblock2_apply.11} parent=5 // pred_region
        %s103 = ssub.s32 %s11, 1
      $region12: #{resblock2_apply.11} parent=5 // pred_fallthru
        _
      %p104 = scmp.lt.s32.totalorder %s11, 2
      // Predicated region
      $region13: #{resblock2_apply.11} parent=5 // pred_check
        %p105 = pneg %p104
      $region14: #{resblock2_apply.11} parent=5 // pred_check_branch
        %107 = sbr.rel (%p105) target = $region16
      $region15: #{resblock2_apply.11} parent=5 // pred_region
        // Predicated region
        $region17: #{resblock2_apply.11} parent=15 // pred_check
          %p108 = pneg %p31
        $region18: #{resblock2_apply.11} parent=15 // pred_check_branch
          %110 = sbr.rel (%p108) target = $region20
        $region19: #{resblock2_apply.11} parent=15 // pred_region
          %p111 = scmp.lt.s32.totalorder %s11, 1
          %s112 = scalar_select %p111, %s11, 1
          %s113 = smul.addr %s112, 32
          %s114 = smul.addr %s113, 8
          %s115 = scalar_lea.vmem %s0, %s114
        $region20: #{resblock2_apply.11} parent=15 // pred_fallthru
          _
        // Predicated region
        $region21: #{resblock2_apply.11} parent=15 // pred_check
          %p116 = pneg %p57
        $region22: #{resblock2_apply.11} parent=15 // pred_check_branch
          %118 = sbr.rel (%p116) target = $region24
        $region23: #{resblock2_apply.11} parent=15 // pred_region
          %p119 = scmp.lt.s32.totalorder %s11, 1
          %s120 = scalar_select %p119, %s11, 1
          %s121 = smul.addr %s120, 32
          %s122 = smul.addr %s121, 8
          %s123 = scalar_lea.vmem %s1, %s122
        $region24: #{resblock2_apply.11} parent=15 // pred_fallthru
          _
      $region16: #{resblock2_apply.11} parent=5 // pred_fallthru
        _
      %p124 = scmp.le.s32.totalorder 1, %s11
      %p125 = scmp.lt.s32.totalorder %s11, 3
      %p126 = pnand %p124, %p125
      %p127 = pneg %p126
      // Predicated region
      $region25: #{resblock2_apply.11} parent=5 // pred_check
        _
      $region26: #{resblock2_apply.11} parent=5 // pred_check_branch
        %129 = sbr.rel (%p126) target = $region28
      $region27: #{resblock2_apply.11} parent=5 // pred_region
        %s130 = ssub.s32 %s11, 1
        %p131 = scmp.lt.s32.totalorder %s16, 1
        %s132 = scalar_select %p131, %s16, 1
        %s133 = smul.addr %s132, 32
        %s134 = smul.addr %s133, 8
        %s135 = scalar_lea.vmem %s0, %s134
        %p136 = pneg %p37
        %p137 = pneg %p34
        %p138 = scmp.lt.s32.totalorder %s16, 1
        %s139 = scalar_select %p138, %s16, 1
        %s140 = smul.addr %s139, 32
        %s141 = smul.addr %s140, 8
        %s142 = scalar_lea.vmem %s1, %s141
        %p143 = pneg %p63
        %p144 = pneg %p60
        %p145 = pneg %p89
        %p146 = pneg %p86
        %s147 = sand.u32 %s76, 1
        %s148 = scalar_lea.sflag [#allocation3], %s147
        %s149 = sand.u32 %s76, 1
        %s150 = smul.addr %s149, 256
        %s151 = scalar_lea.vmem [#allocation2], %s150
        %p152 = scmp.lt.s32.totalorder %s16, 1
        %s153 = scalar_select %p152, %s16, 1
        %s154 = smul.addr %s153, 32
        %s155 = smul.addr %s154, 8
        %s156 = scalar_lea.vmem %s0, %s155
        %p157 = scmp.lt.s32.totalorder %s16, 1
        %s158 = scalar_select %p157, %s16, 1
        %s159 = smul.addr %s158, 32
        %s160 = smul.addr %s159, 8
        %s161 = scalar_lea.vmem %s1, %s160
        %v162 = vld [vmem:[%s156] sm:$0xff]
        %v163 = vld [vmem:[%s156 + $0x8] sm:$0xff]
        %v164 = vld [vmem:[%s156 + $0x10] sm:$0xff]
        %v165 = vld [vmem:[%s156 + $0x18] sm:$0xff]
        %v166 = vld [vmem:[%s156 + $0x20] sm:$0xff]
        %v167 = vld [vmem:[%s156 + $0x28] sm:$0xff]
        %v168 = vld [vmem:[%s156 + $0x30] sm:$0xff]
        %v169 = vld [vmem:[%s156 + $0x38] sm:$0xff]
        %v170 = vld [vmem:[%s156 + $0x40] sm:$0xff]
        %v171 = vld [vmem:[%s156 + $0x48] sm:$0xff]
        %v172 = vld [vmem:[%s156 + $0x50] sm:$0xff]
        %v173 = vld [vmem:[%s156 + $0x58] sm:$0xff]
        %v174 = vld [vmem:[%s156 + $0x60] sm:$0xff]
        %v175 = vld [vmem:[%s156 + $0x68] sm:$0xff]
        %v176 = vld [vmem:[%s156 + $0x70] sm:$0xff]
        %v177 = vld [vmem:[%s156 + $0x78] sm:$0xff]
        %v178 = vld [vmem:[%s156 + $0x80] sm:$0xff]
        %v179 = vld [vmem:[%s156 + $0x88] sm:$0xff]
        %v180 = vld [vmem:[%s156 + $0x90] sm:$0xff]
        %v181 = vld [vmem:[%s156 + $0x98] sm:$0xff]
        %v182 = vld [vmem:[%s156 + $0xa0] sm:$0xff]
        %v183 = vld [vmem:[%s156 + $0xa8] sm:$0xff]
        %v184 = vld [vmem:[%s156 + $0xb0] sm:$0xff]
        %v185 = vld [vmem:[%s156 + $0xb8] sm:$0xff]
        %v186 = vld [vmem:[%s156 + $0xc0] sm:$0xff]
        %v187 = vld [vmem:[%s156 + $0xc8] sm:$0xff]
        %v188 = vld [vmem:[%s156 + $0xd0] sm:$0xff]
        %v189 = vld [vmem:[%s156 + $0xd8] sm:$0xff]
        %v190 = vld [vmem:[%s156 + $0xe0] sm:$0xff]
        %v191 = vld [vmem:[%s156 + $0xe8] sm:$0xff]
        %v192 = vld [vmem:[%s156 + $0xf0] sm:$0xff]
        %v193 = vld [vmem:[%s156 + $0xf8] sm:$0xff]
        %v194 = vadd.f32 %v162, %v163
        %v195 = vadd.f32 %v194, %v164
        %v196 = vadd.f32 %v195, %v165
        %v197 = vadd.f32 %v196, %v166
        %v198 = vadd.f32 %v197, %v167
        %v199 = vadd.f32 %v198, %v168
        %v200 = vadd.f32 %v199, %v169
        %v201 = vadd.f32 %v200, %v170
        %v202 = vadd.f32 %v201, %v171
        %v203 = vadd.f32 %v202, %v172
        %v204 = vadd.f32 %v203, %v173
        %v205 = vadd.f32 %v204, %v174
        %v206 = vadd.f32 %v205, %v175
        %v207 = vadd.f32 %v206, %v176
        %v208 = vadd.f32 %v207, %v177
        %v209 = vadd.f32 %v208, %v178
        %v210 = vadd.f32 %v209, %v179
        %v211 = vadd.f32 %v210, %v180
        %v212 = vadd.f32 %v211, %v181
        %v213 = vadd.f32 %v212, %v182
        %v214 = vadd.f32 %v213, %v183
        %v215 = vadd.f32 %v214, %v184
        %v216 = vadd.f32 %v215, %v185
        %v217 = vadd.f32 %v216, %v186
        %v218 = vadd.f32 %v217, %v187
        %v219 = vadd.f32 %v218, %v188
        %v220 = vadd.f32 %v219, %v189
        %v221 = vadd.f32 %v220, %v190
        %v222 = vadd.f32 %v221, %v191
        %v223 = vadd.f32 %v222, %v192
        %v224 = vadd.f32 %v223, %v193
        %v225 = vrot.slane %v224, 4
        %v226 = vadd.f32 %v224, %v225
        %v227 = vrot.slane %v226, 2
        %v228 = vadd.f32 %v226, %v227
        %v229 = vrot.slane %v228, 1
        %v230 = vadd.f32 %v228, %v229
        %v231 = vrcp.pop 256.0
        %v232 = vmul.f32 %v230, %v231
        %v233 = vsub.f32 %v162, %v232
        %v234 = vsub.f32 %v163, %v232
        %v235 = vsub.f32 %v164, %v232
        %v236 = vsub.f32 %v165, %v232
        %v237 = vsub.f32 %v166, %v232
        %v238 = vsub.f32 %v167, %v232
        %v239 = vsub.f32 %v168, %v232
        %v240 = vsub.f32 %v169, %v232
        %v241 = vsub.f32 %v170, %v232
        %v242 = vsub.f32 %v171, %v232
        %v243 = vsub.f32 %v172, %v232
        %v244 = vsub.f32 %v173, %v232
        %v245 = vsub.f32 %v174, %v232
        %v246 = vsub.f32 %v175, %v232
        %v247 = vsub.f32 %v176, %v232
        %v248 = vsub.f32 %v177, %v232
        %v249 = vsub.f32 %v178, %v232
        %v250 = vsub.f32 %v179, %v232
        %v251 = vsub.f32 %v180, %v232
        %v252 = vsub.f32 %v181, %v232
        %v253 = vsub.f32 %v182, %v232
        %v254 = vsub.f32 %v183, %v232
        %v255 = vsub.f32 %v184, %v232
        %v256 = vsub.f32 %v185, %v232
        %v257 = vsub.f32 %v186, %v232
        %v258 = vsub.f32 %v187, %v232
        %v259 = vsub.f32 %v188, %v232
        %v260 = vsub.f32 %v189, %v232
        %v261 = vsub.f32 %v190, %v232
        %v262 = vsub.f32 %v191, %v232
        %v263 = vsub.f32 %v192, %v232
        %v264 = vsub.f32 %v193, %v232
        %v265 = vmul.f32 %v233, %v233
        %v266 = vmul.f32 %v234, %v234
        %v267 = vmul.f32 %v235, %v235
        %v268 = vmul.f32 %v236, %v236
        %v269 = vmul.f32 %v237, %v237
        %v270 = vmul.f32 %v238, %v238
        %v271 = vmul.f32 %v239, %v239
        %v272 = vmul.f32 %v240, %v240
        %v273 = vmul.f32 %v241, %v241
        %v274 = vmul.f32 %v242, %v242
        %v275 = vmul.f32 %v243, %v243
        %v276 = vmul.f32 %v244, %v244
        %v277 = vmul.f32 %v245, %v245
        %v278 = vmul.f32 %v246, %v246
        %v279 = vmul.f32 %v247, %v247
        %v280 = vmul.f32 %v248, %v248
        %v281 = vmul.f32 %v249, %v249
        %v282 = vmul.f32 %v250, %v250
        %v283 = vmul.f32 %v251, %v251
        %v284 = vmul.f32 %v252, %v252
        %v285 = vmul.f32 %v253, %v253
        %v286 = vmul.f32 %v254, %v254
        %v287 = vmul.f32 %v255, %v255
        %v288 = vmul.f32 %v256, %v256
        %v289 = vmul.f32 %v257, %v257
        %v290 = vmul.f32 %v258, %v258
        %v291 = vmul.f32 %v259, %v259
        %v292 = vmul.f32 %v260, %v260
        %v293 = vmul.f32 %v261, %v261
        %v294 = vmul.f32 %v262, %v262
        %v295 = vmul.f32 %v263, %v263
        %v296 = vmul.f32 %v264, %v264
        %v297 = vadd.f32 %v265, %v266
        %v298 = vadd.f32 %v297, %v267
        %v299 = vadd.f32 %v298, %v268
        %v300 = vadd.f32 %v299, %v269
        %v301 = vadd.f32 %v300, %v270
        %v302 = vadd.f32 %v301, %v271
        %v303 = vadd.f32 %v302, %v272
        %v304 = vadd.f32 %v303, %v273
        %v305 = vadd.f32 %v304, %v274
        %v306 = vadd.f32 %v305, %v275
        %v307 = vadd.f32 %v306, %v276
        %v308 = vadd.f32 %v307, %v277
        %v309 = vadd.f32 %v308, %v278
        %v310 = vadd.f32 %v309, %v279
        %v311 = vadd.f32 %v310, %v280
        %v312 = vadd.f32 %v311, %v281
        %v313 = vadd.f32 %v312, %v282
        %v314 = vadd.f32 %v313, %v283
        %v315 = vadd.f32 %v314, %v284
        %v316 = vadd.f32 %v315, %v285
        %v317 = vadd.f32 %v316, %v286
        %v318 = vadd.f32 %v317, %v287
        %v319 = vadd.f32 %v318, %v288
        %v320 = vadd.f32 %v319, %v289
        %v321 = vadd.f32 %v320, %v290
        %v322 = vadd.f32 %v321, %v291
        %v323 = vadd.f32 %v322, %v292
        %v324 = vadd.f32 %v323, %v293
        %v325 = vadd.f32 %v324, %v294
        %v326 = vadd.f32 %v325, %v295
        %v327 = vadd.f32 %v326, %v296
        %v328 = vrot.slane %v327, 4
        %v329 = vadd.f32 %v327, %v328
        %v330 = vrot.slane %v329, 2
        %v331 = vadd.f32 %v329, %v330
        %v332 = vrot.slane %v331, 1
        %v333 = vadd.f32 %v331, %v332
        %v334 = vmul.f32 %v333, %v231
        %v335 = vadd.f32 %v334, 1e-05
        %v336 = vrsqrt.pop %v335
        %v337 = vmul.f32 %v233, %v336
        %v338 = vmul.f32 %v234, %v336
        %v339 = vmul.f32 %v235, %v336
        %v340 = vmul.f32 %v236, %v336
        %v341 = vmul.f32 %v237, %v336
        %v342 = vmul.f32 %v238, %v336
        %v343 = vmul.f32 %v239, %v336
        %v344 = vmul.f32 %v240, %v336
        %v345 = vmul.f32 %v241, %v336
        %v346 = vmul.f32 %v242, %v336
        %v347 = vmul.f32 %v243, %v336
        %v348 = vmul.f32 %v244, %v336
        %v349 = vmul.f32 %v245, %v336
        %v350 = vmul.f32 %v246, %v336
        %v351 = vmul.f32 %v247, %v336
        %v352 = vmul.f32 %v248, %v336
        %v353 = vmul.f32 %v249, %v336
        %v354 = vmul.f32 %v250, %v336
        %v355 = vmul.f32 %v251, %v336
        %v356 = vmul.f32 %v252, %v336
        %v357 = vmul.f32 %v253, %v336
        %v358 = vmul.f32 %v254, %v336
        %v359 = vmul.f32 %v255, %v336
        %v360 = vmul.f32 %v256, %v336
        %v361 = vmul.f32 %v257, %v336
        %v362 = vmul.f32 %v258, %v336
        %v363 = vmul.f32 %v259, %v336
        %v364 = vmul.f32 %v260, %v336
        %v365 = vmul.f32 %v261, %v336
        %v366 = vmul.f32 %v262, %v336
        %v367 = vmul.f32 %v263, %v336
        %v368 = vmul.f32 %v264, %v336
        %v369 = vld [vmem:[%s161] sm:$0xff]
        %v370 = vld [vmem:[%s161 + $0x8] sm:$0xff]
        %v371 = vld [vmem:[%s161 + $0x10] sm:$0xff]
        %v372 = vld [vmem:[%s161 + $0x18] sm:$0xff]
        %v373 = vld [vmem:[%s161 + $0x20] sm:$0xff]
        %v374 = vld [vmem:[%s161 + $0x28] sm:$0xff]
        %v375 = vld [vmem:[%s161 + $0x30] sm:$0xff]
        %v376 = vld [vmem:[%s161 + $0x38] sm:$0xff]
        %v377 = vld [vmem:[%s161 + $0x40] sm:$0xff]
        %v378 = vld [vmem:[%s161 + $0x48] sm:$0xff]
        %v379 = vld [vmem:[%s161 + $0x50] sm:$0xff]
        %v380 = vld [vmem:[%s161 + $0x58] sm:$0xff]
        %v381 = vld [vmem:[%s161 + $0x60] sm:$0xff]
        %v382 = vld [vmem:[%s161 + $0x68] sm:$0xff]
        %v383 = vld [vmem:[%s161 + $0x70] sm:$0xff]
        %v384 = vld [vmem:[%s161 + $0x78] sm:$0xff]
        %v385 = vld [vmem:[%s161 + $0x80] sm:$0xff]
        %v386 = vld [vmem:[%s161 + $0x88] sm:$0xff]
        %v387 = vld [vmem:[%s161 + $0x90] sm:$0xff]
        %v388 = vld [vmem:[%s161 + $0x98] sm:$0xff]
        %v389 = vld [vmem:[%s161 + $0xa0] sm:$0xff]
        %v390 = vld [vmem:[%s161 + $0xa8] sm:$0xff]
        %v391 = vld [vmem:[%s161 + $0xb0] sm:$0xff]
        %v392 = vld [vmem:[%s161 + $0xb8] sm:$0xff]
        %v393 = vld [vmem:[%s161 + $0xc0] sm:$0xff]
        %v394 = vld [vmem:[%s161 + $0xc8] sm:$0xff]
        %v395 = vld [vmem:[%s161 + $0xd0] sm:$0xff]
        %v396 = vld [vmem:[%s161 + $0xd8] sm:$0xff]
        %v397 = vld [vmem:[%s161 + $0xe0] sm:$0xff]
        %v398 = vld [vmem:[%s161 + $0xe8] sm:$0xff]
        %v399 = vld [vmem:[%s161 + $0xf0] sm:$0xff]
        %v400 = vld [vmem:[%s161 + $0xf8] sm:$0xff]
        %v401 = vadd.f32 %v337, %v369
        %v402 = vadd.f32 %v338, %v370
        %v403 = vadd.f32 %v339, %v371
        %v404 = vadd.f32 %v340, %v372
        %v405 = vadd.f32 %v341, %v373
        %v406 = vadd.f32 %v342, %v374
        %v407 = vadd.f32 %v343, %v375
        %v408 = vadd.f32 %v344, %v376
        %v409 = vadd.f32 %v345, %v377
        %v410 = vadd.f32 %v346, %v378
        %v411 = vadd.f32 %v347, %v379
        %v412 = vadd.f32 %v348, %v380
        %v413 = vadd.f32 %v349, %v381
        %v414 = vadd.f32 %v350, %v382
        %v415 = vadd.f32 %v351, %v383
        %v416 = vadd.f32 %v352, %v384
        %v417 = vadd.f32 %v353, %v385
        %v418 = vadd.f32 %v354, %v386
        %v419 = vadd.f32 %v355, %v387
        %v420 = vadd.f32 %v356, %v388
        %v421 = vadd.f32 %v357, %v389
        %v422 = vadd.f32 %v358, %v390
        %v423 = vadd.f32 %v359, %v391
        %v424 = vadd.f32 %v360, %v392
        %v425 = vadd.f32 %v361, %v393
        %v426 = vadd.f32 %v362, %v394
        %v427 = vadd.f32 %v363, %v395
        %v428 = vadd.f32 %v364, %v396
        %v429 = vadd.f32 %v365, %v397
        %v430 = vadd.f32 %v366, %v398
        %v431 = vadd.f32 %v367, %v399
        %v432 = vadd.f32 %v368, %v400
        %v433 = vmax.f32 %v401, 0.0
        %v434 = vmax.f32 %v402, 0.0
        %v435 = vmax.f32 %v403, 0.0
        %v436 = vmax.f32 %v404, 0.0
        %v437 = vmax.f32 %v405, 0.0
        %v438 = vmax.f32 %v406, 0.0
        %v439 = vmax.f32 %v407, 0.0
        %v440 = vmax.f32 %v408, 0.0
        %v441 = vmax.f32 %v409, 0.0
        %v442 = vmax.f32 %v410, 0.0
        %v443 = vmax.f32 %v411, 0.0
        %v444 = vmax.f32 %v412, 0.0
        %v445 = vmax.f32 %v413, 0.0
        %v446 = vmax.f32 %v414, 0.0
        %v447 = vmax.f32 %v415, 0.0
        %v448 = vmax.f32 %v416, 0.0
        %v449 = vmax.f32 %v417, 0.0
        %v450 = vmax.f32 %v418, 0.0
        %v451 = vmax.f32 %v419, 0.0
        %v452 = vmax.f32 %v420, 0.0
        %v453 = vmax.f32 %v421, 0.0
        %v454 = vmax.f32 %v422, 0.0
        %v455 = vmax.f32 %v423, 0.0
        %v456 = vmax.f32 %v424, 0.0
        %v457 = vmax.f32 %v425, 0.0
        %v458 = vmax.f32 %v426, 0.0
        %v459 = vmax.f32 %v427, 0.0
        %v460 = vmax.f32 %v428, 0.0
        %v461 = vmax.f32 %v429, 0.0
        %v462 = vmax.f32 %v430, 0.0
        %v463 = vmax.f32 %v431, 0.0
        %v464 = vmax.f32 %v432, 0.0
        %465 = vst [vmem:[%s151] sm:$0xff] %v433
        %466 = vst [vmem:[%s151 + $0x8] sm:$0xff] %v434
        %467 = vst [vmem:[%s151 + $0x10] sm:$0xff] %v435
        %468 = vst [vmem:[%s151 + $0x18] sm:$0xff] %v436
        %469 = vst [vmem:[%s151 + $0x20] sm:$0xff] %v437
        %470 = vst [vmem:[%s151 + $0x28] sm:$0xff] %v438
        %471 = vst [vmem:[%s151 + $0x30] sm:$0xff] %v439
        %472 = vst [vmem:[%s151 + $0x38] sm:$0xff] %v440
        %473 = vst [vmem:[%s151 + $0x40] sm:$0xff] %v441
        %474 = vst [vmem:[%s151 + $0x48] sm:$0xff] %v442
        %475 = vst [vmem:[%s151 + $0x50] sm:$0xff] %v443
        %476 = vst [vmem:[%s151 + $0x58] sm:$0xff] %v444
        %477 = vst [vmem:[%s151 + $0x60] sm:$0xff] %v445
        %478 = vst [vmem:[%s151 + $0x68] sm:$0xff] %v446
        %479 = vst [vmem:[%s151 + $0x70] sm:$0xff] %v447
        %480 = vst [vmem:[%s151 + $0x78] sm:$0xff] %v448
        %481 = vst [vmem:[%s151 + $0x80] sm:$0xff] %v449
        %482 = vst [vmem:[%s151 + $0x88] sm:$0xff] %v450
        %483 = vst [vmem:[%s151 + $0x90] sm:$0xff] %v451
        %484 = vst [vmem:[%s151 + $0x98] sm:$0xff] %v452
        %485 = vst [vmem:[%s151 + $0xa0] sm:$0xff] %v453
        %486 = vst [vmem:[%s151 + $0xa8] sm:$0xff] %v454
        %487 = vst [vmem:[%s151 + $0xb0] sm:$0xff] %v455
        %488 = vst [vmem:[%s151 + $0xb8] sm:$0xff] %v456
        %489 = vst [vmem:[%s151 + $0xc0] sm:$0xff] %v457
        %490 = vst [vmem:[%s151 + $0xc8] sm:$0xff] %v458
        %491 = vst [vmem:[%s151 + $0xd0] sm:$0xff] %v459
        %492 = vst [vmem:[%s151 + $0xd8] sm:$0xff] %v460
        %493 = vst [vmem:[%s151 + $0xe0] sm:$0xff] %v461
        %494 = vst [vmem:[%s151 + $0xe8] sm:$0xff] %v462
        %495 = vst [vmem:[%s151 + $0xf0] sm:$0xff] %v463
        %496 = vst [vmem:[%s151 + $0xf8] sm:$0xff] %v464
        %s497 = sand.u32 %s76, 1
        %s498 = scalar_lea.sflag [#allocation3], %s497
        %s499 = sand.u32 %s76, 1
        %s500 = smul.addr %s499, 256
        %s501 = scalar_lea.vmem [#allocation2], %s500
        // Predicated region
        $region29: #{resblock2_apply.11} parent=27 // pred_check
          %p502 = pneg %p86
        $region30: #{resblock2_apply.11} parent=27 // pred_check_branch
          %504 = sbr.rel (%p502) target = $region32
        $region31: #{resblock2_apply.11} parent=27 // pred_region
          %s506 = ssub.s32 4096, 4096
          %507 = vsyncadd %s498, %s506
          %s508 = smul.addr %s16, 32
          %s509 = smul.addr %s508, 128
          %s510 = scalar_lea.hbm %s2, %s509
          %s511 = sshll.u32 %s501, 4
          %s512 = int_to_ptr.vmem [resolvable:$true] %s511
          %517 = dma.vmem_to_hbm [thread:$0]  %s512, 4096, %s510, %s498, 128, 128, 8
        $region32: #{resblock2_apply.11} parent=27 // pred_fallthru
          _
      $region28: #{resblock2_apply.11} parent=5 // pred_fallthru
        _
      %p518 = scmp.le.s32.totalorder 2, %s11
      // Predicated region
      $region33: #{resblock2_apply.11} parent=5 // pred_check
        %p519 = pneg %p518
      $region34: #{resblock2_apply.11} parent=5 // pred_check_branch
        %521 = sbr.rel (%p519) target = $region36
      $region35: #{resblock2_apply.11} parent=5 // pred_region
        %s522 = ssub.s32 %s11, 2
        // Predicated region
        $region37: #{resblock2_apply.11} parent=35 // pred_check
          %p523 = pneg %p92
        $region38: #{resblock2_apply.11} parent=35 // pred_check_branch
          %525 = sbr.rel (%p523) target = $region40
        $region39: #{resblock2_apply.11} parent=35 // pred_region
          %s526 = sand.u32 %s77, 1
          %s527 = scalar_lea.sflag [#allocation3], %s526
          %s528 = sand.u32 %s77, 1
          %s529 = smul.addr %s528, 256
          %s530 = scalar_lea.vmem [#allocation2], %s529
          %531 = dma.done %s527, 4096
        $region40: #{resblock2_apply.11} parent=35 // pred_fallthru
          _
      $region36: #{resblock2_apply.11} parent=5 // pred_fallthru
        _
    $region6: #{resblock2_apply.11} parent=1 // loop_footer
      %s15 = sadd.s32 1, %s11
    $region7: #{resblock2_apply.11} parent=1 // loop_footer_branch
      %10 = sbr.rel target = $region3
    $region8: #{resblock2_apply.11} parent=1 // loop_exit
      _
    %532 = vsyncpa [#allocation3], 1
    %s533 = scalar_lea.sflag [#allocation3], 1
    %534 = vsyncpa %s533, 1

</llo_original>
